<compile_context>
chip_gen: v7x
topology: tpu7x:2x2x1
jax: 0.10.0
libtpu: 0.0.40
codegen_flags: <defaults>
</compile_context>

<pallas_src>
import functools

import jax
import jax.numpy as jnp
from jax import lax
from jax.experimental import pallas as pl
from jax.experimental.pallas import tpu as pltpu


# ------------------------------------------------------------------------------------
# Fully fused forward kernel: one grid step == one graph, everything resident in VMEM.
# ------------------------------------------------------------------------------------
def _trident_kernel(*refs, n_conv, n_fc, ks):
    """input BN -> global[0] -> [EdgeConv + global update] * n_conv -> fc stack -> logits."""
    x_ref, pos_ref = refs[0], refs[1]
    out_ref = refs[-1]
    w = refs[2:-1]

    ci = 0
    bn_scale = w[ci][...]
    bn_shift = w[ci + 1][...]
    w0 = w[ci + 2][...]
    b0 = w[ci + 3][...]
    ci += 4

    # ---- input BatchNorm (folded) + global_mean_pool + global_process[0] dense ----
    fts = x_ref[0] * bn_scale + bn_shift                                 # [M, F0] f32
    pts = pos_ref[0]                                                     # [M, P]  f32
    M = fts.shape[0]
    pooled = jnp.mean(fts, axis=0, keepdims=True)                        # [1, F0]
    u = jnp.maximum(jnp.dot(pooled.astype(jnp.bfloat16), w0,
                            preferred_element_type=jnp.float32) + b0, 0.0)   # [1, F0]

    for li in range(n_conv):
        wbig = w[ci][...]
        b1 = w[ci + 1][...]
        w2 = w[ci + 2][...]
        b2 = w[ci + 3][...]
        w3 = w[ci + 4][...]
        b3 = w[ci + 5][...]
        bskip = w[ci + 6][...]
        wg = w[ci + 7][...]
        bg = w[ci + 8][...]
        ci += 9
        k = ks[li]
        c0 = b1.shape[1]
        fu = u.shape[1]

        # ---- kNN via Gram-matrix distances (per-row |p_i|^2 dropped: argmin-invariant) ----
        gram = lax.dot_general(pts, pts, (((1,), (1,)), ((), ())),
                               preferred_element_type=jnp.float32)       # [M, M] = pts @ pts.T
        sq = jnp.sum(pts * pts, axis=-1, keepdims=True)                  # [M, 1]
        score = jnp.transpose(sq) - 2.0 * gram                           # [M, M]
        row = lax.broadcasted_iota(jnp.int32, (M, M), 0)
        col = lax.broadcasted_iota(jnp.int32, (M, M), 1)
        inf = jnp.float32(jnp.inf)
        score = jnp.where(row == col, inf, score)                        # no self loops
        eye_bf = (row == col).astype(jnp.bfloat16)

        # k rounds of (row-min, lowest-column tie-break).  Each round emits an augmented
        # one-hot block [sel | I]: the identity half folds the per-target term a_i into the
        # same MXU gather matmul, so a_i is never replicated k times.
        # TODO(synk): the two XLU reductions per round could be fused into one for large M.
        blocks = []
        for _ in range(k):                                               # static unroll, k small
            vmin = jnp.min(score, axis=1, keepdims=True)                 # [M, 1]
            cand = score <= vmin
            pick = jnp.min(jnp.where(cand, col, M), axis=1, keepdims=True)
            sel = col == pick                                            # one True per row
            blocks.append(jnp.concatenate([sel.astype(jnp.bfloat16), eye_bf], axis=1))
            score = jnp.where(sel, inf, score)
        onehot = jnp.concatenate(blocks, axis=0)                         # [k*M, 2M] bf16

        # ---- shared-LHS fused matmul: [x | u] @ [[w1xi-w1d | w1d | wskip], [w1u | 0 | 0]] ----
        xb = fts.astype(jnp.bfloat16)
        ub = jnp.broadcast_to(u.astype(jnp.bfloat16), (M, fu))
        xcat = jnp.concatenate([xb, ub], axis=1)                         # [M, F+Fu] bf16
        cat = jnp.dot(xcat, wbig, preferred_element_type=jnp.float32)    # [M, 2c0+c2]
        a_i = cat[:, :c0] + b1                   # per-target message part (u + x_i terms)
        b_j = cat[:, c0:2 * c0]                  # per-source message part (x_j term)
        skip = cat[:, 2 * c0:] + bskip           # skip_mlp(fts), BN folded

        # ---- message MLP on the M*k selected (target, neighbour) pairs ----
        pair = jnp.concatenate([b_j, a_i], axis=0).astype(jnp.bfloat16)  # [2M, c0]
        h1 = jnp.maximum(jnp.dot(onehot, pair,
                                 preferred_element_type=jnp.float32), 0.0)       # [k*M, c0]
        h2 = jnp.maximum(jnp.dot(h1.astype(jnp.bfloat16), w2,
                                 preferred_element_type=jnp.float32) + b2, 0.0)   # [k*M, c1]
        h3 = jnp.maximum(jnp.dot(h2.astype(jnp.bfloat16), w3,
                                 preferred_element_type=jnp.float32) + b3, 0.0)   # [k*M, c2]

        # ---- max aggregation over the k neighbour blocks (static sublane slices) ----
        aggr = h3[0:M]
        for t in range(1, k):
            aggr = jnp.maximum(aggr, h3[t * M:(t + 1) * M])              # [M, c2]

        out = jnp.maximum(aggr + skip, 0.0)                              # [M, c2]

        # ---- fused global_mean_pool + global_process[li+1] over concat([u, pooled]) ----
        pooled = jnp.mean(out, axis=0, keepdims=True)                    # [1, c2]
        ucat = jnp.concatenate([u, pooled], axis=1).astype(jnp.bfloat16)
        u = jnp.maximum(jnp.dot(ucat, wg,
                                preferred_element_type=jnp.float32) + bg, 0.0)    # [1, c2]

        fts = out
        pts = out                      # next layer's kNN runs on the new features

    # ---- fc stack + output linear (Dropout = eval identity; softmax not applied) ----
    h = u
    for li in range(n_fc):
        wf = w[ci][...]
        bf_ = w[ci + 1][...]
        ci += 2
        h = jnp.dot(h.astype(jnp.bfloat16), wf, preferred_element_type=jnp.float32) + bf_
        if li < n_fc - 1:
            h = jnp.maximum(h, 0.0)
    out_ref[0] = h


# ------------------------------------------------------------------------------------
# pallas_call plumbing
# ------------------------------------------------------------------------------------
def _full_spec(arr):
    zero = (0,) * arr.ndim
    return pl.BlockSpec(arr.shape, lambda b, _z=zero: _z)


def trident_forward(params, x, pos):
    B, M, F0 = x.shape
    P = pos.shape[-1]
    n_out = params['out'][0].shape[1]
    fc_all = list(params['fc']) + [params['out']]
    ks = tuple(int(c['k']) for c in params['convs'])

    weights = [params['input_bn'][0], params['input_bn'][1],
               params['global0'][0], params['global0'][1]]
    for c in params['convs']:
        weights += [c['wbig'], c['b1'], c['w2'], c['b2'], c['w3'], c['b3'],
                    c['bskip'], c['wg'], c['bg']]
    for (wf, bf_) in fc_all:
        weights += [wf, bf_]

    in_specs = [pl.BlockSpec((1, M, F0), lambda b: (b, 0, 0)),
                pl.BlockSpec((1, M, P), lambda b: (b, 0, 0))]
    in_specs += [_full_spec(a) for a in weights]

    kern = functools.partial(_trident_kernel,
                             n_conv=len(params['convs']),
                             n_fc=len(fc_all),
                             ks=ks)

    logits = pl.pallas_call(
        kern,
        out_shape=jax.ShapeDtypeStruct((B, 1, n_out), jnp.float32),
        grid=(B,),
        in_specs=in_specs,
        out_specs=pl.BlockSpec((1, 1, n_out), lambda b: (b, 0, 0)),
        compiler_params=pltpu.CompilerParams(
            dimension_semantics=("parallel",)),   # graph axis sharded across v7x's 2 TCs
    )(x, pos, *weights)
    return logits.reshape(B, n_out)


# ------------------------------------------------------------------------------------
# Deterministic parameter initialization (BatchNorm folded into adjacent Linears)
# ------------------------------------------------------------------------------------
def _fold_bn(gamma, beta, mean, var, eps=1e-5):
    scale = gamma / jnp.sqrt(var + eps)
    shift = beta - mean * scale
    return scale, shift


def _bn_params(key, dim):
    k1, k2, k3, k4 = jax.random.split(key, 4)
    gamma = 1.0 + 0.1 * jax.random.normal(k1, (dim,), jnp.float32)
    beta = 0.1 * jax.random.normal(k2, (dim,), jnp.float32)
    mean = 0.1 * jax.random.normal(k3, (dim,), jnp.float32)
    var = 0.5 + jax.random.uniform(k4, (dim,), jnp.float32)
    return _fold_bn(gamma, beta, mean, var)


def _linear_w(key, din, dout):
    return jax.random.normal(key, (din, dout), jnp.float32) / jnp.sqrt(jnp.float32(din))


def init_params(key, settings):
    bf = jnp.bfloat16
    f_in = settings['input_features']
    p = {}
    key, k = jax.random.split(key)
    s, sh = _bn_params(k, f_in)
    p['input_bn'] = (s.reshape(1, -1), sh.reshape(1, -1))

    # global_process[0]: Linear(f_in, f_in) + BN + ReLU
    key, kw, kb, kbn = jax.random.split(key, 4)
    w = _linear_w(kw, f_in, f_in)
    b = 0.05 * jax.random.normal(kb, (f_in,), jnp.float32)
    s, sh = _bn_params(kbn, f_in)
    p['global0'] = ((w * s[None, :]).astype(bf), (b * s + sh).reshape(1, -1))

    p['convs'] = []
    prev = f_in
    for (k_knn, channels) in settings['conv_params']:
        c0, c1, c2 = channels
        key, k1, k2_, k3_, ks_, kbn1, kbn2, kbn3, kbns = jax.random.split(key, 9)
        s1, b1 = _bn_params(kbn1, c0)
        w1 = _linear_w(k1, 3 * prev, c0) * s1[None, :]     # rows: [u_i | x_i | x_j - x_i]
        w1u, w1xi, w1d = w1[:prev], w1[prev:2 * prev], w1[2 * prev:]
        s2, b2 = _bn_params(kbn2, c1)
        w2 = _linear_w(k2_, c0, c1) * s2[None, :]
        s3, b3 = _bn_params(kbn3, c2)
        w3 = _linear_w(k3_, c1, c2) * s3[None, :]
        ss, bs = _bn_params(kbns, c2)
        wskip = _linear_w(ks_, prev, c2) * ss[None, :]

        # Shared-LHS fused weight so that
        #   [x | u] @ wbig = [ x@(w1xi-w1d) + u@w1u | x@w1d | x@wskip ]
        x_rows = jnp.concatenate([w1xi - w1d, w1d, wskip], axis=1)           # [prev, 2c0+c2]
        u_rows = jnp.concatenate(
            [w1u, jnp.zeros((prev, c0 + c2), jnp.float32)], axis=1)          # [prev, 2c0+c2]
        wbig = jnp.concatenate([x_rows, u_rows], axis=0).astype(bf)          # [2*prev, 2c0+c2]

        # global_process[idx+1]: Linear(prev + c2, c2)+BN+ReLU over concat([u, pooled])
        key, kw, kb, kbn = jax.random.split(key, 4)
        wg = _linear_w(kw, prev + c2, c2)
        bg = 0.05 * jax.random.normal(kb, (c2,), jnp.float32)
        sg, shg = _bn_params(kbn, c2)

        p['convs'].append(dict(
            wbig=wbig,
            b1=b1.reshape(1, -1),
            w2=w2.astype(bf), b2=b2.reshape(1, -1),
            w3=w3.astype(bf), b3=b3.reshape(1, -1),
            bskip=bs.reshape(1, -1),
            wg=(wg * sg[None, :]).astype(bf),
            bg=(bg * sg + shg).reshape(1, -1),
            k=k_knn,
        ))
        prev = c2

    p['fc'] = []
    for (_drop_rate, units) in settings['fc_params']:
        key, kw, kb = jax.random.split(key, 3)
        w = _linear_w(kw, prev, units)
        b = 0.05 * jax.random.normal(kb, (units,), jnp.float32)
        p['fc'].append((w.astype(bf), b.reshape(1, -1)))
        prev = units

    key, kw, kb = jax.random.split(key, 3)
    w = _linear_w(kw, prev, settings['output_classes'])
    b = 0.05 * jax.random.normal(kb, (settings['output_classes'],), jnp.float32)
    p['out'] = (w.astype(bf), b.reshape(1, -1))
    return p


# ------------------------------------------------------------------------------------
if __name__ == "__main__":
    settings = {
        'input_features': 8,
        'conv_params': [(4, (16, 16, 16)), (4, (32, 32, 32))],   # (K, channels)
        'fc_params': [(0.1, 32)],                                # (dropout, units)
        'output_classes': 4,
    }
    B, M, P = 2, 32, 3          # 2 graphs, 32 nodes each, 3-D positions
    key = jax.random.PRNGKey(0)
    kx, kp, kparams = jax.random.split(key, 3)
    x = jax.random.normal(kx, (B, M, settings['input_features']), jnp.float32)
    pos = jax.random.normal(kp, (B, M, P), jnp.float32)

    params = init_params(kparams, settings)
    logits = trident_forward(params, x, pos)
    jax.block_until_ready(logits)
    assert logits.shape == (B, settings['output_classes'])
    assert bool(jnp.all(jnp.isfinite(logits)))
    print("KERNEL_OK")
</pallas_src>

<mosaic_0001>
module attributes {stable_mosaic.version = 11 : i64} {
  func.func @_trident_kernel(%arg0: i32, %arg1: memref<1x32x8xf32, #tpu.memory_space<vmem>>, %arg2: memref<1x32x3xf32, #tpu.memory_space<vmem>>, %arg3: memref<1x8xf32, #tpu.memory_space<vmem>>, %arg4: memref<1x8xf32, #tpu.memory_space<vmem>>, %arg5: memref<8x8xbf16, #tpu.memory_space<vmem>>, %arg6: memref<1x8xf32, #tpu.memory_space<vmem>>, %arg7: memref<16x48xbf16, #tpu.memory_space<vmem>>, %arg8: memref<1x16xf32, #tpu.memory_space<vmem>>, %arg9: memref<16x16xbf16, #tpu.memory_space<vmem>>, %arg10: memref<1x16xf32, #tpu.memory_space<vmem>>, %arg11: memref<16x16xbf16, #tpu.memory_space<vmem>>, %arg12: memref<1x16xf32, #tpu.memory_space<vmem>>, %arg13: memref<1x16xf32, #tpu.memory_space<vmem>>, %arg14: memref<24x16xbf16, #tpu.memory_space<vmem>>, %arg15: memref<1x16xf32, #tpu.memory_space<vmem>>, %arg16: memref<32x96xbf16, #tpu.memory_space<vmem>>, %arg17: memref<1x32xf32, #tpu.memory_space<vmem>>, %arg18: memref<32x32xbf16, #tpu.memory_space<vmem>>, %arg19: memref<1x32xf32, #tpu.memory_space<vmem>>, %arg20: memref<32x32xbf16, #tpu.memory_space<vmem>>, %arg21: memref<1x32xf32, #tpu.memory_space<vmem>>, %arg22: memref<1x32xf32, #tpu.memory_space<vmem>>, %arg23: memref<48x32xbf16, #tpu.memory_space<vmem>>, %arg24: memref<1x32xf32, #tpu.memory_space<vmem>>, %arg25: memref<32x32xbf16, #tpu.memory_space<vmem>>, %arg26: memref<1x32xf32, #tpu.memory_space<vmem>>, %arg27: memref<32x4xbf16, #tpu.memory_space<vmem>>, %arg28: memref<1x4xf32, #tpu.memory_space<vmem>>, %arg29: memref<1x1x4xf32, #tpu.memory_space<vmem>>) attributes {dimension_semantics = [#tpu.dimension_semantics<parallel>], iteration_bounds = array<i64: 2>, scalar_prefetch = 0 : i64, scratch_operands = 0 : i64, tpu.core_type = #tpu.core_type<tc>, window_params = [{transform_indices = @transform_0, window_bounds = array<i64: 1, 32, 8>}, {transform_indices = @transform_1, window_bounds = array<i64: 1, 32, 3>}, {pipeline_mode = #tpu.pipeline_mode<synchronous>, transform_indices = @transform_2, window_bounds = array<i64: 1, 8>}, {pipeline_mode = #tpu.pipeline_mode<synchronous>, transform_indices = @transform_3, window_bounds = array<i64: 1, 8>}, {pipeline_mode = #tpu.pipeline_mode<synchronous>, transform_indices = @transform_4, window_bounds = array<i64: 8, 8>}, {pipeline_mode = #tpu.pipeline_mode<synchronous>, transform_indices = @transform_5, window_bounds = array<i64: 1, 8>}, {pipeline_mode = #tpu.pipeline_mode<synchronous>, transform_indices = @transform_6, window_bounds = array<i64: 16, 48>}, {pipeline_mode = #tpu.pipeline_mode<synchronous>, transform_indices = @transform_7, window_bounds = array<i64: 1, 16>}, {pipeline_mode = #tpu.pipeline_mode<synchronous>, transform_indices = @transform_8, window_bounds = array<i64: 16, 16>}, {pipeline_mode = #tpu.pipeline_mode<synchronous>, transform_indices = @transform_9, window_bounds = array<i64: 1, 16>}, {pipeline_mode = #tpu.pipeline_mode<synchronous>, transform_indices = @transform_10, window_bounds = array<i64: 16, 16>}, {pipeline_mode = #tpu.pipeline_mode<synchronous>, transform_indices = @transform_11, window_bounds = array<i64: 1, 16>}, {pipeline_mode = #tpu.pipeline_mode<synchronous>, transform_indices = @transform_12, window_bounds = array<i64: 1, 16>}, {pipeline_mode = #tpu.pipeline_mode<synchronous>, transform_indices = @transform_13, window_bounds = array<i64: 24, 16>}, {pipeline_mode = #tpu.pipeline_mode<synchronous>, transform_indices = @transform_14, window_bounds = array<i64: 1, 16>}, {pipeline_mode = #tpu.pipeline_mode<synchronous>, transform_indices = @transform_15, window_bounds = array<i64: 32, 96>}, {pipeline_mode = #tpu.pipeline_mode<synchronous>, transform_indices = @transform_16, window_bounds = array<i64: 1, 32>}, {pipeline_mode = #tpu.pipeline_mode<synchronous>, transform_indices = @transform_17, window_bounds = array<i64: 32, 32>}, {pipeline_mode = #tpu.pipeline_mode<synchronous>, transform_indices = @transform_18, window_bounds = array<i64: 1, 32>}, {pipeline_mode = #tpu.pipeline_mode<synchronous>, transform_indices = @transform_19, window_bounds = array<i64: 32, 32>}, {pipeline_mode = #tpu.pipeline_mode<synchronous>, transform_indices = @transform_20, window_bounds = array<i64: 1, 32>}, {pipeline_mode = #tpu.pipeline_mode<synchronous>, transform_indices = @transform_21, window_bounds = array<i64: 1, 32>}, {pipeline_mode = #tpu.pipeline_mode<synchronous>, transform_indices = @transform_22, window_bounds = array<i64: 48, 32>}, {pipeline_mode = #tpu.pipeline_mode<synchronous>, transform_indices = @transform_23, window_bounds = array<i64: 1, 32>}, {pipeline_mode = #tpu.pipeline_mode<synchronous>, transform_indices = @transform_24, window_bounds = array<i64: 32, 32>}, {pipeline_mode = #tpu.pipeline_mode<synchronous>, transform_indices = @transform_25, window_bounds = array<i64: 1, 32>}, {pipeline_mode = #tpu.pipeline_mode<synchronous>, transform_indices = @transform_26, window_bounds = array<i64: 32, 4>}, {pipeline_mode = #tpu.pipeline_mode<synchronous>, transform_indices = @transform_27, window_bounds = array<i64: 1, 4>}, {transform_indices = @transform_28, window_bounds = array<i64: 1, 1, 4>}]} {
    %c0 = arith.constant 0 : index
    %c0_0 = arith.constant 0 : index
    %0 = vector.load %arg3[%c0, %c0_0] : memref<1x8xf32, #tpu.memory_space<vmem>>, vector<1x8xf32>
    %c0_1 = arith.constant 0 : index
    %c0_2 = arith.constant 0 : index
    %1 = vector.load %arg4[%c0_1, %c0_2] : memref<1x8xf32, #tpu.memory_space<vmem>>, vector<1x8xf32>
    %c0_3 = arith.constant 0 : index
    %c0_4 = arith.constant 0 : index
    %2 = vector.load %arg5[%c0_3, %c0_4] : memref<8x8xbf16, #tpu.memory_space<vmem>>, vector<8x8xbf16>
    %c0_5 = arith.constant 0 : index
    %c0_6 = arith.constant 0 : index
    %3 = vector.load %arg6[%c0_5, %c0_6] : memref<1x8xf32, #tpu.memory_space<vmem>>, vector<1x8xf32>
    %c0_7 = arith.constant 0 : index
    %c0_8 = arith.constant 0 : index
    %c0_9 = arith.constant 0 : index
    %4 = vector.load %arg1[%c0_7, %c0_8, %c0_9] : memref<1x32x8xf32, #tpu.memory_space<vmem>>, vector<1x32x8xf32>
    %5 = vector.shape_cast %4 : vector<1x32x8xf32> to vector<32x8xf32>
    %6 = vector.broadcast %0 : vector<1x8xf32> to vector<32x8xf32>
    %7 = arith.mulf %5, %6 : vector<32x8xf32>
    %8 = vector.broadcast %1 : vector<1x8xf32> to vector<32x8xf32>
    %9 = arith.addf %7, %8 : vector<32x8xf32>
    %c0_10 = arith.constant 0 : index
    %c0_11 = arith.constant 0 : index
    %c0_12 = arith.constant 0 : index
    %10 = vector.load %arg2[%c0_10, %c0_11, %c0_12] : memref<1x32x3xf32, #tpu.memory_space<vmem>>, vector<1x32x3xf32>
    %11 = vector.shape_cast %10 : vector<1x32x3xf32> to vector<32x3xf32>
    %cst = arith.constant dense<0.000000e+00> : vector<8xf32>
    %12 = vector.multi_reduction <add>, %9, %cst [0] : vector<32x8xf32> to vector<8xf32>
    %13 = vector.shape_cast %12 : vector<8xf32> to vector<1x8xf32>
    %cst_13 = arith.constant 3.200000e+01 : f32
    %14 = vector.broadcast %cst_13 : f32 to vector<1x8xf32>
    %15 = arith.divf %13, %14 : vector<1x8xf32>
    %16 = arith.truncf %15 : vector<1x8xf32> to vector<1x8xbf16>
    %cst_14 = arith.constant dense<0.000000e+00> : vector<1x8xf32>
    %17 = tpu.matmul %16, %2, %cst_14 {dimension_numbers = #tpu.dot_dimension_numbers<[1], [0], [0], [1], [0, 0, 1, 1], [], []>} : vector<1x8xbf16>, vector<8x8xbf16>, vector<1x8xf32> -> vector<1x8xf32>
    %18 = arith.addf %17, %3 : vector<1x8xf32>
    %cst_15 = arith.constant 0.000000e+00 : f32
    %19 = vector.broadcast %cst_15 : f32 to vector<1x8xf32>
    %20 = arith.maximumf %18, %19 : vector<1x8xf32>
    %c0_16 = arith.constant 0 : index
    %c0_17 = arith.constant 0 : index
    %21 = vector.load %arg7[%c0_16, %c0_17] : memref<16x48xbf16, #tpu.memory_space<vmem>>, vector<16x48xbf16>
    %c0_18 = arith.constant 0 : index
    %c0_19 = arith.constant 0 : index
    %22 = vector.load %arg8[%c0_18, %c0_19] : memref<1x16xf32, #tpu.memory_space<vmem>>, vector<1x16xf32>
    %c0_20 = arith.constant 0 : index
    %c0_21 = arith.constant 0 : index
    %23 = vector.load %arg9[%c0_20, %c0_21] : memref<16x16xbf16, #tpu.memory_space<vmem>>, vector<16x16xbf16>
    %c0_22 = arith.constant 0 : index
    %c0_23 = arith.constant 0 : index
    %24 = vector.load %arg10[%c0_22, %c0_23] : memref<1x16xf32, #tpu.memory_space<vmem>>, vector<1x16xf32>
    %c0_24 = arith.constant 0 : index
    %c0_25 = arith.constant 0 : index
    %25 = vector.load %arg11[%c0_24, %c0_25] : memref<16x16xbf16, #tpu.memory_space<vmem>>, vector<16x16xbf16>
    %c0_26 = arith.constant 0 : index
    %c0_27 = arith.constant 0 : index
    %26 = vector.load %arg12[%c0_26, %c0_27] : memref<1x16xf32, #tpu.memory_space<vmem>>, vector<1x16xf32>
    %c0_28 = arith.constant 0 : index
    %c0_29 = arith.constant 0 : index
    %27 = vector.load %arg13[%c0_28, %c0_29] : memref<1x16xf32, #tpu.memory_space<vmem>>, vector<1x16xf32>
    %c0_30 = arith.constant 0 : index
    %c0_31 = arith.constant 0 : index
    %28 = vector.load %arg14[%c0_30, %c0_31] : memref<24x16xbf16, #tpu.memory_space<vmem>>, vector<24x16xbf16>
    %c0_32 = arith.constant 0 : index
    %c0_33 = arith.constant 0 : index
    %29 = vector.load %arg15[%c0_32, %c0_33] : memref<1x16xf32, #tpu.memory_space<vmem>>, vector<1x16xf32>
    %cst_34 = arith.constant dense<0.000000e+00> : vector<32x32xf32>
    %30 = tpu.matmul %11, %11, %cst_34 {dimension_numbers = #tpu.dot_dimension_numbers<[1], [1], [0], [0], [0, 0, 1, 0], [], []>} : vector<32x3xf32>, vector<32x3xf32>, vector<32x32xf32> -> vector<32x32xf32>
    %31 = arith.mulf %11, %11 : vector<32x3xf32>
    %cst_35 = arith.constant dense<0.000000e+00> : vector<32xf32>
    %32 = vector.multi_reduction <add>, %31, %cst_35 [1] : vector<32x3xf32> to vector<32xf32>
    %33 = vector.shape_cast %32 : vector<32xf32> to vector<32x1xf32>
    %34 = tpu.transpose %33, [1, 0] : vector<32x1xf32> -> vector<1x32xf32>
    %cst_36 = arith.constant 2.000000e+00 : f32
    %35 = vector.broadcast %cst_36 : f32 to vector<32x32xf32>
    %36 = arith.mulf %35, %30 : vector<32x32xf32>
    %37 = vector.broadcast %34 : vector<1x32xf32> to vector<32x32xf32>
    %38 = arith.subf %37, %36 : vector<32x32xf32>
    %39 = tpu.iota {dimensions = array<i32: 0>} : vector<32x32xi32>
    %40 = tpu.iota {dimensions = array<i32: 1>} : vector<32x32xi32>
    %41 = arith.cmpi eq, %39, %40 : vector<32x32xi32>
    %cst_37 = arith.constant 0x7F800000 : f32
    %42 = vector.broadcast %cst_37 : f32 to vector<32x32xf32>
    %43 = arith.select %41, %42, %38 : vector<32x32xi1>, vector<32x32xf32>
    %44 = arith.cmpi eq, %39, %40 : vector<32x32xi32>
    %45 = arith.extui %44 : vector<32x32xi1> to vector<32x32xi32>
    %46 = arith.sitofp %45 : vector<32x32xi32> to vector<32x32xf32>
    %47 = arith.truncf %46 : vector<32x32xf32> to vector<32x32xbf16>
    %cst_38 = arith.constant dense<0x7F800000> : vector<32xf32>
    %48 = vector.multi_reduction <minimumf>, %43, %cst_38 [1] : vector<32x32xf32> to vector<32xf32>
    %49 = vector.shape_cast %48 : vector<32xf32> to vector<32x1xf32>
    %50 = vector.broadcast %49 : vector<32x1xf32> to vector<32x32xf32>
    %51 = arith.cmpf ole, %43, %50 : vector<32x32xf32>
    %c32_i32 = arith.constant 32 : i32
    %52 = vector.broadcast %c32_i32 : i32 to vector<32x32xi32>
    %53 = arith.select %51, %40, %52 : vector<32x32xi1>, vector<32x32xi32>
    %cst_39 = arith.constant dense<2147483647> : vector<32xi32>
    %54 = vector.multi_reduction <minsi>, %53, %cst_39 [1] : vector<32x32xi32> to vector<32xi32>
    %55 = vector.shape_cast %54 : vector<32xi32> to vector<32x1xi32>
    %56 = vector.broadcast %55 : vector<32x1xi32> to vector<32x32xi32>
    %57 = arith.cmpi eq, %40, %56 : vector<32x32xi32>
    %58 = arith.extui %57 : vector<32x32xi1> to vector<32x32xi32>
    %59 = arith.sitofp %58 : vector<32x32xi32> to vector<32x32xf32>
    %60 = arith.truncf %59 : vector<32x32xf32> to vector<32x32xbf16>
    %61 = tpu.concatenate %60, %47 in 1 : vector<32x32xbf16>, vector<32x32xbf16> -> vector<32x64xbf16>
    %cst_40 = arith.constant 0x7F800000 : f32
    %62 = vector.broadcast %cst_40 : f32 to vector<32x32xf32>
    %63 = arith.select %57, %62, %43 : vector<32x32xi1>, vector<32x32xf32>
    %cst_41 = arith.constant dense<0x7F800000> : vector<32xf32>
    %64 = vector.multi_reduction <minimumf>, %63, %cst_41 [1] : vector<32x32xf32> to vector<32xf32>
    %65 = vector.shape_cast %64 : vector<32xf32> to vector<32x1xf32>
    %66 = vector.broadcast %65 : vector<32x1xf32> to vector<32x32xf32>
    %67 = arith.cmpf ole, %63, %66 : vector<32x32xf32>
    %c32_i32_42 = arith.constant 32 : i32
    %68 = vector.broadcast %c32_i32_42 : i32 to vector<32x32xi32>
    %69 = arith.select %67, %40, %68 : vector<32x32xi1>, vector<32x32xi32>
    %cst_43 = arith.constant dense<2147483647> : vector<32xi32>
    %70 = vector.multi_reduction <minsi>, %69, %cst_43 [1] : vector<32x32xi32> to vector<32xi32>
    %71 = vector.shape_cast %70 : vector<32xi32> to vector<32x1xi32>
    %72 = vector.broadcast %71 : vector<32x1xi32> to vector<32x32xi32>
    %73 = arith.cmpi eq, %40, %72 : vector<32x32xi32>
    %74 = arith.extui %73 : vector<32x32xi1> to vector<32x32xi32>
    %75 = arith.sitofp %74 : vector<32x32xi32> to vector<32x32xf32>
    %76 = arith.truncf %75 : vector<32x32xf32> to vector<32x32xbf16>
    %77 = tpu.concatenate %76, %47 in 1 : vector<32x32xbf16>, vector<32x32xbf16> -> vector<32x64xbf16>
    %cst_44 = arith.constant 0x7F800000 : f32
    %78 = vector.broadcast %cst_44 : f32 to vector<32x32xf32>
    %79 = arith.select %73, %78, %63 : vector<32x32xi1>, vector<32x32xf32>
    %cst_45 = arith.constant dense<0x7F800000> : vector<32xf32>
    %80 = vector.multi_reduction <minimumf>, %79, %cst_45 [1] : vector<32x32xf32> to vector<32xf32>
    %81 = vector.shape_cast %80 : vector<32xf32> to vector<32x1xf32>
    %82 = vector.broadcast %81 : vector<32x1xf32> to vector<32x32xf32>
    %83 = arith.cmpf ole, %79, %82 : vector<32x32xf32>
    %c32_i32_46 = arith.constant 32 : i32
    %84 = vector.broadcast %c32_i32_46 : i32 to vector<32x32xi32>
    %85 = arith.select %83, %40, %84 : vector<32x32xi1>, vector<32x32xi32>
    %cst_47 = arith.constant dense<2147483647> : vector<32xi32>
    %86 = vector.multi_reduction <minsi>, %85, %cst_47 [1] : vector<32x32xi32> to vector<32xi32>
    %87 = vector.shape_cast %86 : vector<32xi32> to vector<32x1xi32>
    %88 = vector.broadcast %87 : vector<32x1xi32> to vector<32x32xi32>
    %89 = arith.cmpi eq, %40, %88 : vector<32x32xi32>
    %90 = arith.extui %89 : vector<32x32xi1> to vector<32x32xi32>
    %91 = arith.sitofp %90 : vector<32x32xi32> to vector<32x32xf32>
    %92 = arith.truncf %91 : vector<32x32xf32> to vector<32x32xbf16>
    %93 = tpu.concatenate %92, %47 in 1 : vector<32x32xbf16>, vector<32x32xbf16> -> vector<32x64xbf16>
    %cst_48 = arith.constant 0x7F800000 : f32
    %94 = vector.broadcast %cst_48 : f32 to vector<32x32xf32>
    %95 = arith.select %89, %94, %79 : vector<32x32xi1>, vector<32x32xf32>
    %cst_49 = arith.constant dense<0x7F800000> : vector<32xf32>
    %96 = vector.multi_reduction <minimumf>, %95, %cst_49 [1] : vector<32x32xf32> to vector<32xf32>
    %97 = vector.shape_cast %96 : vector<32xf32> to vector<32x1xf32>
    %98 = vector.broadcast %97 : vector<32x1xf32> to vector<32x32xf32>
    %99 = arith.cmpf ole, %95, %98 : vector<32x32xf32>
    %c32_i32_50 = arith.constant 32 : i32
    %100 = vector.broadcast %c32_i32_50 : i32 to vector<32x32xi32>
    %101 = arith.select %99, %40, %100 : vector<32x32xi1>, vector<32x32xi32>
    %cst_51 = arith.constant dense<2147483647> : vector<32xi32>
    %102 = vector.multi_reduction <minsi>, %101, %cst_51 [1] : vector<32x32xi32> to vector<32xi32>
    %103 = vector.shape_cast %102 : vector<32xi32> to vector<32x1xi32>
    %104 = vector.broadcast %103 : vector<32x1xi32> to vector<32x32xi32>
    %105 = arith.cmpi eq, %40, %104 : vector<32x32xi32>
    %106 = arith.extui %105 : vector<32x32xi1> to vector<32x32xi32>
    %107 = arith.sitofp %106 : vector<32x32xi32> to vector<32x32xf32>
    %108 = arith.truncf %107 : vector<32x32xf32> to vector<32x32xbf16>
    %109 = tpu.concatenate %108, %47 in 1 : vector<32x32xbf16>, vector<32x32xbf16> -> vector<32x64xbf16>
    %110 = tpu.concatenate %61, %77, %93, %109 in 0 : vector<32x64xbf16>, vector<32x64xbf16>, vector<32x64xbf16>, vector<32x64xbf16> -> vector<128x64xbf16>
    %111 = arith.truncf %9 : vector<32x8xf32> to vector<32x8xbf16>
    %112 = arith.truncf %20 : vector<1x8xf32> to vector<1x8xbf16>
    %113 = vector.shape_cast %112 : vector<1x8xbf16> to vector<1x8xbf16>
    %114 = vector.broadcast %113 : vector<1x8xbf16> to vector<32x8xbf16>
    %115 = tpu.concatenate %111, %114 in 1 : vector<32x8xbf16>, vector<32x8xbf16> -> vector<32x16xbf16>
    %cst_52 = arith.constant dense<0.000000e+00> : vector<32x48xf32>
    %116 = tpu.matmul %115, %21, %cst_52 {dimension_numbers = #tpu.dot_dimension_numbers<[1], [0], [0], [1], [0, 0, 1, 1], [], []>} : vector<32x16xbf16>, vector<16x48xbf16>, vector<32x48xf32> -> vector<32x48xf32>
    %117 = vector.extract_strided_slice %116 {offsets = [0, 0], sizes = [32, 16], strides = [1, 1]} : vector<32x48xf32> to vector<32x16xf32>
    %118 = vector.broadcast %22 : vector<1x16xf32> to vector<32x16xf32>
    %119 = arith.addf %117, %118 : vector<32x16xf32>
    %120 = vector.extract_strided_slice %116 {offsets = [0, 16], sizes = [32, 16], strides = [1, 1]} : vector<32x48xf32> to vector<32x16xf32>
    %121 = vector.extract_strided_slice %116 {offsets = [0, 32], sizes = [32, 16], strides = [1, 1]} : vector<32x48xf32> to vector<32x16xf32>
    %122 = vector.broadcast %27 : vector<1x16xf32> to vector<32x16xf32>
    %123 = arith.addf %121, %122 : vector<32x16xf32>
    %124 = tpu.concatenate %120, %119 in 0 : vector<32x16xf32>, vector<32x16xf32> -> vector<64x16xf32>
    %125 = arith.truncf %124 : vector<64x16xf32> to vector<64x16xbf16>
    %cst_53 = arith.constant dense<0.000000e+00> : vector<128x16xf32>
    %126 = tpu.matmul %110, %125, %cst_53 {dimension_numbers = #tpu.dot_dimension_numbers<[1], [0], [0], [1], [0, 0, 1, 1], [], []>} : vector<128x64xbf16>, vector<64x16xbf16>, vector<128x16xf32> -> vector<128x16xf32>
    %cst_54 = arith.constant 0.000000e+00 : f32
    %127 = vector.broadcast %cst_54 : f32 to vector<128x16xf32>
    %128 = arith.maximumf %126, %127 : vector<128x16xf32>
    %129 = arith.truncf %128 : vector<128x16xf32> to vector<128x16xbf16>
    %cst_55 = arith.constant dense<0.000000e+00> : vector<128x16xf32>
    %130 = tpu.matmul %129, %23, %cst_55 {dimension_numbers = #tpu.dot_dimension_numbers<[1], [0], [0], [1], [0, 0, 1, 1], [], []>} : vector<128x16xbf16>, vector<16x16xbf16>, vector<128x16xf32> -> vector<128x16xf32>
    %131 = vector.broadcast %24 : vector<1x16xf32> to vector<128x16xf32>
    %132 = arith.addf %130, %131 : vector<128x16xf32>
    %cst_56 = arith.constant 0.000000e+00 : f32
    %133 = vector.broadcast %cst_56 : f32 to vector<128x16xf32>
    %134 = arith.maximumf %132, %133 : vector<128x16xf32>
    %135 = arith.truncf %134 : vector<128x16xf32> to vector<128x16xbf16>
    %cst_57 = arith.constant dense<0.000000e+00> : vector<128x16xf32>
    %136 = tpu.matmul %135, %25, %cst_57 {dimension_numbers = #tpu.dot_dimension_numbers<[1], [0], [0], [1], [0, 0, 1, 1], [], []>} : vector<128x16xbf16>, vector<16x16xbf16>, vector<128x16xf32> -> vector<128x16xf32>
    %137 = vector.broadcast %26 : vector<1x16xf32> to vector<128x16xf32>
    %138 = arith.addf %136, %137 : vector<128x16xf32>
    %cst_58 = arith.constant 0.000000e+00 : f32
    %139 = vector.broadcast %cst_58 : f32 to vector<128x16xf32>
    %140 = arith.maximumf %138, %139 : vector<128x16xf32>
    %141 = vector.extract_strided_slice %140 {offsets = [0, 0], sizes = [32, 16], strides = [1, 1]} : vector<128x16xf32> to vector<32x16xf32>
    %142 = vector.extract_strided_slice %140 {offsets = [32, 0], sizes = [32, 16], strides = [1, 1]} : vector<128x16xf32> to vector<32x16xf32>
    %143 = arith.maximumf %141, %142 : vector<32x16xf32>
    %144 = vector.extract_strided_slice %140 {offsets = [64, 0], sizes = [32, 16], strides = [1, 1]} : vector<128x16xf32> to vector<32x16xf32>
    %145 = arith.maximumf %143, %144 : vector<32x16xf32>
    %146 = vector.extract_strided_slice %140 {offsets = [96, 0], sizes = [32, 16], strides = [1, 1]} : vector<128x16xf32> to vector<32x16xf32>
    %147 = arith.maximumf %145, %146 : vector<32x16xf32>
    %148 = arith.addf %147, %123 : vector<32x16xf32>
    %cst_59 = arith.constant 0.000000e+00 : f32
    %149 = vector.broadcast %cst_59 : f32 to vector<32x16xf32>
    %150 = arith.maximumf %148, %149 : vector<32x16xf32>
    %cst_60 = arith.constant dense<0.000000e+00> : vector<16xf32>
    %151 = vector.multi_reduction <add>, %150, %cst_60 [0] : vector<32x16xf32> to vector<16xf32>
    %152 = vector.shape_cast %151 : vector<16xf32> to vector<1x16xf32>
    %cst_61 = arith.constant 3.200000e+01 : f32
    %153 = vector.broadcast %cst_61 : f32 to vector<1x16xf32>
    %154 = arith.divf %152, %153 : vector<1x16xf32>
    %155 = tpu.concatenate %20, %154 in 1 : vector<1x8xf32>, vector<1x16xf32> -> vector<1x24xf32>
    %156 = arith.truncf %155 : vector<1x24xf32> to vector<1x24xbf16>
    %cst_62 = arith.constant dense<0.000000e+00> : vector<1x16xf32>
    %157 = tpu.matmul %156, %28, %cst_62 {dimension_numbers = #tpu.dot_dimension_numbers<[1], [0], [0], [1], [0, 0, 1, 1], [], []>} : vector<1x24xbf16>, vector<24x16xbf16>, vector<1x16xf32> -> vector<1x16xf32>
    %158 = arith.addf %157, %29 : vector<1x16xf32>
    %cst_63 = arith.constant 0.000000e+00 : f32
    %159 = vector.broadcast %cst_63 : f32 to vector<1x16xf32>
    %160 = arith.maximumf %158, %159 : vector<1x16xf32>
    %c0_64 = arith.constant 0 : index
    %c0_65 = arith.constant 0 : index
    %161 = vector.load %arg16[%c0_64, %c0_65] : memref<32x96xbf16, #tpu.memory_space<vmem>>, vector<32x96xbf16>
    %c0_66 = arith.constant 0 : index
    %c0_67 = arith.constant 0 : index
    %162 = vector.load %arg17[%c0_66, %c0_67] : memref<1x32xf32, #tpu.memory_space<vmem>>, vector<1x32xf32>
    %c0_68 = arith.constant 0 : index
    %c0_69 = arith.constant 0 : index
    %163 = vector.load %arg18[%c0_68, %c0_69] : memref<32x32xbf16, #tpu.memory_space<vmem>>, vector<32x32xbf16>
    %c0_70 = arith.constant 0 : index
    %c0_71 = arith.constant 0 : index
    %164 = vector.load %arg19[%c0_70, %c0_71] : memref<1x32xf32, #tpu.memory_space<vmem>>, vector<1x32xf32>
    %c0_72 = arith.constant 0 : index
    %c0_73 = arith.constant 0 : index
    %165 = vector.load %arg20[%c0_72, %c0_73] : memref<32x32xbf16, #tpu.memory_space<vmem>>, vector<32x32xbf16>
    %c0_74 = arith.constant 0 : index
    %c0_75 = arith.constant 0 : index
    %166 = vector.load %arg21[%c0_74, %c0_75] : memref<1x32xf32, #tpu.memory_space<vmem>>, vector<1x32xf32>
    %c0_76 = arith.constant 0 : index
    %c0_77 = arith.constant 0 : index
    %167 = vector.load %arg22[%c0_76, %c0_77] : memref<1x32xf32, #tpu.memory_space<vmem>>, vector<1x32xf32>
    %c0_78 = arith.constant 0 : index
    %c0_79 = arith.constant 0 : index
    %168 = vector.load %arg23[%c0_78, %c0_79] : memref<48x32xbf16, #tpu.memory_space<vmem>>, vector<48x32xbf16>
    %c0_80 = arith.constant 0 : index
    %c0_81 = arith.constant 0 : index
    %169 = vector.load %arg24[%c0_80, %c0_81] : memref<1x32xf32, #tpu.memory_space<vmem>>, vector<1x32xf32>
    %cst_82 = arith.constant dense<0.000000e+00> : vector<32x32xf32>
    %170 = tpu.matmul %150, %150, %cst_82 {dimension_numbers = #tpu.dot_dimension_numbers<[1], [1], [0], [0], [0, 0, 1, 0], [], []>} : vector<32x16xf32>, vector<32x16xf32>, vector<32x32xf32> -> vector<32x32xf32>
    %171 = arith.mulf %150, %150 : vector<32x16xf32>
    %cst_83 = arith.constant dense<0.000000e+00> : vector<32xf32>
    %172 = vector.multi_reduction <add>, %171, %cst_83 [1] : vector<32x16xf32> to vector<32xf32>
    %173 = vector.shape_cast %172 : vector<32xf32> to vector<32x1xf32>
    %174 = tpu.transpose %173, [1, 0] : vector<32x1xf32> -> vector<1x32xf32>
    %cst_84 = arith.constant 2.000000e+00 : f32
    %175 = vector.broadcast %cst_84 : f32 to vector<32x32xf32>
    %176 = arith.mulf %175, %170 : vector<32x32xf32>
    %177 = vector.broadcast %174 : vector<1x32xf32> to vector<32x32xf32>
    %178 = arith.subf %177, %176 : vector<32x32xf32>
    %179 = tpu.iota {dimensions = array<i32: 0>} : vector<32x32xi32>
    %180 = tpu.iota {dimensions = array<i32: 1>} : vector<32x32xi32>
    %181 = arith.cmpi eq, %179, %180 : vector<32x32xi32>
    %cst_85 = arith.constant 0x7F800000 : f32
    %182 = vector.broadcast %cst_85 : f32 to vector<32x32xf32>
    %183 = arith.select %181, %182, %178 : vector<32x32xi1>, vector<32x32xf32>
    %184 = arith.cmpi eq, %179, %180 : vector<32x32xi32>
    %185 = arith.extui %184 : vector<32x32xi1> to vector<32x32xi32>
    %186 = arith.sitofp %185 : vector<32x32xi32> to vector<32x32xf32>
    %187 = arith.truncf %186 : vector<32x32xf32> to vector<32x32xbf16>
    %cst_86 = arith.constant dense<0x7F800000> : vector<32xf32>
    %188 = vector.multi_reduction <minimumf>, %183, %cst_86 [1] : vector<32x32xf32> to vector<32xf32>
    %189 = vector.shape_cast %188 : vector<32xf32> to vector<32x1xf32>
    %190 = vector.broadcast %189 : vector<32x1xf32> to vector<32x32xf32>
    %191 = arith.cmpf ole, %183, %190 : vector<32x32xf32>
    %c32_i32_87 = arith.constant 32 : i32
    %192 = vector.broadcast %c32_i32_87 : i32 to vector<32x32xi32>
    %193 = arith.select %191, %180, %192 : vector<32x32xi1>, vector<32x32xi32>
    %cst_88 = arith.constant dense<2147483647> : vector<32xi32>
    %194 = vector.multi_reduction <minsi>, %193, %cst_88 [1] : vector<32x32xi32> to vector<32xi32>
    %195 = vector.shape_cast %194 : vector<32xi32> to vector<32x1xi32>
    %196 = vector.broadcast %195 : vector<32x1xi32> to vector<32x32xi32>
    %197 = arith.cmpi eq, %180, %196 : vector<32x32xi32>
    %198 = arith.extui %197 : vector<32x32xi1> to vector<32x32xi32>
    %199 = arith.sitofp %198 : vector<32x32xi32> to vector<32x32xf32>
    %200 = arith.truncf %199 : vector<32x32xf32> to vector<32x32xbf16>
    %201 = tpu.concatenate %200, %187 in 1 : vector<32x32xbf16>, vector<32x32xbf16> -> vector<32x64xbf16>
    %cst_89 = arith.constant 0x7F800000 : f32
    %202 = vector.broadcast %cst_89 : f32 to vector<32x32xf32>
    %203 = arith.select %197, %202, %183 : vector<32x32xi1>, vector<32x32xf32>
    %cst_90 = arith.constant dense<0x7F800000> : vector<32xf32>
    %204 = vector.multi_reduction <minimumf>, %203, %cst_90 [1] : vector<32x32xf32> to vector<32xf32>
    %205 = vector.shape_cast %204 : vector<32xf32> to vector<32x1xf32>
    %206 = vector.broadcast %205 : vector<32x1xf32> to vector<32x32xf32>
    %207 = arith.cmpf ole, %203, %206 : vector<32x32xf32>
    %c32_i32_91 = arith.constant 32 : i32
    %208 = vector.broadcast %c32_i32_91 : i32 to vector<32x32xi32>
    %209 = arith.select %207, %180, %208 : vector<32x32xi1>, vector<32x32xi32>
    %cst_92 = arith.constant dense<2147483647> : vector<32xi32>
    %210 = vector.multi_reduction <minsi>, %209, %cst_92 [1] : vector<32x32xi32> to vector<32xi32>
    %211 = vector.shape_cast %210 : vector<32xi32> to vector<32x1xi32>
    %212 = vector.broadcast %211 : vector<32x1xi32> to vector<32x32xi32>
    %213 = arith.cmpi eq, %180, %212 : vector<32x32xi32>
    %214 = arith.extui %213 : vector<32x32xi1> to vector<32x32xi32>
    %215 = arith.sitofp %214 : vector<32x32xi32> to vector<32x32xf32>
    %216 = arith.truncf %215 : vector<32x32xf32> to vector<32x32xbf16>
    %217 = tpu.concatenate %216, %187 in 1 : vector<32x32xbf16>, vector<32x32xbf16> -> vector<32x64xbf16>
    %cst_93 = arith.constant 0x7F800000 : f32
    %218 = vector.broadcast %cst_93 : f32 to vector<32x32xf32>
    %219 = arith.select %213, %218, %203 : vector<32x32xi1>, vector<32x32xf32>
    %cst_94 = arith.constant dense<0x7F800000> : vector<32xf32>
    %220 = vector.multi_reduction <minimumf>, %219, %cst_94 [1] : vector<32x32xf32> to vector<32xf32>
    %221 = vector.shape_cast %220 : vector<32xf32> to vector<32x1xf32>
    %222 = vector.broadcast %221 : vector<32x1xf32> to vector<32x32xf32>
    %223 = arith.cmpf ole, %219, %222 : vector<32x32xf32>
    %c32_i32_95 = arith.constant 32 : i32
    %224 = vector.broadcast %c32_i32_95 : i32 to vector<32x32xi32>
    %225 = arith.select %223, %180, %224 : vector<32x32xi1>, vector<32x32xi32>
    %cst_96 = arith.constant dense<2147483647> : vector<32xi32>
    %226 = vector.multi_reduction <minsi>, %225, %cst_96 [1] : vector<32x32xi32> to vector<32xi32>
    %227 = vector.shape_cast %226 : vector<32xi32> to vector<32x1xi32>
    %228 = vector.broadcast %227 : vector<32x1xi32> to vector<32x32xi32>
    %229 = arith.cmpi eq, %180, %228 : vector<32x32xi32>
    %230 = arith.extui %229 : vector<32x32xi1> to vector<32x32xi32>
    %231 = arith.sitofp %230 : vector<32x32xi32> to vector<32x32xf32>
    %232 = arith.truncf %231 : vector<32x32xf32> to vector<32x32xbf16>
    %233 = tpu.concatenate %232, %187 in 1 : vector<32x32xbf16>, vector<32x32xbf16> -> vector<32x64xbf16>
    %cst_97 = arith.constant 0x7F800000 : f32
    %234 = vector.broadcast %cst_97 : f32 to vector<32x32xf32>
    %235 = arith.select %229, %234, %219 : vector<32x32xi1>, vector<32x32xf32>
    %cst_98 = arith.constant dense<0x7F800000> : vector<32xf32>
    %236 = vector.multi_reduction <minimumf>, %235, %cst_98 [1] : vector<32x32xf32> to vector<32xf32>
    %237 = vector.shape_cast %236 : vector<32xf32> to vector<32x1xf32>
    %238 = vector.broadcast %237 : vector<32x1xf32> to vector<32x32xf32>
    %239 = arith.cmpf ole, %235, %238 : vector<32x32xf32>
    %c32_i32_99 = arith.constant 32 : i32
    %240 = vector.broadcast %c32_i32_99 : i32 to vector<32x32xi32>
    %241 = arith.select %239, %180, %240 : vector<32x32xi1>, vector<32x32xi32>
    %cst_100 = arith.constant dense<2147483647> : vector<32xi32>
    %242 = vector.multi_reduction <minsi>, %241, %cst_100 [1] : vector<32x32xi32> to vector<32xi32>
    %243 = vector.shape_cast %242 : vector<32xi32> to vector<32x1xi32>
    %244 = vector.broadcast %243 : vector<32x1xi32> to vector<32x32xi32>
    %245 = arith.cmpi eq, %180, %244 : vector<32x32xi32>
    %246 = arith.extui %245 : vector<32x32xi1> to vector<32x32xi32>
    %247 = arith.sitofp %246 : vector<32x32xi32> to vector<32x32xf32>
    %248 = arith.truncf %247 : vector<32x32xf32> to vector<32x32xbf16>
    %249 = tpu.concatenate %248, %187 in 1 : vector<32x32xbf16>, vector<32x32xbf16> -> vector<32x64xbf16>
    %250 = tpu.concatenate %201, %217, %233, %249 in 0 : vector<32x64xbf16>, vector<32x64xbf16>, vector<32x64xbf16>, vector<32x64xbf16> -> vector<128x64xbf16>
    %251 = arith.truncf %150 : vector<32x16xf32> to vector<32x16xbf16>
    %252 = arith.truncf %160 : vector<1x16xf32> to vector<1x16xbf16>
    %253 = vector.shape_cast %252 : vector<1x16xbf16> to vector<1x16xbf16>
    %254 = vector.broadcast %253 : vector<1x16xbf16> to vector<32x16xbf16>
    %255 = tpu.concatenate %251, %254 in 1 : vector<32x16xbf16>, vector<32x16xbf16> -> vector<32x32xbf16>
    %cst_101 = arith.constant dense<0.000000e+00> : vector<32x96xf32>
    %256 = tpu.matmul %255, %161, %cst_101 {dimension_numbers = #tpu.dot_dimension_numbers<[1], [0], [0], [1], [0, 0, 1, 1], [], []>} : vector<32x32xbf16>, vector<32x96xbf16>, vector<32x96xf32> -> vector<32x96xf32>
    %257 = vector.extract_strided_slice %256 {offsets = [0, 0], sizes = [32, 32], strides = [1, 1]} : vector<32x96xf32> to vector<32x32xf32>
    %258 = vector.broadcast %162 : vector<1x32xf32> to vector<32x32xf32>
    %259 = arith.addf %257, %258 : vector<32x32xf32>
    %260 = vector.extract_strided_slice %256 {offsets = [0, 32], sizes = [32, 32], strides = [1, 1]} : vector<32x96xf32> to vector<32x32xf32>
    %261 = vector.extract_strided_slice %256 {offsets = [0, 64], sizes = [32, 32], strides = [1, 1]} : vector<32x96xf32> to vector<32x32xf32>
    %262 = vector.broadcast %167 : vector<1x32xf32> to vector<32x32xf32>
    %263 = arith.addf %261, %262 : vector<32x32xf32>
    %264 = tpu.concatenate %260, %259 in 0 : vector<32x32xf32>, vector<32x32xf32> -> vector<64x32xf32>
    %265 = arith.truncf %264 : vector<64x32xf32> to vector<64x32xbf16>
    %cst_102 = arith.constant dense<0.000000e+00> : vector<128x32xf32>
    %266 = tpu.matmul %250, %265, %cst_102 {dimension_numbers = #tpu.dot_dimension_numbers<[1], [0], [0], [1], [0, 0, 1, 1], [], []>} : vector<128x64xbf16>, vector<64x32xbf16>, vector<128x32xf32> -> vector<128x32xf32>
    %cst_103 = arith.constant 0.000000e+00 : f32
    %267 = vector.broadcast %cst_103 : f32 to vector<128x32xf32>
    %268 = arith.maximumf %266, %267 : vector<128x32xf32>
    %269 = arith.truncf %268 : vector<128x32xf32> to vector<128x32xbf16>
    %cst_104 = arith.constant dense<0.000000e+00> : vector<128x32xf32>
    %270 = tpu.matmul %269, %163, %cst_104 {dimension_numbers = #tpu.dot_dimension_numbers<[1], [0], [0], [1], [0, 0, 1, 1], [], []>} : vector<128x32xbf16>, vector<32x32xbf16>, vector<128x32xf32> -> vector<128x32xf32>
    %271 = vector.broadcast %164 : vector<1x32xf32> to vector<128x32xf32>
    %272 = arith.addf %270, %271 : vector<128x32xf32>
    %cst_105 = arith.constant 0.000000e+00 : f32
    %273 = vector.broadcast %cst_105 : f32 to vector<128x32xf32>
    %274 = arith.maximumf %272, %273 : vector<128x32xf32>
    %275 = arith.truncf %274 : vector<128x32xf32> to vector<128x32xbf16>
    %cst_106 = arith.constant dense<0.000000e+00> : vector<128x32xf32>
    %276 = tpu.matmul %275, %165, %cst_106 {dimension_numbers = #tpu.dot_dimension_numbers<[1], [0], [0], [1], [0, 0, 1, 1], [], []>} : vector<128x32xbf16>, vector<32x32xbf16>, vector<128x32xf32> -> vector<128x32xf32>
    %277 = vector.broadcast %166 : vector<1x32xf32> to vector<128x32xf32>
    %278 = arith.addf %276, %277 : vector<128x32xf32>
    %cst_107 = arith.constant 0.000000e+00 : f32
    %279 = vector.broadcast %cst_107 : f32 to vector<128x32xf32>
    %280 = arith.maximumf %278, %279 : vector<128x32xf32>
    %281 = vector.extract_strided_slice %280 {offsets = [0, 0], sizes = [32, 32], strides = [1, 1]} : vector<128x32xf32> to vector<32x32xf32>
    %282 = vector.extract_strided_slice %280 {offsets = [32, 0], sizes = [32, 32], strides = [1, 1]} : vector<128x32xf32> to vector<32x32xf32>
    %283 = arith.maximumf %281, %282 : vector<32x32xf32>
    %284 = vector.extract_strided_slice %280 {offsets = [64, 0], sizes = [32, 32], strides = [1, 1]} : vector<128x32xf32> to vector<32x32xf32>
    %285 = arith.maximumf %283, %284 : vector<32x32xf32>
    %286 = vector.extract_strided_slice %280 {offsets = [96, 0], sizes = [32, 32], strides = [1, 1]} : vector<128x32xf32> to vector<32x32xf32>
    %287 = arith.maximumf %285, %286 : vector<32x32xf32>
    %288 = arith.addf %287, %263 : vector<32x32xf32>
    %cst_108 = arith.constant 0.000000e+00 : f32
    %289 = vector.broadcast %cst_108 : f32 to vector<32x32xf32>
    %290 = arith.maximumf %288, %289 : vector<32x32xf32>
    %cst_109 = arith.constant dense<0.000000e+00> : vector<32xf32>
    %291 = vector.multi_reduction <add>, %290, %cst_109 [0] : vector<32x32xf32> to vector<32xf32>
    %292 = vector.shape_cast %291 : vector<32xf32> to vector<1x32xf32>
    %cst_110 = arith.constant 3.200000e+01 : f32
    %293 = vector.broadcast %cst_110 : f32 to vector<1x32xf32>
    %294 = arith.divf %292, %293 : vector<1x32xf32>
    %295 = tpu.concatenate %160, %294 in 1 : vector<1x16xf32>, vector<1x32xf32> -> vector<1x48xf32>
    %296 = arith.truncf %295 : vector<1x48xf32> to vector<1x48xbf16>
    %cst_111 = arith.constant dense<0.000000e+00> : vector<1x32xf32>
    %297 = tpu.matmul %296, %168, %cst_111 {dimension_numbers = #tpu.dot_dimension_numbers<[1], [0], [0], [1], [0, 0, 1, 1], [], []>} : vector<1x48xbf16>, vector<48x32xbf16>, vector<1x32xf32> -> vector<1x32xf32>
    %298 = arith.addf %297, %169 : vector<1x32xf32>
    %cst_112 = arith.constant 0.000000e+00 : f32
    %299 = vector.broadcast %cst_112 : f32 to vector<1x32xf32>
    %300 = arith.maximumf %298, %299 : vector<1x32xf32>
    %c0_113 = arith.constant 0 : index
    %c0_114 = arith.constant 0 : index
    %301 = vector.load %arg25[%c0_113, %c0_114] : memref<32x32xbf16, #tpu.memory_space<vmem>>, vector<32x32xbf16>
    %c0_115 = arith.constant 0 : index
    %c0_116 = arith.constant 0 : index
    %302 = vector.load %arg26[%c0_115, %c0_116] : memref<1x32xf32, #tpu.memory_space<vmem>>, vector<1x32xf32>
    %303 = arith.truncf %300 : vector<1x32xf32> to vector<1x32xbf16>
    %cst_117 = arith.constant dense<0.000000e+00> : vector<1x32xf32>
    %304 = tpu.matmul %303, %301, %cst_117 {dimension_numbers = #tpu.dot_dimension_numbers<[1], [0], [0], [1], [0, 0, 1, 1], [], []>} : vector<1x32xbf16>, vector<32x32xbf16>, vector<1x32xf32> -> vector<1x32xf32>
    %305 = arith.addf %304, %302 : vector<1x32xf32>
    %cst_118 = arith.constant 0.000000e+00 : f32
    %306 = vector.broadcast %cst_118 : f32 to vector<1x32xf32>
    %307 = arith.maximumf %305, %306 : vector<1x32xf32>
    %c0_119 = arith.constant 0 : index
    %c0_120 = arith.constant 0 : index
    %308 = vector.load %arg27[%c0_119, %c0_120] : memref<32x4xbf16, #tpu.memory_space<vmem>>, vector<32x4xbf16>
    %c0_121 = arith.constant 0 : index
    %c0_122 = arith.constant 0 : index
    %309 = vector.load %arg28[%c0_121, %c0_122] : memref<1x4xf32, #tpu.memory_space<vmem>>, vector<1x4xf32>
    %310 = arith.truncf %307 : vector<1x32xf32> to vector<1x32xbf16>
    %cst_123 = arith.constant dense<0.000000e+00> : vector<1x4xf32>
    %311 = tpu.matmul %310, %308, %cst_123 {dimension_numbers = #tpu.dot_dimension_numbers<[1], [0], [0], [1], [0, 0, 1, 1], [], []>} : vector<1x32xbf16>, vector<32x4xbf16>, vector<1x4xf32> -> vector<1x4xf32>
    %312 = arith.addf %311, %309 : vector<1x4xf32>
    %c0_124 = arith.constant 0 : index
    %c0_125 = arith.constant 0 : index
    %c0_126 = arith.constant 0 : index
    %313 = vector.load %arg29[%c0_124, %c0_125, %c0_126] : memref<1x1x4xf32, #tpu.memory_space<vmem>>, vector<1x1x4xf32>
    %314 = vector.shape_cast %313 : vector<1x1x4xf32> to vector<1x4xf32>
    %315 = vector.shape_cast %312 : vector<1x4xf32> to vector<1x1x4xf32>
    tpu.vector_store %arg29[%c0_124, %c0_125, %c0_126], %315 {strides = array<i32>} : memref<1x1x4xf32, #tpu.memory_space<vmem>>, vector<1x1x4xf32>,
    return
  }
  func.func @transform_0(%arg0: i32) -> (i32, i32, i32) {
    %c0_i32 = arith.constant 0 : i32
    %c0_i32_0 = arith.constant 0 : i32
    %c0_i32_1 = arith.constant 0 : i32
    return %arg0, %c0_i32, %c0_i32_0 : i32, i32, i32
  }
  func.func @transform_1(%arg0: i32) -> (i32, i32, i32) {
    %c0_i32 = arith.constant 0 : i32
    %c0_i32_0 = arith.constant 0 : i32
    %c0_i32_1 = arith.constant 0 : i32
    return %arg0, %c0_i32, %c0_i32_0 : i32, i32, i32
  }
  func.func @transform_2(%arg0: i32) -> (i32, i32) {
    %c0_i32 = arith.constant 0 : i32
    %c0_i32_0 = arith.constant 0 : i32
    %c0_i32_1 = arith.constant 0 : i32
    return %c0_i32, %c0_i32_0 : i32, i32
  }
  func.func @transform_3(%arg0: i32) -> (i32, i32) {
    %c0_i32 = arith.constant 0 : i32
    %c0_i32_0 = arith.constant 0 : i32
    %c0_i32_1 = arith.constant 0 : i32
    return %c0_i32, %c0_i32_0 : i32, i32
  }
  func.func @transform_4(%arg0: i32) -> (i32, i32) {
    %c0_i32 = arith.constant 0 : i32
    %c0_i32_0 = arith.constant 0 : i32
    %c0_i32_1 = arith.constant 0 : i32
    return %c0_i32, %c0_i32_0 : i32, i32
  }
  func.func @transform_5(%arg0: i32) -> (i32, i32) {
    %c0_i32 = arith.constant 0 : i32
    %c0_i32_0 = arith.constant 0 : i32
    %c0_i32_1 = arith.constant 0 : i32
    return %c0_i32, %c0_i32_0 : i32, i32
  }
  func.func @transform_6(%arg0: i32) -> (i32, i32) {
    %c0_i32 = arith.constant 0 : i32
    %c0_i32_0 = arith.constant 0 : i32
    %c0_i32_1 = arith.constant 0 : i32
    return %c0_i32, %c0_i32_0 : i32, i32
  }
  func.func @transform_7(%arg0: i32) -> (i32, i32) {
    %c0_i32 = arith.constant 0 : i32
    %c0_i32_0 = arith.constant 0 : i32
    %c0_i32_1 = arith.constant 0 : i32
    return %c0_i32, %c0_i32_0 : i32, i32
  }
  func.func @transform_8(%arg0: i32) -> (i32, i32) {
    %c0_i32 = arith.constant 0 : i32
    %c0_i32_0 = arith.constant 0 : i32
    %c0_i32_1 = arith.constant 0 : i32
    return %c0_i32, %c0_i32_0 : i32, i32
  }
  func.func @transform_9(%arg0: i32) -> (i32, i32) {
    %c0_i32 = arith.constant 0 : i32
    %c0_i32_0 = arith.constant 0 : i32
    %c0_i32_1 = arith.constant 0 : i32
    return %c0_i32, %c0_i32_0 : i32, i32
  }
  func.func @transform_10(%arg0: i32) -> (i32, i32) {
    %c0_i32 = arith.constant 0 : i32
    %c0_i32_0 = arith.constant 0 : i32
    %c0_i32_1 = arith.constant 0 : i32
    return %c0_i32, %c0_i32_0 : i32, i32
  }
  func.func @transform_11(%arg0: i32) -> (i32, i32) {
    %c0_i32 = arith.constant 0 : i32
    %c0_i32_0 = arith.constant 0 : i32
    %c0_i32_1 = arith.constant 0 : i32
    return %c0_i32, %c0_i32_0 : i32, i32
  }
  func.func @transform_12(%arg0: i32) -> (i32, i32) {
    %c0_i32 = arith.constant 0 : i32
    %c0_i32_0 = arith.constant 0 : i32
    %c0_i32_1 = arith.constant 0 : i32
    return %c0_i32, %c0_i32_0 : i32, i32
  }
  func.func @transform_13(%arg0: i32) -> (i32, i32) {
    %c0_i32 = arith.constant 0 : i32
    %c0_i32_0 = arith.constant 0 : i32
    %c0_i32_1 = arith.constant 0 : i32
    return %c0_i32, %c0_i32_0 : i32, i32
  }
  func.func @transform_14(%arg0: i32) -> (i32, i32) {
    %c0_i32 = arith.constant 0 : i32
    %c0_i32_0 = arith.constant 0 : i32
    %c0_i32_1 = arith.constant 0 : i32
    return %c0_i32, %c0_i32_0 : i32, i32
  }
  func.func @transform_15(%arg0: i32) -> (i32, i32) {
    %c0_i32 = arith.constant 0 : i32
    %c0_i32_0 = arith.constant 0 : i32
    %c0_i32_1 = arith.constant 0 : i32
    return %c0_i32, %c0_i32_0 : i32, i32
  }
  func.func @transform_16(%arg0: i32) -> (i32, i32) {
    %c0_i32 = arith.constant 0 : i32
    %c0_i32_0 = arith.constant 0 : i32
    %c0_i32_1 = arith.constant 0 : i32
    return %c0_i32, %c0_i32_0 : i32, i32
  }
  func.func @transform_17(%arg0: i32) -> (i32, i32) {
    %c0_i32 = arith.constant 0 : i32
    %c0_i32_0 = arith.constant 0 : i32
    %c0_i32_1 = arith.constant 0 : i32
    return %c0_i32, %c0_i32_0 : i32, i32
  }
  func.func @transform_18(%arg0: i32) -> (i32, i32) {
    %c0_i32 = arith.constant 0 : i32
    %c0_i32_0 = arith.constant 0 : i32
    %c0_i32_1 = arith.constant 0 : i32
    return %c0_i32, %c0_i32_0 : i32, i32
  }
  func.func @transform_19(%arg0: i32) -> (i32, i32) {
    %c0_i32 = arith.constant 0 : i32
    %c0_i32_0 = arith.constant 0 : i32
    %c0_i32_1 = arith.constant 0 : i32
    return %c0_i32, %c0_i32_0 : i32, i32
  }
  func.func @transform_20(%arg0: i32) -> (i32, i32) {
    %c0_i32 = arith.constant 0 : i32
    %c0_i32_0 = arith.constant 0 : i32
    %c0_i32_1 = arith.constant 0 : i32
    return %c0_i32, %c0_i32_0 : i32, i32
  }
  func.func @transform_21(%arg0: i32) -> (i32, i32) {
    %c0_i32 = arith.constant 0 : i32
    %c0_i32_0 = arith.constant 0 : i32
    %c0_i32_1 = arith.constant 0 : i32
    return %c0_i32, %c0_i32_0 : i32, i32
  }
  func.func @transform_22(%arg0: i32) -> (i32, i32) {
    %c0_i32 = arith.constant 0 : i32
    %c0_i32_0 = arith.constant 0 : i32
    %c0_i32_1 = arith.constant 0 : i32
    return %c0_i32, %c0_i32_0 : i32, i32
  }
  func.func @transform_23(%arg0: i32) -> (i32, i32) {
    %c0_i32 = arith.constant 0 : i32
    %c0_i32_0 = arith.constant 0 : i32
    %c0_i32_1 = arith.constant 0 : i32
    return %c0_i32, %c0_i32_0 : i32, i32
  }
  func.func @transform_24(%arg0: i32) -> (i32, i32) {
    %c0_i32 = arith.constant 0 : i32
    %c0_i32_0 = arith.constant 0 : i32
    %c0_i32_1 = arith.constant 0 : i32
    return %c0_i32, %c0_i32_0 : i32, i32
  }
  func.func @transform_25(%arg0: i32) -> (i32, i32) {
    %c0_i32 = arith.constant 0 : i32
    %c0_i32_0 = arith.constant 0 : i32
    %c0_i32_1 = arith.constant 0 : i32
    return %c0_i32, %c0_i32_0 : i32, i32
  }
  func.func @transform_26(%arg0: i32) -> (i32, i32) {
    %c0_i32 = arith.constant 0 : i32
    %c0_i32_0 = arith.constant 0 : i32
    %c0_i32_1 = arith.constant 0 : i32
    return %c0_i32, %c0_i32_0 : i32, i32
  }
  func.func @transform_27(%arg0: i32) -> (i32, i32) {
    %c0_i32 = arith.constant 0 : i32
    %c0_i32_0 = arith.constant 0 : i32
    %c0_i32_1 = arith.constant 0 : i32
    return %c0_i32, %c0_i32_0 : i32, i32
  }
  func.func @transform_28(%arg0: i32) -> (i32, i32, i32) {
    %c0_i32 = arith.constant 0 : i32
    %c0_i32_0 = arith.constant 0 : i32
    %c0_i32_1 = arith.constant 0 : i32
    return %arg0, %c0_i32, %c0_i32_0 : i32, i32, i32
  }
}

</mosaic_0001>

<llo_original>
// kernel: tpu_custom_call.1
$region0: #{tpu_custom_call.1}
  #allocation0 [shape = 'u32[]', space=smem, size = 0x4, offset = 0x4, fixed_abs, tag = 'smem constant byte address 0x4 - core index']
  #allocation1 [shape = 'u32[144,128]{1,0:T(1,128)}', space=vmem, size = 0x12000, scoped, tag = 'internal scratch']
  %s0 = inlined_call_operand.vmem [shape: f32[2,32,8], index: 0, kind: input, shape index: {}]
  %s1 = inlined_call_operand.vmem [shape: f32[2,32,3], index: 1, kind: input, shape index: {}]
  %s2 = inlined_call_operand.vmem [shape: f32[1,8], index: 2, kind: input, shape index: {}]
  %s3 = inlined_call_operand.vmem [shape: f32[1,8], index: 3, kind: input, shape index: {}]
  %s4 = inlined_call_operand.vmem [shape: bf16[8,8], index: 4, kind: input, shape index: {}]
  %s5 = inlined_call_operand.vmem [shape: f32[1,8], index: 5, kind: input, shape index: {}]
  %s6 = inlined_call_operand.vmem [shape: bf16[16,48], index: 6, kind: input, shape index: {}]
  %s7 = inlined_call_operand.vmem [shape: f32[1,16], index: 7, kind: input, shape index: {}]
  %s8 = inlined_call_operand.vmem [shape: bf16[16,16], index: 8, kind: input, shape index: {}]
  %s9 = inlined_call_operand.vmem [shape: f32[1,16], index: 9, kind: input, shape index: {}]
  %s10 = inlined_call_operand.vmem [shape: bf16[16,16], index: 10, kind: input, shape index: {}]
  %s11 = inlined_call_operand.vmem [shape: f32[1,16], index: 11, kind: input, shape index: {}]
  %s12 = inlined_call_operand.vmem [shape: f32[1,16], index: 12, kind: input, shape index: {}]
  %s13 = inlined_call_operand.vmem [shape: bf16[24,16], index: 13, kind: input, shape index: {}]
  %s14 = inlined_call_operand.vmem [shape: f32[1,16], index: 14, kind: input, shape index: {}]
  %s15 = inlined_call_operand.vmem [shape: bf16[32,96], index: 15, kind: input, shape index: {}]
  %s16 = inlined_call_operand.vmem [shape: f32[1,32], index: 16, kind: input, shape index: {}]
  %s17 = inlined_call_operand.vmem [shape: bf16[32,32], index: 17, kind: input, shape index: {}]
  %s18 = inlined_call_operand.vmem [shape: f32[1,32], index: 18, kind: input, shape index: {}]
  %s19 = inlined_call_operand.vmem [shape: bf16[32,32], index: 19, kind: input, shape index: {}]
  %s20 = inlined_call_operand.vmem [shape: f32[1,32], index: 20, kind: input, shape index: {}]
  %s21 = inlined_call_operand.vmem [shape: f32[1,32], index: 21, kind: input, shape index: {}]
  %s22 = inlined_call_operand.vmem [shape: bf16[48,32], index: 22, kind: input, shape index: {}]
  %s23 = inlined_call_operand.vmem [shape: f32[1,32], index: 23, kind: input, shape index: {}]
  %s24 = inlined_call_operand.vmem [shape: bf16[32,32], index: 24, kind: input, shape index: {}]
  %s25 = inlined_call_operand.vmem [shape: f32[1,32], index: 25, kind: input, shape index: {}]
  %s26 = inlined_call_operand.vmem [shape: bf16[32,4], index: 26, kind: input, shape index: {}]
  %s27 = inlined_call_operand.vmem [shape: f32[1,4], index: 27, kind: input, shape index: {}]
  %s28 = inlined_call_operand.hbm [shape: f32[2,1,4], index: 28, kind: output, shape index: {}]
  %s29 = sld [smem:[#allocation0]]
  $region145: #{tpu_custom_call.1} parent=0
    _
  %s31 = ssub.s32 1, %s29
  %s32 = scalar_select 0, %s31, %s29
  $region1: #{tpu_custom_call.1} parent=0
    #allocation2 [shape = 'u8[1024]{0}', space=vmem, size = 0x400, scoped, tag = 'output window, operand 0']
    #allocation3 [shape = 's32[2]{0}', space=sflag, size = 0x8, scoped, tag = 'scoped memory for tpu_custom_call.1']
    %33 = vsyncpa [#allocation3], 0
    %s34 = scalar_lea.sflag [#allocation3], 1
    %35 = vsyncpa %s34, 0
    loop: start=0, step=1, limit=4
    $region2: #{tpu_custom_call.1} parent=1 // loop_pre_header
      _
    $region3: #{tpu_custom_call.1} parent=1 // loop_header
      %s37 = sphi 0, %s41
      %p38 = scmp.ge.s32.totalorder %s37, 4
      %s47 = sphi 0, %s49
      %s50 = sphi 0, %s47
      %s51 = sphi 0, %s50
      %s67 = sphi 0, %s51
      %s73 = sphi 0, %s75
      %s76 = sphi 0, %s73
      %s77 = sphi 0, %s76
      %s93 = sphi 0, %s77
      %s97 = sphi 0, %s97
      %s99 = sphi 0, %s97
      %s100 = sphi 0, %s99
      %s114 = sphi 0, %s100
      %s118 = sphi 0, %s118
      %s120 = sphi 0, %s118
      %s121 = sphi 0, %s120
      %s135 = sphi 0, %s121
      %s139 = sphi 0, %s139
      %s141 = sphi 0, %s139
      %s142 = sphi 0, %s141
      %s156 = sphi 0, %s142
      %s160 = sphi 0, %s160
      %s162 = sphi 0, %s160
      %s163 = sphi 0, %s162
      %s177 = sphi 0, %s163
      %s181 = sphi 0, %s181
      %s183 = sphi 0, %s181
      %s184 = sphi 0, %s183
      %s198 = sphi 0, %s184
      %s202 = sphi 0, %s202
      %s204 = sphi 0, %s202
      %s205 = sphi 0, %s204
      %s219 = sphi 0, %s205
      %s223 = sphi 0, %s223
      %s225 = sphi 0, %s223
      %s226 = sphi 0, %s225
      %s240 = sphi 0, %s226
      %s244 = sphi 0, %s244
      %s246 = sphi 0, %s244
      %s247 = sphi 0, %s246
      %s261 = sphi 0, %s247
      %s265 = sphi 0, %s265
      %s267 = sphi 0, %s265
      %s268 = sphi 0, %s267
      %s282 = sphi 0, %s268
      %s286 = sphi 0, %s286
      %s288 = sphi 0, %s286
      %s289 = sphi 0, %s288
      %s303 = sphi 0, %s289
      %s307 = sphi 0, %s307
      %s309 = sphi 0, %s307
      %s310 = sphi 0, %s309
      %s324 = sphi 0, %s310
      %s328 = sphi 0, %s328
      %s330 = sphi 0, %s328
      %s331 = sphi 0, %s330
      %s345 = sphi 0, %s331
      %s349 = sphi 0, %s349
      %s351 = sphi 0, %s349
      %s352 = sphi 0, %s351
      %s366 = sphi 0, %s352
      %s370 = sphi 0, %s370
      %s372 = sphi 0, %s370
      %s373 = sphi 0, %s372
      %s387 = sphi 0, %s373
      %s391 = sphi 0, %s391
      %s393 = sphi 0, %s391
      %s394 = sphi 0, %s393
      %s408 = sphi 0, %s394
      %s412 = sphi 0, %s412
      %s414 = sphi 0, %s412
      %s415 = sphi 0, %s414
      %s429 = sphi 0, %s415
      %s433 = sphi 0, %s433
      %s435 = sphi 0, %s433
      %s436 = sphi 0, %s435
      %s450 = sphi 0, %s436
      %s454 = sphi 0, %s454
      %s456 = sphi 0, %s454
      %s457 = sphi 0, %s456
      %s471 = sphi 0, %s457
      %s475 = sphi 0, %s475
      %s477 = sphi 0, %s475
      %s478 = sphi 0, %s477
      %s492 = sphi 0, %s478
      %s496 = sphi 0, %s496
      %s498 = sphi 0, %s496
      %s499 = sphi 0, %s498
      %s513 = sphi 0, %s499
      %s517 = sphi 0, %s517
      %s519 = sphi 0, %s517
      %s520 = sphi 0, %s519
      %s534 = sphi 0, %s520
      %s538 = sphi 0, %s538
      %s540 = sphi 0, %s538
      %s541 = sphi 0, %s540
      %s555 = sphi 0, %s541
      %s559 = sphi 0, %s559
      %s561 = sphi 0, %s559
      %s562 = sphi 0, %s561
      %s576 = sphi 0, %s562
      %s580 = sphi 0, %s580
      %s582 = sphi 0, %s580
      %s583 = sphi 0, %s582
      %s597 = sphi 0, %s583
      %s601 = sphi 0, %s601
      %s603 = sphi 0, %s601
      %s604 = sphi 0, %s603
      %s618 = sphi 0, %s604
      %s622 = sphi 0, %s622
      %s624 = sphi 0, %s622
      %s625 = sphi 0, %s624
      %s639 = sphi 0, %s625
      %s645 = sphi 0, %s647
      %s648 = sphi 0, %s645
      %s649 = sphi 0, %s648
      %s665 = sphi 0, %s649
    $region4: #{tpu_custom_call.1} parent=1 // loop_header_branch
      %40 = sbr.rel (%p38) target = $region8
    $region5: #{tpu_custom_call.1} parent=1 // loop_body
      %s42 = ssub.s32 %s37, 1
      %s43 = ssub.s32 %s37, 2
      %s44 = sadd.s32 %s37, 1
      %s45 = ssub.s32 %s37, %s44
      %p46 = scmp.eq.s32.totalorder %s45, 0
      %s48 = sadd.s32 %s47, 1
      %s49 = scalar_select %p46, %s47, %s48
      %p52 = pneg %p46
      %p53 = scmp.eq.s32.totalorder %s37, 1
      %p54 = por %p52, %p53
      %p55 = scmp.ne.s32.totalorder %s47, %s50
      %p56 = scmp.eq.s32.totalorder %s37, 0
      %p57 = por %p55, %p56
      %p58 = scmp.ne.s32.totalorder %s47, %s50
      %p59 = scmp.eq.s32.totalorder %s42, 1
      %p60 = por %p58, %p59
      %p61 = scmp.ne.s32.totalorder %s50, %s51
      %p62 = scmp.eq.s32.totalorder %s42, 0
      %p63 = por %p61, %p62
      %p64 = scmp.ne.s32.totalorder %s50, %s51
      %p65 = scmp.eq.s32.totalorder %s43, 1
      %p66 = por %p64, %p65
      %p68 = scmp.ne.s32.totalorder %s51, %s67
      %p69 = scmp.eq.s32.totalorder %s43, 0
      %p70 = por %p68, %p69
      %s71 = ssub.s32 %s37, %s44
      %p72 = scmp.eq.s32.totalorder %s71, 0
      %s74 = sadd.s32 %s73, 1
      %s75 = scalar_select %p72, %s73, %s74
      %p78 = pneg %p72
      %p79 = scmp.eq.s32.totalorder %s37, 1
      %p80 = por %p78, %p79
      %p81 = scmp.ne.s32.totalorder %s73, %s76
      %p82 = scmp.eq.s32.totalorder %s37, 0
      %p83 = por %p81, %p82
      %p84 = scmp.ne.s32.totalorder %s73, %s76
      %p85 = scmp.eq.s32.totalorder %s42, 1
      %p86 = por %p84, %p85
      %p87 = scmp.ne.s32.totalorder %s76, %s77
      %p88 = scmp.eq.s32.totalorder %s42, 0
      %p89 = por %p87, %p88
      %p90 = scmp.ne.s32.totalorder %s76, %s77
      %p91 = scmp.eq.s32.totalorder %s43, 1
      %p92 = por %p90, %p91
      %p94 = scmp.ne.s32.totalorder %s77, %s93
      %p95 = scmp.eq.s32.totalorder %s43, 0
      %p96 = por %p94, %p95
      %s98 = sadd.s32 %s97, 1
      %p101 = scmp.eq.s32.totalorder %s37, 1
      %p102 = scmp.ne.s32.totalorder %s97, %s99
      %p103 = scmp.eq.s32.totalorder %s37, 0
      %p104 = por %p102, %p103
      %p105 = scmp.ne.s32.totalorder %s97, %s99
      %p106 = scmp.eq.s32.totalorder %s42, 1
      %p107 = por %p105, %p106
      %p108 = scmp.ne.s32.totalorder %s99, %s100
      %p109 = scmp.eq.s32.totalorder %s42, 0
      %p110 = por %p108, %p109
      %p111 = scmp.ne.s32.totalorder %s99, %s100
      %p112 = scmp.eq.s32.totalorder %s43, 1
      %p113 = por %p111, %p112
      %p115 = scmp.ne.s32.totalorder %s100, %s114
      %p116 = scmp.eq.s32.totalorder %s43, 0
      %p117 = por %p115, %p116
      %s119 = sadd.s32 %s118, 1
      %p122 = scmp.eq.s32.totalorder %s37, 1
      %p123 = scmp.ne.s32.totalorder %s118, %s120
      %p124 = scmp.eq.s32.totalorder %s37, 0
      %p125 = por %p123, %p124
      %p126 = scmp.ne.s32.totalorder %s118, %s120
      %p127 = scmp.eq.s32.totalorder %s42, 1
      %p128 = por %p126, %p127
      %p129 = scmp.ne.s32.totalorder %s120, %s121
      %p130 = scmp.eq.s32.totalorder %s42, 0
      %p131 = por %p129, %p130
      %p132 = scmp.ne.s32.totalorder %s120, %s121
      %p133 = scmp.eq.s32.totalorder %s43, 1
      %p134 = por %p132, %p133
      %p136 = scmp.ne.s32.totalorder %s121, %s135
      %p137 = scmp.eq.s32.totalorder %s43, 0
      %p138 = por %p136, %p137
      %s140 = sadd.s32 %s139, 1
      %p143 = scmp.eq.s32.totalorder %s37, 1
      %p144 = scmp.ne.s32.totalorder %s139, %s141
      %p145 = scmp.eq.s32.totalorder %s37, 0
      %p146 = por %p144, %p145
      %p147 = scmp.ne.s32.totalorder %s139, %s141
      %p148 = scmp.eq.s32.totalorder %s42, 1
      %p149 = por %p147, %p148
      %p150 = scmp.ne.s32.totalorder %s141, %s142
      %p151 = scmp.eq.s32.totalorder %s42, 0
      %p152 = por %p150, %p151
      %p153 = scmp.ne.s32.totalorder %s141, %s142
      %p154 = scmp.eq.s32.totalorder %s43, 1
      %p155 = por %p153, %p154
      %p157 = scmp.ne.s32.totalorder %s142, %s156
      %p158 = scmp.eq.s32.totalorder %s43, 0
      %p159 = por %p157, %p158
      %s161 = sadd.s32 %s160, 1
      %p164 = scmp.eq.s32.totalorder %s37, 1
      %p165 = scmp.ne.s32.totalorder %s160, %s162
      %p166 = scmp.eq.s32.totalorder %s37, 0
      %p167 = por %p165, %p166
      %p168 = scmp.ne.s32.totalorder %s160, %s162
      %p169 = scmp.eq.s32.totalorder %s42, 1
      %p170 = por %p168, %p169
      %p171 = scmp.ne.s32.totalorder %s162, %s163
      %p172 = scmp.eq.s32.totalorder %s42, 0
      %p173 = por %p171, %p172
      %p174 = scmp.ne.s32.totalorder %s162, %s163
      %p175 = scmp.eq.s32.totalorder %s43, 1
      %p176 = por %p174, %p175
      %p178 = scmp.ne.s32.totalorder %s163, %s177
      %p179 = scmp.eq.s32.totalorder %s43, 0
      %p180 = por %p178, %p179
      %s182 = sadd.s32 %s181, 1
      %p185 = scmp.eq.s32.totalorder %s37, 1
      %p186 = scmp.ne.s32.totalorder %s181, %s183
      %p187 = scmp.eq.s32.totalorder %s37, 0
      %p188 = por %p186, %p187
      %p189 = scmp.ne.s32.totalorder %s181, %s183
      %p190 = scmp.eq.s32.totalorder %s42, 1
      %p191 = por %p189, %p190
      %p192 = scmp.ne.s32.totalorder %s183, %s184
      %p193 = scmp.eq.s32.totalorder %s42, 0
      %p194 = por %p192, %p193
      %p195 = scmp.ne.s32.totalorder %s183, %s184
      %p196 = scmp.eq.s32.totalorder %s43, 1
      %p197 = por %p195, %p196
      %p199 = scmp.ne.s32.totalorder %s184, %s198
      %p200 = scmp.eq.s32.totalorder %s43, 0
      %p201 = por %p199, %p200
      %s203 = sadd.s32 %s202, 1
      %p206 = scmp.eq.s32.totalorder %s37, 1
      %p207 = scmp.ne.s32.totalorder %s202, %s204
      %p208 = scmp.eq.s32.totalorder %s37, 0
      %p209 = por %p207, %p208
      %p210 = scmp.ne.s32.totalorder %s202, %s204
      %p211 = scmp.eq.s32.totalorder %s42, 1
      %p212 = por %p210, %p211
      %p213 = scmp.ne.s32.totalorder %s204, %s205
      %p214 = scmp.eq.s32.totalorder %s42, 0
      %p215 = por %p213, %p214
      %p216 = scmp.ne.s32.totalorder %s204, %s205
      %p217 = scmp.eq.s32.totalorder %s43, 1
      %p218 = por %p216, %p217
      %p220 = scmp.ne.s32.totalorder %s205, %s219
      %p221 = scmp.eq.s32.totalorder %s43, 0
      %p222 = por %p220, %p221
      %s224 = sadd.s32 %s223, 1
      %p227 = scmp.eq.s32.totalorder %s37, 1
      %p228 = scmp.ne.s32.totalorder %s223, %s225
      %p229 = scmp.eq.s32.totalorder %s37, 0
      %p230 = por %p228, %p229
      %p231 = scmp.ne.s32.totalorder %s223, %s225
      %p232 = scmp.eq.s32.totalorder %s42, 1
      %p233 = por %p231, %p232
      %p234 = scmp.ne.s32.totalorder %s225, %s226
      %p235 = scmp.eq.s32.totalorder %s42, 0
      %p236 = por %p234, %p235
      %p237 = scmp.ne.s32.totalorder %s225, %s226
      %p238 = scmp.eq.s32.totalorder %s43, 1
      %p239 = por %p237, %p238
      %p241 = scmp.ne.s32.totalorder %s226, %s240
      %p242 = scmp.eq.s32.totalorder %s43, 0
      %p243 = por %p241, %p242
      %s245 = sadd.s32 %s244, 1
      %p248 = scmp.eq.s32.totalorder %s37, 1
      %p249 = scmp.ne.s32.totalorder %s244, %s246
      %p250 = scmp.eq.s32.totalorder %s37, 0
      %p251 = por %p249, %p250
      %p252 = scmp.ne.s32.totalorder %s244, %s246
      %p253 = scmp.eq.s32.totalorder %s42, 1
      %p254 = por %p252, %p253
      %p255 = scmp.ne.s32.totalorder %s246, %s247
      %p256 = scmp.eq.s32.totalorder %s42, 0
      %p257 = por %p255, %p256
      %p258 = scmp.ne.s32.totalorder %s246, %s247
      %p259 = scmp.eq.s32.totalorder %s43, 1
      %p260 = por %p258, %p259
      %p262 = scmp.ne.s32.totalorder %s247, %s261
      %p263 = scmp.eq.s32.totalorder %s43, 0
      %p264 = por %p262, %p263
      %s266 = sadd.s32 %s265, 1
      %p269 = scmp.eq.s32.totalorder %s37, 1
      %p270 = scmp.ne.s32.totalorder %s265, %s267
      %p271 = scmp.eq.s32.totalorder %s37, 0
      %p272 = por %p270, %p271
      %p273 = scmp.ne.s32.totalorder %s265, %s267
      %p274 = scmp.eq.s32.totalorder %s42, 1
      %p275 = por %p273, %p274
      %p276 = scmp.ne.s32.totalorder %s267, %s268
      %p277 = scmp.eq.s32.totalorder %s42, 0
      %p278 = por %p276, %p277
      %p279 = scmp.ne.s32.totalorder %s267, %s268
      %p280 = scmp.eq.s32.totalorder %s43, 1
      %p281 = por %p279, %p280
      %p283 = scmp.ne.s32.totalorder %s268, %s282
      %p284 = scmp.eq.s32.totalorder %s43, 0
      %p285 = por %p283, %p284
      %s287 = sadd.s32 %s286, 1
      %p290 = scmp.eq.s32.totalorder %s37, 1
      %p291 = scmp.ne.s32.totalorder %s286, %s288
      %p292 = scmp.eq.s32.totalorder %s37, 0
      %p293 = por %p291, %p292
      %p294 = scmp.ne.s32.totalorder %s286, %s288
      %p295 = scmp.eq.s32.totalorder %s42, 1
      %p296 = por %p294, %p295
      %p297 = scmp.ne.s32.totalorder %s288, %s289
      %p298 = scmp.eq.s32.totalorder %s42, 0
      %p299 = por %p297, %p298
      %p300 = scmp.ne.s32.totalorder %s288, %s289
      %p301 = scmp.eq.s32.totalorder %s43, 1
      %p302 = por %p300, %p301
      %p304 = scmp.ne.s32.totalorder %s289, %s303
      %p305 = scmp.eq.s32.totalorder %s43, 0
      %p306 = por %p304, %p305
      %s308 = sadd.s32 %s307, 1
      %p311 = scmp.eq.s32.totalorder %s37, 1
      %p312 = scmp.ne.s32.totalorder %s307, %s309
      %p313 = scmp.eq.s32.totalorder %s37, 0
      %p314 = por %p312, %p313
      %p315 = scmp.ne.s32.totalorder %s307, %s309
      %p316 = scmp.eq.s32.totalorder %s42, 1
      %p317 = por %p315, %p316
      %p318 = scmp.ne.s32.totalorder %s309, %s310
      %p319 = scmp.eq.s32.totalorder %s42, 0
      %p320 = por %p318, %p319
      %p321 = scmp.ne.s32.totalorder %s309, %s310
      %p322 = scmp.eq.s32.totalorder %s43, 1
      %p323 = por %p321, %p322
      %p325 = scmp.ne.s32.totalorder %s310, %s324
      %p326 = scmp.eq.s32.totalorder %s43, 0
      %p327 = por %p325, %p326
      %s329 = sadd.s32 %s328, 1
      %p332 = scmp.eq.s32.totalorder %s37, 1
      %p333 = scmp.ne.s32.totalorder %s328, %s330
      %p334 = scmp.eq.s32.totalorder %s37, 0
      %p335 = por %p333, %p334
      %p336 = scmp.ne.s32.totalorder %s328, %s330
      %p337 = scmp.eq.s32.totalorder %s42, 1
      %p338 = por %p336, %p337
      %p339 = scmp.ne.s32.totalorder %s330, %s331
      %p340 = scmp.eq.s32.totalorder %s42, 0
      %p341 = por %p339, %p340
      %p342 = scmp.ne.s32.totalorder %s330, %s331
      %p343 = scmp.eq.s32.totalorder %s43, 1
      %p344 = por %p342, %p343
      %p346 = scmp.ne.s32.totalorder %s331, %s345
      %p347 = scmp.eq.s32.totalorder %s43, 0
      %p348 = por %p346, %p347
      %s350 = sadd.s32 %s349, 1
      %p353 = scmp.eq.s32.totalorder %s37, 1
      %p354 = scmp.ne.s32.totalorder %s349, %s351
      %p355 = scmp.eq.s32.totalorder %s37, 0
      %p356 = por %p354, %p355
      %p357 = scmp.ne.s32.totalorder %s349, %s351
      %p358 = scmp.eq.s32.totalorder %s42, 1
      %p359 = por %p357, %p358
      %p360 = scmp.ne.s32.totalorder %s351, %s352
      %p361 = scmp.eq.s32.totalorder %s42, 0
      %p362 = por %p360, %p361
      %p363 = scmp.ne.s32.totalorder %s351, %s352
      %p364 = scmp.eq.s32.totalorder %s43, 1
      %p365 = por %p363, %p364
      %p367 = scmp.ne.s32.totalorder %s352, %s366
      %p368 = scmp.eq.s32.totalorder %s43, 0
      %p369 = por %p367, %p368
      %s371 = sadd.s32 %s370, 1
      %p374 = scmp.eq.s32.totalorder %s37, 1
      %p375 = scmp.ne.s32.totalorder %s370, %s372
      %p376 = scmp.eq.s32.totalorder %s37, 0
      %p377 = por %p375, %p376
      %p378 = scmp.ne.s32.totalorder %s370, %s372
      %p379 = scmp.eq.s32.totalorder %s42, 1
      %p380 = por %p378, %p379
      %p381 = scmp.ne.s32.totalorder %s372, %s373
      %p382 = scmp.eq.s32.totalorder %s42, 0
      %p383 = por %p381, %p382
      %p384 = scmp.ne.s32.totalorder %s372, %s373
      %p385 = scmp.eq.s32.totalorder %s43, 1
      %p386 = por %p384, %p385
      %p388 = scmp.ne.s32.totalorder %s373, %s387
      %p389 = scmp.eq.s32.totalorder %s43, 0
      %p390 = por %p388, %p389
      %s392 = sadd.s32 %s391, 1
      %p395 = scmp.eq.s32.totalorder %s37, 1
      %p396 = scmp.ne.s32.totalorder %s391, %s393
      %p397 = scmp.eq.s32.totalorder %s37, 0
      %p398 = por %p396, %p397
      %p399 = scmp.ne.s32.totalorder %s391, %s393
      %p400 = scmp.eq.s32.totalorder %s42, 1
      %p401 = por %p399, %p400
      %p402 = scmp.ne.s32.totalorder %s393, %s394
      %p403 = scmp.eq.s32.totalorder %s42, 0
      %p404 = por %p402, %p403
      %p405 = scmp.ne.s32.totalorder %s393, %s394
      %p406 = scmp.eq.s32.totalorder %s43, 1
      %p407 = por %p405, %p406
      %p409 = scmp.ne.s32.totalorder %s394, %s408
      %p410 = scmp.eq.s32.totalorder %s43, 0
      %p411 = por %p409, %p410
      %s413 = sadd.s32 %s412, 1
      %p416 = scmp.eq.s32.totalorder %s37, 1
      %p417 = scmp.ne.s32.totalorder %s412, %s414
      %p418 = scmp.eq.s32.totalorder %s37, 0
      %p419 = por %p417, %p418
      %p420 = scmp.ne.s32.totalorder %s412, %s414
      %p421 = scmp.eq.s32.totalorder %s42, 1
      %p422 = por %p420, %p421
      %p423 = scmp.ne.s32.totalorder %s414, %s415
      %p424 = scmp.eq.s32.totalorder %s42, 0
      %p425 = por %p423, %p424
      %p426 = scmp.ne.s32.totalorder %s414, %s415
      %p427 = scmp.eq.s32.totalorder %s43, 1
      %p428 = por %p426, %p427
      %p430 = scmp.ne.s32.totalorder %s415, %s429
      %p431 = scmp.eq.s32.totalorder %s43, 0
      %p432 = por %p430, %p431
      %s434 = sadd.s32 %s433, 1
      %p437 = scmp.eq.s32.totalorder %s37, 1
      %p438 = scmp.ne.s32.totalorder %s433, %s435
      %p439 = scmp.eq.s32.totalorder %s37, 0
      %p440 = por %p438, %p439
      %p441 = scmp.ne.s32.totalorder %s433, %s435
      %p442 = scmp.eq.s32.totalorder %s42, 1
      %p443 = por %p441, %p442
      %p444 = scmp.ne.s32.totalorder %s435, %s436
      %p445 = scmp.eq.s32.totalorder %s42, 0
      %p446 = por %p444, %p445
      %p447 = scmp.ne.s32.totalorder %s435, %s436
      %p448 = scmp.eq.s32.totalorder %s43, 1
      %p449 = por %p447, %p448
      %p451 = scmp.ne.s32.totalorder %s436, %s450
      %p452 = scmp.eq.s32.totalorder %s43, 0
      %p453 = por %p451, %p452
      %s455 = sadd.s32 %s454, 1
      %p458 = scmp.eq.s32.totalorder %s37, 1
      %p459 = scmp.ne.s32.totalorder %s454, %s456
      %p460 = scmp.eq.s32.totalorder %s37, 0
      %p461 = por %p459, %p460
      %p462 = scmp.ne.s32.totalorder %s454, %s456
      %p463 = scmp.eq.s32.totalorder %s42, 1
      %p464 = por %p462, %p463
      %p465 = scmp.ne.s32.totalorder %s456, %s457
      %p466 = scmp.eq.s32.totalorder %s42, 0
      %p467 = por %p465, %p466
      %p468 = scmp.ne.s32.totalorder %s456, %s457
      %p469 = scmp.eq.s32.totalorder %s43, 1
      %p470 = por %p468, %p469
      %p472 = scmp.ne.s32.totalorder %s457, %s471
      %p473 = scmp.eq.s32.totalorder %s43, 0
      %p474 = por %p472, %p473
      %s476 = sadd.s32 %s475, 1
      %p479 = scmp.eq.s32.totalorder %s37, 1
      %p480 = scmp.ne.s32.totalorder %s475, %s477
      %p481 = scmp.eq.s32.totalorder %s37, 0
      %p482 = por %p480, %p481
      %p483 = scmp.ne.s32.totalorder %s475, %s477
      %p484 = scmp.eq.s32.totalorder %s42, 1
      %p485 = por %p483, %p484
      %p486 = scmp.ne.s32.totalorder %s477, %s478
      %p487 = scmp.eq.s32.totalorder %s42, 0
      %p488 = por %p486, %p487
      %p489 = scmp.ne.s32.totalorder %s477, %s478
      %p490 = scmp.eq.s32.totalorder %s43, 1
      %p491 = por %p489, %p490
      %p493 = scmp.ne.s32.totalorder %s478, %s492
      %p494 = scmp.eq.s32.totalorder %s43, 0
      %p495 = por %p493, %p494
      %s497 = sadd.s32 %s496, 1
      %p500 = scmp.eq.s32.totalorder %s37, 1
      %p501 = scmp.ne.s32.totalorder %s496, %s498
      %p502 = scmp.eq.s32.totalorder %s37, 0
      %p503 = por %p501, %p502
      %p504 = scmp.ne.s32.totalorder %s496, %s498
      %p505 = scmp.eq.s32.totalorder %s42, 1
      %p506 = por %p504, %p505
      %p507 = scmp.ne.s32.totalorder %s498, %s499
      %p508 = scmp.eq.s32.totalorder %s42, 0
      %p509 = por %p507, %p508
      %p510 = scmp.ne.s32.totalorder %s498, %s499
      %p511 = scmp.eq.s32.totalorder %s43, 1
      %p512 = por %p510, %p511
      %p514 = scmp.ne.s32.totalorder %s499, %s513
      %p515 = scmp.eq.s32.totalorder %s43, 0
      %p516 = por %p514, %p515
      %s518 = sadd.s32 %s517, 1
      %p521 = scmp.eq.s32.totalorder %s37, 1
      %p522 = scmp.ne.s32.totalorder %s517, %s519
      %p523 = scmp.eq.s32.totalorder %s37, 0
      %p524 = por %p522, %p523
      %p525 = scmp.ne.s32.totalorder %s517, %s519
      %p526 = scmp.eq.s32.totalorder %s42, 1
      %p527 = por %p525, %p526
      %p528 = scmp.ne.s32.totalorder %s519, %s520
      %p529 = scmp.eq.s32.totalorder %s42, 0
      %p530 = por %p528, %p529
      %p531 = scmp.ne.s32.totalorder %s519, %s520
      %p532 = scmp.eq.s32.totalorder %s43, 1
      %p533 = por %p531, %p532
      %p535 = scmp.ne.s32.totalorder %s520, %s534
      %p536 = scmp.eq.s32.totalorder %s43, 0
      %p537 = por %p535, %p536
      %s539 = sadd.s32 %s538, 1
      %p542 = scmp.eq.s32.totalorder %s37, 1
      %p543 = scmp.ne.s32.totalorder %s538, %s540
      %p544 = scmp.eq.s32.totalorder %s37, 0
      %p545 = por %p543, %p544
      %p546 = scmp.ne.s32.totalorder %s538, %s540
      %p547 = scmp.eq.s32.totalorder %s42, 1
      %p548 = por %p546, %p547
      %p549 = scmp.ne.s32.totalorder %s540, %s541
      %p550 = scmp.eq.s32.totalorder %s42, 0
      %p551 = por %p549, %p550
      %p552 = scmp.ne.s32.totalorder %s540, %s541
      %p553 = scmp.eq.s32.totalorder %s43, 1
      %p554 = por %p552, %p553
      %p556 = scmp.ne.s32.totalorder %s541, %s555
      %p557 = scmp.eq.s32.totalorder %s43, 0
      %p558 = por %p556, %p557
      %s560 = sadd.s32 %s559, 1
      %p563 = scmp.eq.s32.totalorder %s37, 1
      %p564 = scmp.ne.s32.totalorder %s559, %s561
      %p565 = scmp.eq.s32.totalorder %s37, 0
      %p566 = por %p564, %p565
      %p567 = scmp.ne.s32.totalorder %s559, %s561
      %p568 = scmp.eq.s32.totalorder %s42, 1
      %p569 = por %p567, %p568
      %p570 = scmp.ne.s32.totalorder %s561, %s562
      %p571 = scmp.eq.s32.totalorder %s42, 0
      %p572 = por %p570, %p571
      %p573 = scmp.ne.s32.totalorder %s561, %s562
      %p574 = scmp.eq.s32.totalorder %s43, 1
      %p575 = por %p573, %p574
      %p577 = scmp.ne.s32.totalorder %s562, %s576
      %p578 = scmp.eq.s32.totalorder %s43, 0
      %p579 = por %p577, %p578
      %s581 = sadd.s32 %s580, 1
      %p584 = scmp.eq.s32.totalorder %s37, 1
      %p585 = scmp.ne.s32.totalorder %s580, %s582
      %p586 = scmp.eq.s32.totalorder %s37, 0
      %p587 = por %p585, %p586
      %p588 = scmp.ne.s32.totalorder %s580, %s582
      %p589 = scmp.eq.s32.totalorder %s42, 1
      %p590 = por %p588, %p589
      %p591 = scmp.ne.s32.totalorder %s582, %s583
      %p592 = scmp.eq.s32.totalorder %s42, 0
      %p593 = por %p591, %p592
      %p594 = scmp.ne.s32.totalorder %s582, %s583
      %p595 = scmp.eq.s32.totalorder %s43, 1
      %p596 = por %p594, %p595
      %p598 = scmp.ne.s32.totalorder %s583, %s597
      %p599 = scmp.eq.s32.totalorder %s43, 0
      %p600 = por %p598, %p599
      %s602 = sadd.s32 %s601, 1
      %p605 = scmp.eq.s32.totalorder %s37, 1
      %p606 = scmp.ne.s32.totalorder %s601, %s603
      %p607 = scmp.eq.s32.totalorder %s37, 0
      %p608 = por %p606, %p607
      %p609 = scmp.ne.s32.totalorder %s601, %s603
      %p610 = scmp.eq.s32.totalorder %s42, 1
      %p611 = por %p609, %p610
      %p612 = scmp.ne.s32.totalorder %s603, %s604
      %p613 = scmp.eq.s32.totalorder %s42, 0
      %p614 = por %p612, %p613
      %p615 = scmp.ne.s32.totalorder %s603, %s604
      %p616 = scmp.eq.s32.totalorder %s43, 1
      %p617 = por %p615, %p616
      %p619 = scmp.ne.s32.totalorder %s604, %s618
      %p620 = scmp.eq.s32.totalorder %s43, 0
      %p621 = por %p619, %p620
      %s623 = sadd.s32 %s622, 1
      %p626 = scmp.eq.s32.totalorder %s37, 1
      %p627 = scmp.ne.s32.totalorder %s622, %s624
      %p628 = scmp.eq.s32.totalorder %s37, 0
      %p629 = por %p627, %p628
      %p630 = scmp.ne.s32.totalorder %s622, %s624
      %p631 = scmp.eq.s32.totalorder %s42, 1
      %p632 = por %p630, %p631
      %p633 = scmp.ne.s32.totalorder %s624, %s625
      %p634 = scmp.eq.s32.totalorder %s42, 0
      %p635 = por %p633, %p634
      %p636 = scmp.ne.s32.totalorder %s624, %s625
      %p637 = scmp.eq.s32.totalorder %s43, 1
      %p638 = por %p636, %p637
      %p640 = scmp.ne.s32.totalorder %s625, %s639
      %p641 = scmp.eq.s32.totalorder %s43, 0
      %p642 = por %p640, %p641
      %s643 = ssub.s32 %s37, %s44
      %p644 = scmp.eq.s32.totalorder %s643, 0
      %s646 = sadd.s32 %s645, 1
      %s647 = scalar_select %p644, %s645, %s646
      %p650 = pneg %p644
      %p651 = scmp.eq.s32.totalorder %s37, 1
      %p652 = por %p650, %p651
      %p653 = scmp.ne.s32.totalorder %s645, %s648
      %p654 = scmp.eq.s32.totalorder %s37, 0
      %p655 = por %p653, %p654
      %p656 = scmp.ne.s32.totalorder %s645, %s648
      %p657 = scmp.eq.s32.totalorder %s42, 1
      %p658 = por %p656, %p657
      %p659 = scmp.ne.s32.totalorder %s648, %s649
      %p660 = scmp.eq.s32.totalorder %s42, 0
      %p661 = por %p659, %p660
      %p662 = scmp.ne.s32.totalorder %s648, %s649
      %p663 = scmp.eq.s32.totalorder %s43, 1
      %p664 = por %p662, %p663
      %p666 = scmp.ne.s32.totalorder %s649, %s665
      %p667 = scmp.eq.s32.totalorder %s43, 0
      %p668 = por %p666, %p667
      %p669 = scmp.le.s32.totalorder 1, %s37
      %p670 = scmp.lt.s32.totalorder %s37, 3
      %p671 = pnand %p669, %p670
      %p672 = pneg %p671
      // Predicated region
      $region9: #{tpu_custom_call.1} parent=5 // pred_check
        _
      $region10: #{tpu_custom_call.1} parent=5 // pred_check_branch
        %674 = sbr.rel (%p671) target = $region12
      $region11: #{tpu_custom_call.1} parent=5 // pred_region
        %s675 = ssub.s32 %s37, 1
        // Predicated region
        $region13: #{tpu_custom_call.1} parent=11 // pred_check
          %p676 = pneg %p110
        $region14: #{tpu_custom_call.1} parent=11 // pred_check_branch
          %678 = sbr.rel (%p676) target = $region16
        $region15: #{tpu_custom_call.1} parent=11 // pred_region
          _
        $region16: #{tpu_custom_call.1} parent=11 // pred_fallthru
          _
        // Predicated region
        $region17: #{tpu_custom_call.1} parent=11 // pred_check
          %p679 = pneg %p131
        $region18: #{tpu_custom_call.1} parent=11 // pred_check_branch
          %681 = sbr.rel (%p679) target = $region20
        $region19: #{tpu_custom_call.1} parent=11 // pred_region
          _
        $region20: #{tpu_custom_call.1} parent=11 // pred_fallthru
          _
        // Predicated region
        $region21: #{tpu_custom_call.1} parent=11 // pred_check
          %p682 = pneg %p152
        $region22: #{tpu_custom_call.1} parent=11 // pred_check_branch
          %684 = sbr.rel (%p682) target = $region24
        $region23: #{tpu_custom_call.1} parent=11 // pred_region
          _
        $region24: #{tpu_custom_call.1} parent=11 // pred_fallthru
          _
        // Predicated region
        $region25: #{tpu_custom_call.1} parent=11 // pred_check
          %p685 = pneg %p173
        $region26: #{tpu_custom_call.1} parent=11 // pred_check_branch
          %687 = sbr.rel (%p685) target = $region28
        $region27: #{tpu_custom_call.1} parent=11 // pred_region
          _
        $region28: #{tpu_custom_call.1} parent=11 // pred_fallthru
          _
        // Predicated region
        $region29: #{tpu_custom_call.1} parent=11 // pred_check
          %p688 = pneg %p194
        $region30: #{tpu_custom_call.1} parent=11 // pred_check_branch
          %690 = sbr.rel (%p688) target = $region32
        $region31: #{tpu_custom_call.1} parent=11 // pred_region
          _
        $region32: #{tpu_custom_call.1} parent=11 // pred_fallthru
          _
        // Predicated region
        $region33: #{tpu_custom_call.1} parent=11 // pred_check
          %p691 = pneg %p215
        $region34: #{tpu_custom_call.1} parent=11 // pred_check_branch
          %693 = sbr.rel (%p691) target = $region36
        $region35: #{tpu_custom_call.1} parent=11 // pred_region
          _
        $region36: #{tpu_custom_call.1} parent=11 // pred_fallthru
          _
        // Predicated region
        $region37: #{tpu_custom_call.1} parent=11 // pred_check
          %p694 = pneg %p236
        $region38: #{tpu_custom_call.1} parent=11 // pred_check_branch
          %696 = sbr.rel (%p694) target = $region40
        $region39: #{tpu_custom_call.1} parent=11 // pred_region
          _
        $region40: #{tpu_custom_call.1} parent=11 // pred_fallthru
          _
        // Predicated region
        $region41: #{tpu_custom_call.1} parent=11 // pred_check
          %p697 = pneg %p257
        $region42: #{tpu_custom_call.1} parent=11 // pred_check_branch
          %699 = sbr.rel (%p697) target = $region44
        $region43: #{tpu_custom_call.1} parent=11 // pred_region
          _
        $region44: #{tpu_custom_call.1} parent=11 // pred_fallthru
          _
        // Predicated region
        $region45: #{tpu_custom_call.1} parent=11 // pred_check
          %p700 = pneg %p278
        $region46: #{tpu_custom_call.1} parent=11 // pred_check_branch
          %702 = sbr.rel (%p700) target = $region48
        $region47: #{tpu_custom_call.1} parent=11 // pred_region
          _
        $region48: #{tpu_custom_call.1} parent=11 // pred_fallthru
          _
        // Predicated region
        $region49: #{tpu_custom_call.1} parent=11 // pred_check
          %p703 = pneg %p299
        $region50: #{tpu_custom_call.1} parent=11 // pred_check_branch
          %705 = sbr.rel (%p703) target = $region52
        $region51: #{tpu_custom_call.1} parent=11 // pred_region
          _
        $region52: #{tpu_custom_call.1} parent=11 // pred_fallthru
          _
        // Predicated region
        $region53: #{tpu_custom_call.1} parent=11 // pred_check
          %p706 = pneg %p320
        $region54: #{tpu_custom_call.1} parent=11 // pred_check_branch
          %708 = sbr.rel (%p706) target = $region56
        $region55: #{tpu_custom_call.1} parent=11 // pred_region
          _
        $region56: #{tpu_custom_call.1} parent=11 // pred_fallthru
          _
        // Predicated region
        $region57: #{tpu_custom_call.1} parent=11 // pred_check
          %p709 = pneg %p341
        $region58: #{tpu_custom_call.1} parent=11 // pred_check_branch
          %711 = sbr.rel (%p709) target = $region60
        $region59: #{tpu_custom_call.1} parent=11 // pred_region
          _
        $region60: #{tpu_custom_call.1} parent=11 // pred_fallthru
          _
        // Predicated region
        $region61: #{tpu_custom_call.1} parent=11 // pred_check
          %p712 = pneg %p362
        $region62: #{tpu_custom_call.1} parent=11 // pred_check_branch
          %714 = sbr.rel (%p712) target = $region64
        $region63: #{tpu_custom_call.1} parent=11 // pred_region
          _
        $region64: #{tpu_custom_call.1} parent=11 // pred_fallthru
          _
        // Predicated region
        $region65: #{tpu_custom_call.1} parent=11 // pred_check
          %p715 = pneg %p383
        $region66: #{tpu_custom_call.1} parent=11 // pred_check_branch
          %717 = sbr.rel (%p715) target = $region68
        $region67: #{tpu_custom_call.1} parent=11 // pred_region
          _
        $region68: #{tpu_custom_call.1} parent=11 // pred_fallthru
          _
        // Predicated region
        $region69: #{tpu_custom_call.1} parent=11 // pred_check
          %p718 = pneg %p404
        $region70: #{tpu_custom_call.1} parent=11 // pred_check_branch
          %720 = sbr.rel (%p718) target = $region72
        $region71: #{tpu_custom_call.1} parent=11 // pred_region
          _
        $region72: #{tpu_custom_call.1} parent=11 // pred_fallthru
          _
        // Predicated region
        $region73: #{tpu_custom_call.1} parent=11 // pred_check
          %p721 = pneg %p425
        $region74: #{tpu_custom_call.1} parent=11 // pred_check_branch
          %723 = sbr.rel (%p721) target = $region76
        $region75: #{tpu_custom_call.1} parent=11 // pred_region
          _
        $region76: #{tpu_custom_call.1} parent=11 // pred_fallthru
          _
        // Predicated region
        $region77: #{tpu_custom_call.1} parent=11 // pred_check
          %p724 = pneg %p446
        $region78: #{tpu_custom_call.1} parent=11 // pred_check_branch
          %726 = sbr.rel (%p724) target = $region80
        $region79: #{tpu_custom_call.1} parent=11 // pred_region
          _
        $region80: #{tpu_custom_call.1} parent=11 // pred_fallthru
          _
        // Predicated region
        $region81: #{tpu_custom_call.1} parent=11 // pred_check
          %p727 = pneg %p467
        $region82: #{tpu_custom_call.1} parent=11 // pred_check_branch
          %729 = sbr.rel (%p727) target = $region84
        $region83: #{tpu_custom_call.1} parent=11 // pred_region
          _
        $region84: #{tpu_custom_call.1} parent=11 // pred_fallthru
          _
        // Predicated region
        $region85: #{tpu_custom_call.1} parent=11 // pred_check
          %p730 = pneg %p488
        $region86: #{tpu_custom_call.1} parent=11 // pred_check_branch
          %732 = sbr.rel (%p730) target = $region88
        $region87: #{tpu_custom_call.1} parent=11 // pred_region
          _
        $region88: #{tpu_custom_call.1} parent=11 // pred_fallthru
          _
        // Predicated region
        $region89: #{tpu_custom_call.1} parent=11 // pred_check
          %p733 = pneg %p509
        $region90: #{tpu_custom_call.1} parent=11 // pred_check_branch
          %735 = sbr.rel (%p733) target = $region92
        $region91: #{tpu_custom_call.1} parent=11 // pred_region
          _
        $region92: #{tpu_custom_call.1} parent=11 // pred_fallthru
          _
        // Predicated region
        $region93: #{tpu_custom_call.1} parent=11 // pred_check
          %p736 = pneg %p530
        $region94: #{tpu_custom_call.1} parent=11 // pred_check_branch
          %738 = sbr.rel (%p736) target = $region96
        $region95: #{tpu_custom_call.1} parent=11 // pred_region
          _
        $region96: #{tpu_custom_call.1} parent=11 // pred_fallthru
          _
        // Predicated region
        $region97: #{tpu_custom_call.1} parent=11 // pred_check
          %p739 = pneg %p551
        $region98: #{tpu_custom_call.1} parent=11 // pred_check_branch
          %741 = sbr.rel (%p739) target = $region100
        $region99: #{tpu_custom_call.1} parent=11 // pred_region
          _
        $region100: #{tpu_custom_call.1} parent=11 // pred_fallthru
          _
        // Predicated region
        $region101: #{tpu_custom_call.1} parent=11 // pred_check
          %p742 = pneg %p572
        $region102: #{tpu_custom_call.1} parent=11 // pred_check_branch
          %744 = sbr.rel (%p742) target = $region104
        $region103: #{tpu_custom_call.1} parent=11 // pred_region
          _
        $region104: #{tpu_custom_call.1} parent=11 // pred_fallthru
          _
        // Predicated region
        $region105: #{tpu_custom_call.1} parent=11 // pred_check
          %p745 = pneg %p593
        $region106: #{tpu_custom_call.1} parent=11 // pred_check_branch
          %747 = sbr.rel (%p745) target = $region108
        $region107: #{tpu_custom_call.1} parent=11 // pred_region
          _
        $region108: #{tpu_custom_call.1} parent=11 // pred_fallthru
          _
        // Predicated region
        $region109: #{tpu_custom_call.1} parent=11 // pred_check
          %p748 = pneg %p614
        $region110: #{tpu_custom_call.1} parent=11 // pred_check_branch
          %750 = sbr.rel (%p748) target = $region112
        $region111: #{tpu_custom_call.1} parent=11 // pred_region
          _
        $region112: #{tpu_custom_call.1} parent=11 // pred_fallthru
          _
        // Predicated region
        $region113: #{tpu_custom_call.1} parent=11 // pred_check
          %p751 = pneg %p635
        $region114: #{tpu_custom_call.1} parent=11 // pred_check_branch
          %753 = sbr.rel (%p751) target = $region116
        $region115: #{tpu_custom_call.1} parent=11 // pred_region
          _
        $region116: #{tpu_custom_call.1} parent=11 // pred_fallthru
          _
      $region12: #{tpu_custom_call.1} parent=5 // pred_fallthru
        _
      %p754 = scmp.lt.s32.totalorder %s37, 2
      // Predicated region
      $region117: #{tpu_custom_call.1} parent=5 // pred_check
        %p755 = pneg %p754
      $region118: #{tpu_custom_call.1} parent=5 // pred_check_branch
        %757 = sbr.rel (%p755) target = $region120
      $region119: #{tpu_custom_call.1} parent=5 // pred_region
        // Predicated region
        $region121: #{tpu_custom_call.1} parent=119 // pred_check
          %p758 = pneg %p57
        $region122: #{tpu_custom_call.1} parent=119 // pred_check_branch
          %760 = sbr.rel (%p758) target = $region124
        $region123: #{tpu_custom_call.1} parent=119 // pred_region
          %p761 = scmp.lt.s32.totalorder %s37, 1
          %s762 = scalar_select %p761, %s37, 1
          %s763 = smul.addr %s762, 4
          %s764 = smul.addr %s763, 8
          %s765 = scalar_lea.vmem %s0, %s764
        $region124: #{tpu_custom_call.1} parent=119 // pred_fallthru
          _
        // Predicated region
        $region125: #{tpu_custom_call.1} parent=119 // pred_check
          %p766 = pneg %p83
        $region126: #{tpu_custom_call.1} parent=119 // pred_check_branch
          %768 = sbr.rel (%p766) target = $region128
        $region127: #{tpu_custom_call.1} parent=119 // pred_region
          %p769 = scmp.lt.s32.totalorder %s37, 1
          %s770 = scalar_select %p769, %s37, 1
          %s771 = smul.addr %s770, 4
          %s772 = smul.addr %s771, 8
          %s773 = scalar_lea.vmem %s1, %s772
        $region128: #{tpu_custom_call.1} parent=119 // pred_fallthru
          _
      $region120: #{tpu_custom_call.1} parent=5 // pred_fallthru
        _
      %p774 = scmp.le.s32.totalorder 1, %s37
      %p775 = scmp.lt.s32.totalorder %s37, 3
      %p776 = pnand %p774, %p775
      %p777 = pneg %p776
      // Predicated region
      $region129: #{tpu_custom_call.1} parent=5 // pred_check
        _
      $region130: #{tpu_custom_call.1} parent=5 // pred_check_branch
        %779 = sbr.rel (%p776) target = $region132
      $region131: #{tpu_custom_call.1} parent=5 // pred_region
        %s780 = ssub.s32 %s37, 1
        %p781 = scmp.lt.s32.totalorder %s42, 1
        %s782 = scalar_select %p781, %s42, 1
        %s783 = smul.addr %s782, 4
        %s784 = smul.addr %s783, 8
        %s785 = scalar_lea.vmem %s0, %s784
        %p786 = pneg %p63
        %p787 = pneg %p60
        %p788 = scmp.lt.s32.totalorder %s42, 1
        %s789 = scalar_select %p788, %s42, 1
        %s790 = smul.addr %s789, 4
        %s791 = smul.addr %s790, 8
        %s792 = scalar_lea.vmem %s1, %s791
        %p793 = pneg %p89
        %p794 = pneg %p86
        %p795 = pneg %p110
        %p796 = pneg %p107
        %p797 = pneg %p131
        %p798 = pneg %p128
        %p799 = pneg %p152
        %p800 = pneg %p149
        %p801 = pneg %p173
        %p802 = pneg %p170
        %p803 = pneg %p194
        %p804 = pneg %p191
        %p805 = pneg %p215
        %p806 = pneg %p212
        %p807 = pneg %p236
        %p808 = pneg %p233
        %p809 = pneg %p257
        %p810 = pneg %p254
        %p811 = pneg %p278
        %p812 = pneg %p275
        %p813 = pneg %p299
        %p814 = pneg %p296
        %p815 = pneg %p320
        %p816 = pneg %p317
        %p817 = pneg %p341
        %p818 = pneg %p338
        %p819 = pneg %p362
        %p820 = pneg %p359
        %p821 = pneg %p383
        %p822 = pneg %p380
        %p823 = pneg %p404
        %p824 = pneg %p401
        %p825 = pneg %p425
        %p826 = pneg %p422
        %p827 = pneg %p446
        %p828 = pneg %p443
        %p829 = pneg %p467
        %p830 = pneg %p464
        %p831 = pneg %p488
        %p832 = pneg %p485
        %p833 = pneg %p509
        %p834 = pneg %p506
        %p835 = pneg %p530
        %p836 = pneg %p527
        %p837 = pneg %p551
        %p838 = pneg %p548
        %p839 = pneg %p572
        %p840 = pneg %p569
        %p841 = pneg %p593
        %p842 = pneg %p590
        %p843 = pneg %p614
        %p844 = pneg %p611
        %p845 = pneg %p635
        %p846 = pneg %p632
        %p847 = pneg %p661
        %p848 = pneg %p658
        %s849 = sand.u32 %s648, 1
        %s850 = scalar_lea.sflag [#allocation3], %s849
        %s851 = sand.u32 %s648, 1
        %s852 = scalar_lea.vmem [#allocation2], %s851
        %p853 = scmp.lt.s32.totalorder %s42, 1
        %s854 = scalar_select %p853, %s42, 1
        %s855 = smul.addr %s854, 4
        %s856 = smul.addr %s855, 8
        %s857 = scalar_lea.vmem %s0, %s856
        %p858 = scmp.lt.s32.totalorder %s42, 1
        %s859 = scalar_select %p858, %s42, 1
        %s860 = smul.addr %s859, 4
        %s861 = smul.addr %s860, 8
        %s862 = scalar_lea.vmem %s1, %s861
        %v864 = vld [vmem:[%s2] sm:$0x1]
        %v865 = vld [vmem:[%s3] sm:$0x1]
        %v866 = vld [vmem:[%s4] sm:$0xf]
        %v867 = vld [vmem:[%s5] sm:$0x1]
        %v868 = vld [vmem:[%s857] sm:$0xff]
        %v869 = vld [vmem:[%s857 + $0x8] sm:$0xff]
        %v870 = vld [vmem:[%s857 + $0x10] sm:$0xff]
        %v871 = vld [vmem:[%s857 + $0x18] sm:$0xff]
        %v873 = vlaneseq
        %v874 = vshrl.u32 %v873, 7
        %v875 = vsub.s32 0, %v874
        %v876 = vrot.slane %v864, %v875
        %v878 = vmul.f32 %v868, %v876
        %v879 = vmul.f32 %v869, %v876
        %v880 = vmul.f32 %v870, %v876
        %v881 = vmul.f32 %v871, %v876
        %v883 = vlaneseq
        %v884 = vshrl.u32 %v883, 7
        %v885 = vsub.s32 0, %v884
        %v886 = vrot.slane %v865, %v885
        %v888 = vadd.f32 %v878, %v886
        %v889 = vadd.f32 %v879, %v886
        %v890 = vadd.f32 %v880, %v886
        %v891 = vadd.f32 %v881, %v886
        %v892 = vld [vmem:[%s862] sm:$0xff]
        %v893 = vld [vmem:[%s862 + $0x8] sm:$0xff]
        %v894 = vld [vmem:[%s862 + $0x10] sm:$0xff]
        %v895 = vld [vmem:[%s862 + $0x18] sm:$0xff]
        %vm896 = vcmask 64512
        %v897 = vsel %vm896, %v888, 0.0
        %v898 = vsel %vm896, %v889, 0.0
        %v899 = vadd.f32 %v897, %v898
        %v900 = vsel %vm896, %v890, 0.0
        %v901 = vadd.f32 %v899, %v900
        %v902 = vsel %vm896, %v891, 0.0
        %v903 = vadd.f32 %v901, %v902
        %v904 = vrot.slane %v903, 4
        %v905 = vadd.f32 %v903, %v904
        %v906 = vrot.slane %v905, 2
        %v907 = vadd.f32 %v905, %v906
        %v908 = vrot.slane %v907, 1
        %v909 = vadd.f32 %v907, %v908
        %v910 = vrcp.pop 32.0
        %v911 = vmul.f32 %v909, %v910
        %v912 = vpack.c.bf16 %v911, %v911
        %v914 = vsel %vm896, %v912, 0
        %vm916 = vcmask 1043456
        %v918 = vsel %vm916, %v866, 0
        %920 = vmatprep.subr.bf16.mxu0 0
        %921 = vmatpush1.bf16.msra.mxu0 %v918
        %922 = vmatprep.subr.bf16.mxu0 0
        %923 = vmatpush1.bf16.msra.mxu0 0
        %924 = vmatprep.subr.bf16.mxu0 0
        %925 = vmatpush1.bf16.msra.mxu0 0
        %926 = vmatprep.subr.bf16.mxu0 0
        %927 = vmatpush1.bf16.msra.mxu0 0
        %928 = vmatprep.subr.bf16.mxu0 0
        %929 = vmatpush1.bf16.msra.mxu0 0
        %930 = vmatprep.subr.bf16.mxu0 0
        %931 = vmatpush1.bf16.msra.mxu0 0
        %932 = vmatprep.subr.bf16.mxu0 0
        %933 = vmatpush1.bf16.msra.mxu0 0
        %934 = vmatprep.subr.bf16.mxu0 0
        %935 = vmatpush1.bf16.msra.mxu0 0
        %936 = vmatprep.subr.bf16.mxu0 0
        %937 = vmatpush1.bf16.msra.mxu0 0
        %938 = vmatprep.subr.bf16.mxu0 0
        %939 = vmatpush1.bf16.msra.mxu0 0
        %940 = vmatprep.subr.bf16.mxu0 0
        %941 = vmatpush1.bf16.msra.mxu0 0
        %942 = vmatprep.subr.bf16.mxu0 0
        %943 = vmatpush1.bf16.msra.mxu0 0
        %944 = vmatprep.subr.bf16.mxu0 0
        %945 = vmatpush1.bf16.msra.mxu0 0
        %946 = vmatprep.subr.bf16.mxu0 0
        %947 = vmatpush1.bf16.msra.mxu0 0
        %948 = vmatprep.subr.bf16.mxu0 0
        %949 = vmatpush1.bf16.msra.mxu0 0
        %950 = vmatprep.subr.bf16.mxu0 0
        %951 = vmatpush1.bf16.msra.mxu0 0
        %952 = vmatprep.mubr.bf16.mxu0 0
        %953 = vmatmul.mubr.bf16.gmra.mrb[0].mxu0 %v914
        %v954 = vpop.f32.mrb[0].mxu0
        %v955 = vadd.f32 %v867, %v954
        %v956 = vpop.f32.mrb[0].mxu0
        %v957 = vpop.f32.mrb[0].mxu0
        %v958 = vpop.f32.mrb[0].mxu0
        %959 = vdwg.mxu0
        %v960 = vmax.f32 %v955, 0.0
        %v961 = vld [vmem:[%s6] sm:$0xf]
        %v962 = vld [vmem:[%s6 + $0x4] sm:$0xf]
        %v963 = vld [vmem:[%s7] sm:$0x1]
        %v964 = vld [vmem:[%s8] sm:$0xf]
        %v965 = vld [vmem:[%s8 + $0x4] sm:$0xf]
        %v966 = vld [vmem:[%s9] sm:$0x1]
        %v967 = vld [vmem:[%s10] sm:$0xf]
        %v968 = vld [vmem:[%s10 + $0x4] sm:$0xf]
        %v969 = vld [vmem:[%s11] sm:$0x1]
        %v970 = vld [vmem:[%s12] sm:$0x1]
        %v971 = vld [vmem:[%s13] sm:$0xf]
        %v972 = vld [vmem:[%s13 + $0x4] sm:$0xf]
        %v973 = vld [vmem:[%s13 + $0x8] sm:$0xf]
        %v974 = vld [vmem:[%s14] sm:$0x1]
        %vm975 = vcmask 23552
        %v977 = vsel %vm975, %v892, 0
        %v980 = vsel %vm975, %v893, 0
        %v983 = vsel %vm975, %v894, 0
        %v986 = vsel %vm975, %v895, 0
        %988 = vmatprep.subr.mxu0 0.0
        %989 = vmatpush1.xpose.msra.mxu0 %v977
        %990 = vmatprep.subr.mxu0 0.0
        %991 = vmatpush1.xpose.msra.mxu0 %v980
        %992 = vmatprep.subr.mxu0 0.0
        %993 = vmatpush1.xpose.msra.mxu0 %v983
        %994 = vmatprep.subr.mxu0 0.0
        %995 = vmatpush1.xpose.msra.mxu0 %v986
        %996 = vmatprep.subr.mxu0 0.0
        %997 = vmatpush1.xpose.msra.mxu0 0.0
        %998 = vmatprep.subr.mxu0 0.0
        %999 = vmatpush1.xpose.msra.mxu0 0.0
        %1000 = vmatprep.subr.mxu0 0.0
        %1001 = vmatpush1.xpose.msra.mxu0 0.0
        %1002 = vmatprep.subr.mxu0 0.0
        %1003 = vmatpush1.xpose.msra.mxu0 0.0
        %1004 = vmatprep.subr.mxu0 0.0
        %1005 = vmatpush1.xpose.msra.mxu0 0.0
        %1006 = vmatprep.subr.mxu0 0.0
        %1007 = vmatpush1.xpose.msra.mxu0 0.0
        %1008 = vmatprep.subr.mxu0 0.0
        %1009 = vmatpush1.xpose.msra.mxu0 0.0
        %1010 = vmatprep.subr.mxu0 0.0
        %1011 = vmatpush1.xpose.msra.mxu0 0.0
        %1012 = vmatprep.subr.mxu0 0.0
        %1013 = vmatpush1.xpose.msra.mxu0 0.0
        %1014 = vmatprep.subr.mxu0 0.0
        %1015 = vmatpush1.xpose.msra.mxu0 0.0
        %1016 = vmatprep.subr.mxu0 0.0
        %1017 = vmatpush1.xpose.msra.mxu0 0.0
        %1018 = vmatprep.subr.mxu0 0.0
        %1019 = vmatpush1.xpose.msra.mxu0 0.0
        %1020 = vmatprep.subr.mxu0 0.0
        %1021 = vmatpush1.xpose.msra.mxu0 0.0
        %1022 = vmatprep.subr.mxu0 0.0
        %1023 = vmatpush1.xpose.msra.mxu0 0.0
        %1024 = vmatprep.subr.mxu0 0.0
        %1025 = vmatpush1.xpose.msra.mxu0 0.0
        %1026 = vmatprep.subr.mxu0 0.0
        %1027 = vmatpush1.xpose.msra.mxu0 0.0
        %1028 = vmatprep.subr.mxu0 0.0
        %1029 = vmatpush1.xpose.msra.mxu0 0.0
        %1030 = vmatprep.subr.mxu0 0.0
        %1031 = vmatpush1.xpose.msra.mxu0 0.0
        %1032 = vmatprep.subr.mxu0 0.0
        %1033 = vmatpush1.xpose.msra.mxu0 0.0
        %1034 = vmatprep.subr.mxu0 0.0
        %1035 = vmatpush1.xpose.msra.mxu0 0.0
        %1036 = vmatprep.subr.mxu0 0.0
        %1037 = vmatpush1.xpose.msra.mxu0 0.0
        %1038 = vmatprep.subr.mxu0 0.0
        %1039 = vmatpush1.xpose.msra.mxu0 0.0
        %1040 = vmatprep.subr.mxu0 0.0
        %1041 = vmatpush1.xpose.msra.mxu0 0.0
        %1042 = vmatprep.subr.mxu0 0.0
        %1043 = vmatpush1.xpose.msra.mxu0 0.0
        %1044 = vmatprep.subr.mxu0 0.0
        %1045 = vmatpush1.xpose.msra.mxu0 0.0
        %1046 = vmatprep.subr.mxu0 0.0
        %1047 = vmatpush1.xpose.msra.mxu0 0.0
        %1048 = vmatprep.subr.mxu0 0.0
        %1049 = vmatpush1.xpose.msra.mxu0 0.0
        %1050 = vmatprep.subr.mxu0 0.0
        %1051 = vmatpush1.xpose.msra.mxu0 0.0
        %1052 = vmatprep.mubr.f32.mxu0 0.0
        %1053 = vmatmul.mubr.f32.gmra.mrb[0].mxu0 %v977
        %v1054 = vpop.f32.mrb[0].mxu0
        %v1055 = vadd.f32 0.0, %v1054
        %v1056 = vpop.f32.mrb[0].mxu0
        %1057 = vmatprep.mubr.f32.mxu0 0.0
        %1058 = vmatmul.mubr.f32.gmra.mrb[0].mxu0 %v980
        %v1059 = vpop.f32.mrb[0].mxu0
        %v1060 = vadd.f32 0.0, %v1059
        %v1061 = vpop.f32.mrb[0].mxu0
        %1062 = vmatprep.mubr.f32.mxu0 0.0
        %1063 = vmatmul.mubr.f32.gmra.mrb[0].mxu0 %v983
        %v1064 = vpop.f32.mrb[0].mxu0
        %v1065 = vadd.f32 0.0, %v1064
        %v1066 = vpop.f32.mrb[0].mxu0
        %1067 = vmatprep.mubr.f32.mxu0 0.0
        %1068 = vmatmul.mubr.f32.gmra.mrb[0].mxu0 %v986
        %v1069 = vpop.f32.mrb[0].mxu0
        %v1070 = vadd.f32 0.0, %v1069
        %v1071 = vpop.f32.mrb[0].mxu0
        %1072 = vdwg.mxu0
        %v1073 = vmul.f32 %v892, %v892
        %v1074 = vmul.f32 %v893, %v893
        %v1075 = vmul.f32 %v894, %v894
        %v1076 = vmul.f32 %v895, %v895
        %v1077 = vsel %vm975, %v1073, 0.0
        %1078 = vadd.xlane.f32.xlu0 %v1077
        %v1079 = vpop.xlane.xlu0 %1078
        %v1080 = vsel %vm975, %v1074, 0.0
        %1081 = vadd.xlane.f32.xlu0 %v1080
        %v1082 = vpop.xlane.xlu0 %1081
        %v1083 = vsel %vm975, %v1075, 0.0
        %1084 = vadd.xlane.f32.xlu0 %v1083
        %v1085 = vpop.xlane.xlu0 %1084
        %v1086 = vsel %vm975, %v1076, 0.0
        %1087 = vadd.xlane.f32.xlu0 %v1086
        %v1088 = vpop.xlane.xlu0 %1087
        %1089 = vxpose.xlu0.b32.start [1/16] %v1079, 128
        %1090 = vxpose.xlu0.b32.cont [2/16] %v1082, 128
        %1091 = vxpose.xlu0.b32.cont [3/16] %v1085, 128
        %1092 = vxpose.xlu0.b32.cont [4/16] %v1088, 128
        %1093 = vxpose.xlu0.b32.cont [5/16] 0.0, 128
        %1094 = vxpose.xlu0.b32.cont [6/16] 0.0, 128
        %1095 = vxpose.xlu0.b32.cont [7/16] 0.0, 128
        %1096 = vxpose.xlu0.b32.cont [8/16] 0.0, 128
        %1097 = vxpose.xlu0.b32.cont [9/16] 0.0, 128
        %1098 = vxpose.xlu0.b32.cont [10/16] 0.0, 128
        %1099 = vxpose.xlu0.b32.cont [11/16] 0.0, 128
        %1100 = vxpose.xlu0.b32.cont [12/16] 0.0, 128
        %1101 = vxpose.xlu0.b32.cont [13/16] 0.0, 128
        %1102 = vxpose.xlu0.b32.cont [14/16] 0.0, 128
        %1103 = vxpose.xlu0.b32.cont [15/16] 0.0, 128
        %1104 = vxpose.xlu0.b32.end [16/16] 0.0, 128
        %v1105 = vpop.trf.xlu0
        %v1106 = vpop.trf.xlu0
        %v1107 = vpop.trf.xlu0
        %v1108 = vpop.trf.xlu0
        %v1109 = vpop.trf.xlu0
        %v1110 = vpop.trf.xlu0
        %v1111 = vpop.trf.xlu0
        %v1112 = vpop.trf.xlu0
        %v1113 = vpop.trf.xlu0
        %v1114 = vpop.trf.xlu0
        %v1115 = vpop.trf.xlu0
        %v1116 = vpop.trf.xlu0
        %v1117 = vpop.trf.xlu0
        %v1118 = vpop.trf.xlu0
        %v1119 = vpop.trf.xlu0
        %v1120 = vpop.trf.xlu0
        %v1121 = vmul.f32 %v1055, 2.0
        %v1122 = vmul.f32 %v1060, 2.0
        %v1123 = vmul.f32 %v1065, 2.0
        %v1124 = vmul.f32 %v1070, 2.0
        %v1125 = vlaneseq
        %v1126 = vshrl.u32 %v1125, 7
        %v1127 = vsub.s32 0, %v1126
        %v1128 = vrot.slane %v1105, %v1127
        %v1129 = vsub.f32 %v1128, %v1121
        %v1130 = vsub.f32 %v1128, %v1122
        %v1131 = vsub.f32 %v1128, %v1123
        %v1132 = vsub.f32 %v1128, %v1124
        %v1133 = vlaneseq
        %v1134 = vshrl.u32 %v1133, 7
        %v1135 = vadd.s32 %v1134, 8
        %v1136 = vadd.s32 %v1134, 16
        %v1137 = vadd.s32 %v1134, 24
        %v1138 = vlaneseq
        %v1139 = vand.u32 %v1138, 127
        %vm1140 = vcmp.eq.s32.totalorder %v1134, %v1139
        %vm1141 = vcmp.eq.s32.totalorder %v1135, %v1139
        %vm1142 = vcmp.eq.s32.totalorder %v1136, %v1139
        %vm1143 = vcmp.eq.s32.totalorder %v1137, %v1139
        %v1144 = vsel %vm1140, inf, %v1129
        %v1145 = vsel %vm1141, inf, %v1130
        %v1146 = vsel %vm1142, inf, %v1131
        %v1147 = vsel %vm1143, inf, %v1132
        %v1148 = vsel %vm1140, 1, 0
        %v1149 = vsel %vm1141, 1, 0
        %v1150 = vsel %vm1142, 1, 0
        %v1151 = vsel %vm1143, 1, 0
        %v1152 = vcvt.s32.f32 %v1148
        %v1153 = vcvt.s32.f32 %v1149
        %v1154 = vcvt.s32.f32 %v1150
        %v1155 = vcvt.s32.f32 %v1151
        %v1156 = vpack.c.bf16 %v1153, %v1152
        %v1157 = vpack.c.bf16 %v1155, %v1154
        %vm1158 = vcmask 261120
        %v1159 = vsel %vm1158, %v1144, inf
        %1160 = vmin.xlane.f32.xlu0 %v1159
        %v1161 = vpop.xlane.xlu0 %1160
        %v1162 = vsel %vm1158, %v1145, inf
        %1163 = vmin.xlane.f32.xlu0 %v1162
        %v1164 = vpop.xlane.xlu0 %1163
        %v1165 = vsel %vm1158, %v1146, inf
        %1166 = vmin.xlane.f32.xlu0 %v1165
        %v1167 = vpop.xlane.xlu0 %1166
        %v1168 = vsel %vm1158, %v1147, inf
        %1169 = vmin.xlane.f32.xlu0 %v1168
        %v1170 = vpop.xlane.xlu0 %1169
        %vm1171 = vcmp.le.f32.partialorder %v1144, %v1161
        %vm1172 = vcmp.le.f32.partialorder %v1145, %v1164
        %vm1173 = vcmp.le.f32.partialorder %v1146, %v1167
        %vm1174 = vcmp.le.f32.partialorder %v1147, %v1170
        %v1175 = vsel %vm1171, %v1139, 32
        %v1176 = vsel %vm1172, %v1139, 32
        %v1177 = vsel %vm1173, %v1139, 32
        %v1178 = vsel %vm1174, %v1139, 32
        %v1179 = vsel %vm1158, %v1175, 2147483647
        %v1180 = vand.u32 %v1179, 65535
        %v1181 = vshra.s32 %v1179, 16
        %v1182 = vcvt.s32.f32 %v1180
        %v1183 = vcvt.s32.f32 %v1181
        %1184 = vmin.xlane.f32.xlu0 %v1183
        %v1185 = vpop.xlane.xlu0 %1184
        %vm1186 = vcmp.eq.f32.partialorder %v1183, %v1185
        %v1187 = vsel %vm1186, %v1182, inf
        %1188 = vmin.xlane.f32.xlu0 %v1187
        %v1189 = vpop.xlane.xlu0 %1188
        %v1190 = vcvt.f32.s32 %v1189
        %v1191 = vcvt.f32.s32 %v1185
        %v1192 = vshll.u32 %v1191, 16
        %v1193 = vadd.s32 %v1192, %v1190
        %v1194 = vsel %vm1158, %v1176, 2147483647
        %v1195 = vand.u32 %v1194, 65535
        %v1196 = vshra.s32 %v1194, 16
        %v1197 = vcvt.s32.f32 %v1195
        %v1198 = vcvt.s32.f32 %v1196
        %1199 = vmin.xlane.f32.xlu0 %v1198
        %v1200 = vpop.xlane.xlu0 %1199
        %vm1201 = vcmp.eq.f32.partialorder %v1198, %v1200
        %v1202 = vsel %vm1201, %v1197, inf
        %1203 = vmin.xlane.f32.xlu0 %v1202
        %v1204 = vpop.xlane.xlu0 %1203
        %v1205 = vcvt.f32.s32 %v1204
        %v1206 = vcvt.f32.s32 %v1200
        %v1207 = vshll.u32 %v1206, 16
        %v1208 = vadd.s32 %v1207, %v1205
        %v1209 = vsel %vm1158, %v1177, 2147483647
        %v1210 = vand.u32 %v1209, 65535
        %v1211 = vshra.s32 %v1209, 16
        %v1212 = vcvt.s32.f32 %v1210
        %v1213 = vcvt.s32.f32 %v1211
        %1214 = vmin.xlane.f32.xlu0 %v1213
        %v1215 = vpop.xlane.xlu0 %1214
        %vm1216 = vcmp.eq.f32.partialorder %v1213, %v1215
        %v1217 = vsel %vm1216, %v1212, inf
        %1218 = vmin.xlane.f32.xlu0 %v1217
        %v1219 = vpop.xlane.xlu0 %1218
        %v1220 = vcvt.f32.s32 %v1219
        %v1221 = vcvt.f32.s32 %v1215
        %v1222 = vshll.u32 %v1221, 16
        %v1223 = vadd.s32 %v1222, %v1220
        %v1224 = vsel %vm1158, %v1178, 2147483647
        %v1225 = vand.u32 %v1224, 65535
        %v1226 = vshra.s32 %v1224, 16
        %v1227 = vcvt.s32.f32 %v1225
        %v1228 = vcvt.s32.f32 %v1226
        %1229 = vmin.xlane.f32.xlu0 %v1228
        %v1230 = vpop.xlane.xlu0 %1229
        %vm1231 = vcmp.eq.f32.partialorder %v1228, %v1230
        %v1232 = vsel %vm1231, %v1227, inf
        %1233 = vmin.xlane.f32.xlu0 %v1232
        %v1234 = vpop.xlane.xlu0 %1233
        %v1235 = vcvt.f32.s32 %v1234
        %v1236 = vcvt.f32.s32 %v1230
        %v1237 = vshll.u32 %v1236, 16
        %v1238 = vadd.s32 %v1237, %v1235
        %vm1239 = vcmp.eq.s32.totalorder %v1139, %v1193
        %vm1240 = vcmp.eq.s32.totalorder %v1139, %v1208
        %vm1241 = vcmp.eq.s32.totalorder %v1139, %v1223
        %vm1242 = vcmp.eq.s32.totalorder %v1139, %v1238
        %v1243 = vsel %vm1239, 1, 0
        %v1244 = vsel %vm1240, 1, 0
        %v1245 = vsel %vm1241, 1, 0
        %v1246 = vsel %vm1242, 1, 0
        %v1247 = vcvt.s32.f32 %v1243
        %v1248 = vcvt.s32.f32 %v1244
        %v1249 = vcvt.s32.f32 %v1245
        %v1250 = vcvt.s32.f32 %v1246
        %v1251 = vpack.c.bf16 %v1248, %v1247
        %v1252 = vpack.c.bf16 %v1250, %v1249
        %1255 = vrot.lane.b32.xlu0 %v1156, 32
        %v1256 = vpop.permute.xlu0 %1255
        %1257 = vrot.lane.b32.xlu0 %v1157, 32
        %v1258 = vpop.permute.xlu0 %1257
        %v1261 = vsel %vm1158, %v1251, %v1256
        %v1264 = vsel %vm1158, %v1252, %v1258
        %v1265 = vsel %vm1239, inf, %v1144
        %v1266 = vsel %vm1240, inf, %v1145
        %v1267 = vsel %vm1241, inf, %v1146
        %v1268 = vsel %vm1242, inf, %v1147
        %v1269 = vsel %vm1158, %v1265, inf
        %1270 = vmin.xlane.f32.xlu0 %v1269
        %v1271 = vpop.xlane.xlu0 %1270
        %v1272 = vsel %vm1158, %v1266, inf
        %1273 = vmin.xlane.f32.xlu0 %v1272
        %v1274 = vpop.xlane.xlu0 %1273
        %v1275 = vsel %vm1158, %v1267, inf
        %1276 = vmin.xlane.f32.xlu0 %v1275
        %v1277 = vpop.xlane.xlu0 %1276
        %v1278 = vsel %vm1158, %v1268, inf
        %1279 = vmin.xlane.f32.xlu0 %v1278
        %v1280 = vpop.xlane.xlu0 %1279
        %vm1281 = vcmp.le.f32.partialorder %v1265, %v1271
        %vm1282 = vcmp.le.f32.partialorder %v1266, %v1274
        %vm1283 = vcmp.le.f32.partialorder %v1267, %v1277
        %vm1284 = vcmp.le.f32.partialorder %v1268, %v1280
        %v1285 = vsel %vm1281, %v1139, 32
        %v1286 = vsel %vm1282, %v1139, 32
        %v1287 = vsel %vm1283, %v1139, 32
        %v1288 = vsel %vm1284, %v1139, 32
        %v1289 = vsel %vm1158, %v1285, 2147483647
        %v1290 = vand.u32 %v1289, 65535
        %v1291 = vshra.s32 %v1289, 16
        %v1292 = vcvt.s32.f32 %v1290
        %v1293 = vcvt.s32.f32 %v1291
        %1294 = vmin.xlane.f32.xlu0 %v1293
        %v1295 = vpop.xlane.xlu0 %1294
        %vm1296 = vcmp.eq.f32.partialorder %v1293, %v1295
        %v1297 = vsel %vm1296, %v1292, inf
        %1298 = vmin.xlane.f32.xlu0 %v1297
        %v1299 = vpop.xlane.xlu0 %1298
        %v1300 = vcvt.f32.s32 %v1299
        %v1301 = vcvt.f32.s32 %v1295
        %v1302 = vshll.u32 %v1301, 16
        %v1303 = vadd.s32 %v1302, %v1300
        %v1304 = vsel %vm1158, %v1286, 2147483647
        %v1305 = vand.u32 %v1304, 65535
        %v1306 = vshra.s32 %v1304, 16
        %v1307 = vcvt.s32.f32 %v1305
        %v1308 = vcvt.s32.f32 %v1306
        %1309 = vmin.xlane.f32.xlu0 %v1308
        %v1310 = vpop.xlane.xlu0 %1309
        %vm1311 = vcmp.eq.f32.partialorder %v1308, %v1310
        %v1312 = vsel %vm1311, %v1307, inf
        %1313 = vmin.xlane.f32.xlu0 %v1312
        %v1314 = vpop.xlane.xlu0 %1313
        %v1315 = vcvt.f32.s32 %v1314
        %v1316 = vcvt.f32.s32 %v1310
        %v1317 = vshll.u32 %v1316, 16
        %v1318 = vadd.s32 %v1317, %v1315
        %v1319 = vsel %vm1158, %v1287, 2147483647
        %v1320 = vand.u32 %v1319, 65535
        %v1321 = vshra.s32 %v1319, 16
        %v1322 = vcvt.s32.f32 %v1320
        %v1323 = vcvt.s32.f32 %v1321
        %1324 = vmin.xlane.f32.xlu0 %v1323
        %v1325 = vpop.xlane.xlu0 %1324
        %vm1326 = vcmp.eq.f32.partialorder %v1323, %v1325
        %v1327 = vsel %vm1326, %v1322, inf
        %1328 = vmin.xlane.f32.xlu0 %v1327
        %v1329 = vpop.xlane.xlu0 %1328
        %v1330 = vcvt.f32.s32 %v1329
        %v1331 = vcvt.f32.s32 %v1325
        %v1332 = vshll.u32 %v1331, 16
        %v1333 = vadd.s32 %v1332, %v1330
        %v1334 = vsel %vm1158, %v1288, 2147483647
        %v1335 = vand.u32 %v1334, 65535
        %v1336 = vshra.s32 %v1334, 16
        %v1337 = vcvt.s32.f32 %v1335
        %v1338 = vcvt.s32.f32 %v1336
        %1339 = vmin.xlane.f32.xlu0 %v1338
        %v1340 = vpop.xlane.xlu0 %1339
        %vm1341 = vcmp.eq.f32.partialorder %v1338, %v1340
        %v1342 = vsel %vm1341, %v1337, inf
        %1343 = vmin.xlane.f32.xlu0 %v1342
        %v1344 = vpop.xlane.xlu0 %1343
        %v1345 = vcvt.f32.s32 %v1344
        %v1346 = vcvt.f32.s32 %v1340
        %v1347 = vshll.u32 %v1346, 16
        %v1348 = vadd.s32 %v1347, %v1345
        %vm1349 = vcmp.eq.s32.totalorder %v1139, %v1303
        %vm1350 = vcmp.eq.s32.totalorder %v1139, %v1318
        %vm1351 = vcmp.eq.s32.totalorder %v1139, %v1333
        %vm1352 = vcmp.eq.s32.totalorder %v1139, %v1348
        %v1353 = vsel %vm1349, 1, 0
        %v1354 = vsel %vm1350, 1, 0
        %v1355 = vsel %vm1351, 1, 0
        %v1356 = vsel %vm1352, 1, 0
        %v1357 = vcvt.s32.f32 %v1353
        %v1358 = vcvt.s32.f32 %v1354
        %v1359 = vcvt.s32.f32 %v1355
        %v1360 = vcvt.s32.f32 %v1356
        %v1361 = vpack.c.bf16 %v1358, %v1357
        %v1362 = vpack.c.bf16 %v1360, %v1359
        %v1364 = vsel %vm1158, %v1361, %v1256
        %v1366 = vsel %vm1158, %v1362, %v1258
        %v1367 = vsel %vm1349, inf, %v1265
        %v1368 = vsel %vm1350, inf, %v1266
        %v1369 = vsel %vm1351, inf, %v1267
        %v1370 = vsel %vm1352, inf, %v1268
        %v1371 = vsel %vm1158, %v1367, inf
        %1372 = vmin.xlane.f32.xlu0 %v1371
        %v1373 = vpop.xlane.xlu0 %1372
        %v1374 = vsel %vm1158, %v1368, inf
        %1375 = vmin.xlane.f32.xlu0 %v1374
        %v1376 = vpop.xlane.xlu0 %1375
        %v1377 = vsel %vm1158, %v1369, inf
        %1378 = vmin.xlane.f32.xlu0 %v1377
        %v1379 = vpop.xlane.xlu0 %1378
        %v1380 = vsel %vm1158, %v1370, inf
        %1381 = vmin.xlane.f32.xlu0 %v1380
        %v1382 = vpop.xlane.xlu0 %1381
        %vm1383 = vcmp.le.f32.partialorder %v1367, %v1373
        %vm1384 = vcmp.le.f32.partialorder %v1368, %v1376
        %vm1385 = vcmp.le.f32.partialorder %v1369, %v1379
        %vm1386 = vcmp.le.f32.partialorder %v1370, %v1382
        %v1387 = vsel %vm1383, %v1139, 32
        %v1388 = vsel %vm1384, %v1139, 32
        %v1389 = vsel %vm1385, %v1139, 32
        %v1390 = vsel %vm1386, %v1139, 32
        %v1391 = vsel %vm1158, %v1387, 2147483647
        %v1392 = vand.u32 %v1391, 65535
        %v1393 = vshra.s32 %v1391, 16
        %v1394 = vcvt.s32.f32 %v1392
        %v1395 = vcvt.s32.f32 %v1393
        %1396 = vmin.xlane.f32.xlu0 %v1395
        %v1397 = vpop.xlane.xlu0 %1396
        %vm1398 = vcmp.eq.f32.partialorder %v1395, %v1397
        %v1399 = vsel %vm1398, %v1394, inf
        %1400 = vmin.xlane.f32.xlu0 %v1399
        %v1401 = vpop.xlane.xlu0 %1400
        %v1402 = vcvt.f32.s32 %v1401
        %v1403 = vcvt.f32.s32 %v1397
        %v1404 = vshll.u32 %v1403, 16
        %v1405 = vadd.s32 %v1404, %v1402
        %v1406 = vsel %vm1158, %v1388, 2147483647
        %v1407 = vand.u32 %v1406, 65535
        %v1408 = vshra.s32 %v1406, 16
        %v1409 = vcvt.s32.f32 %v1407
        %v1410 = vcvt.s32.f32 %v1408
        %1411 = vmin.xlane.f32.xlu0 %v1410
        %v1412 = vpop.xlane.xlu0 %1411
        %vm1413 = vcmp.eq.f32.partialorder %v1410, %v1412
        %v1414 = vsel %vm1413, %v1409, inf
        %1415 = vmin.xlane.f32.xlu0 %v1414
        %v1416 = vpop.xlane.xlu0 %1415
        %v1417 = vcvt.f32.s32 %v1416
        %v1418 = vcvt.f32.s32 %v1412
        %v1419 = vshll.u32 %v1418, 16
        %v1420 = vadd.s32 %v1419, %v1417
        %v1421 = vsel %vm1158, %v1389, 2147483647
        %v1422 = vand.u32 %v1421, 65535
        %v1423 = vshra.s32 %v1421, 16
        %v1424 = vcvt.s32.f32 %v1422
        %v1425 = vcvt.s32.f32 %v1423
        %1426 = vmin.xlane.f32.xlu0 %v1425
        %v1427 = vpop.xlane.xlu0 %1426
        %vm1428 = vcmp.eq.f32.partialorder %v1425, %v1427
        %v1429 = vsel %vm1428, %v1424, inf
        %1430 = vmin.xlane.f32.xlu0 %v1429
        %v1431 = vpop.xlane.xlu0 %1430
        %v1432 = vcvt.f32.s32 %v1431
        %v1433 = vcvt.f32.s32 %v1427
        %v1434 = vshll.u32 %v1433, 16
        %v1435 = vadd.s32 %v1434, %v1432
        %v1436 = vsel %vm1158, %v1390, 2147483647
        %v1437 = vand.u32 %v1436, 65535
        %v1438 = vshra.s32 %v1436, 16
        %v1439 = vcvt.s32.f32 %v1437
        %v1440 = vcvt.s32.f32 %v1438
        %1441 = vmin.xlane.f32.xlu0 %v1440
        %v1442 = vpop.xlane.xlu0 %1441
        %vm1443 = vcmp.eq.f32.partialorder %v1440, %v1442
        %v1444 = vsel %vm1443, %v1439, inf
        %1445 = vmin.xlane.f32.xlu0 %v1444
        %v1446 = vpop.xlane.xlu0 %1445
        %v1447 = vcvt.f32.s32 %v1446
        %v1448 = vcvt.f32.s32 %v1442
        %v1449 = vshll.u32 %v1448, 16
        %v1450 = vadd.s32 %v1449, %v1447
        %vm1451 = vcmp.eq.s32.totalorder %v1139, %v1405
        %vm1452 = vcmp.eq.s32.totalorder %v1139, %v1420
        %vm1453 = vcmp.eq.s32.totalorder %v1139, %v1435
        %vm1454 = vcmp.eq.s32.totalorder %v1139, %v1450
        %v1455 = vsel %vm1451, 1, 0
        %v1456 = vsel %vm1452, 1, 0
        %v1457 = vsel %vm1453, 1, 0
        %v1458 = vsel %vm1454, 1, 0
        %v1459 = vcvt.s32.f32 %v1455
        %v1460 = vcvt.s32.f32 %v1456
        %v1461 = vcvt.s32.f32 %v1457
        %v1462 = vcvt.s32.f32 %v1458
        %v1463 = vpack.c.bf16 %v1460, %v1459
        %v1464 = vpack.c.bf16 %v1462, %v1461
        %v1466 = vsel %vm1158, %v1463, %v1256
        %v1468 = vsel %vm1158, %v1464, %v1258
        %v1469 = vsel %vm1451, inf, %v1367
        %v1470 = vsel %vm1452, inf, %v1368
        %v1471 = vsel %vm1453, inf, %v1369
        %v1472 = vsel %vm1454, inf, %v1370
        %v1473 = vsel %vm1158, %v1469, inf
        %1474 = vmin.xlane.f32.xlu0 %v1473
        %v1475 = vpop.xlane.xlu0 %1474
        %v1476 = vsel %vm1158, %v1470, inf
        %1477 = vmin.xlane.f32.xlu0 %v1476
        %v1478 = vpop.xlane.xlu0 %1477
        %v1479 = vsel %vm1158, %v1471, inf
        %1480 = vmin.xlane.f32.xlu0 %v1479
        %v1481 = vpop.xlane.xlu0 %1480
        %v1482 = vsel %vm1158, %v1472, inf
        %1483 = vmin.xlane.f32.xlu0 %v1482
        %v1484 = vpop.xlane.xlu0 %1483
        %vm1485 = vcmp.le.f32.partialorder %v1469, %v1475
        %vm1486 = vcmp.le.f32.partialorder %v1470, %v1478
        %vm1487 = vcmp.le.f32.partialorder %v1471, %v1481
        %vm1488 = vcmp.le.f32.partialorder %v1472, %v1484
        %v1489 = vsel %vm1485, %v1139, 32
        %v1490 = vsel %vm1486, %v1139, 32
        %v1491 = vsel %vm1487, %v1139, 32
        %v1492 = vsel %vm1488, %v1139, 32
        %v1493 = vsel %vm1158, %v1489, 2147483647
        %v1494 = vand.u32 %v1493, 65535
        %v1495 = vshra.s32 %v1493, 16
        %v1496 = vcvt.s32.f32 %v1494
        %v1497 = vcvt.s32.f32 %v1495
        %1498 = vmin.xlane.f32.xlu0 %v1497
        %v1499 = vpop.xlane.xlu0 %1498
        %vm1500 = vcmp.eq.f32.partialorder %v1497, %v1499
        %v1501 = vsel %vm1500, %v1496, inf
        %1502 = vmin.xlane.f32.xlu0 %v1501
        %v1503 = vpop.xlane.xlu0 %1502
        %v1504 = vcvt.f32.s32 %v1503
        %v1505 = vcvt.f32.s32 %v1499
        %v1506 = vshll.u32 %v1505, 16
        %v1507 = vadd.s32 %v1506, %v1504
        %v1508 = vsel %vm1158, %v1490, 2147483647
        %v1509 = vand.u32 %v1508, 65535
        %v1510 = vshra.s32 %v1508, 16
        %v1511 = vcvt.s32.f32 %v1509
        %v1512 = vcvt.s32.f32 %v1510
        %1513 = vmin.xlane.f32.xlu0 %v1512
        %v1514 = vpop.xlane.xlu0 %1513
        %vm1515 = vcmp.eq.f32.partialorder %v1512, %v1514
        %v1516 = vsel %vm1515, %v1511, inf
        %1517 = vmin.xlane.f32.xlu0 %v1516
        %v1518 = vpop.xlane.xlu0 %1517
        %v1519 = vcvt.f32.s32 %v1518
        %v1520 = vcvt.f32.s32 %v1514
        %v1521 = vshll.u32 %v1520, 16
        %v1522 = vadd.s32 %v1521, %v1519
        %v1523 = vsel %vm1158, %v1491, 2147483647
        %v1524 = vand.u32 %v1523, 65535
        %v1525 = vshra.s32 %v1523, 16
        %v1526 = vcvt.s32.f32 %v1524
        %v1527 = vcvt.s32.f32 %v1525
        %1528 = vmin.xlane.f32.xlu0 %v1527
        %v1529 = vpop.xlane.xlu0 %1528
        %vm1530 = vcmp.eq.f32.partialorder %v1527, %v1529
        %v1531 = vsel %vm1530, %v1526, inf
        %1532 = vmin.xlane.f32.xlu0 %v1531
        %v1533 = vpop.xlane.xlu0 %1532
        %v1534 = vcvt.f32.s32 %v1533
        %v1535 = vcvt.f32.s32 %v1529
        %v1536 = vshll.u32 %v1535, 16
        %v1537 = vadd.s32 %v1536, %v1534
        %v1538 = vsel %vm1158, %v1492, 2147483647
        %v1539 = vand.u32 %v1538, 65535
        %v1540 = vshra.s32 %v1538, 16
        %v1541 = vcvt.s32.f32 %v1539
        %v1542 = vcvt.s32.f32 %v1540
        %1543 = vmin.xlane.f32.xlu0 %v1542
        %v1544 = vpop.xlane.xlu0 %1543
        %vm1545 = vcmp.eq.f32.partialorder %v1542, %v1544
        %v1546 = vsel %vm1545, %v1541, inf
        %1547 = vmin.xlane.f32.xlu0 %v1546
        %v1548 = vpop.xlane.xlu0 %1547
        %v1549 = vcvt.f32.s32 %v1548
        %v1550 = vcvt.f32.s32 %v1544
        %v1551 = vshll.u32 %v1550, 16
        %v1552 = vadd.s32 %v1551, %v1549
        %vm1553 = vcmp.eq.s32.totalorder %v1139, %v1507
        %vm1554 = vcmp.eq.s32.totalorder %v1139, %v1522
        %vm1555 = vcmp.eq.s32.totalorder %v1139, %v1537
        %vm1556 = vcmp.eq.s32.totalorder %v1139, %v1552
        %v1557 = vsel %vm1553, 1, 0
        %v1558 = vsel %vm1554, 1, 0
        %v1559 = vsel %vm1555, 1, 0
        %v1560 = vsel %vm1556, 1, 0
        %v1561 = vcvt.s32.f32 %v1557
        %v1562 = vcvt.s32.f32 %v1558
        %v1563 = vcvt.s32.f32 %v1559
        %v1564 = vcvt.s32.f32 %v1560
        %v1565 = vpack.c.bf16 %v1562, %v1561
        %v1566 = vpack.c.bf16 %v1564, %v1563
        %v1568 = vsel %vm1158, %v1565, %v1256
        %v1570 = vsel %vm1158, %v1566, %v1258
        %v1571 = vpack.c.bf16 %v889, %v888
        %v1572 = vpack.c.bf16 %v891, %v890
        %v1573 = vpack.c.bf16 %v960, %v960
        %v1575 = vpack.i.b16 %v1573, %v1573
        %v1577 = vlaneseq
        %v1578 = vshrl.u32 %v1577, 7
        %v1579 = vsub.s32 0, %v1578
        %v1580 = vrot.slane %v1575, %v1579
        %1582 = vrot.lane.b32.xlu0 %v1580, 8
        %v1583 = vpop.permute.xlu0 %1582
        %v1586 = vsel %vm896, %v1571, %v1583
        %v1588 = vsel %vm896, %v1572, %v1583
        %v1591 = vunpack.c.l.b16 %v961
        %v1592 = vunpack.c.l.b16 %v962
        %v1593 = vpack.c.b16 %v1592, %v1591
        %vm1595 = vcmask 130048
        %v1596 = vsel %vm1595, %v1586, 0
        %v1598 = vsel %vm1595, %v1588, 0
        %1600 = vmatprep.subr.bf16.mxu0 0
        %1601 = vmatpush1.bf16.msra.mxu0 %v1593
        %1602 = vmatprep.subr.bf16.mxu0 0
        %1603 = vmatpush1.bf16.msra.mxu0 0
        %1604 = vmatprep.subr.bf16.mxu0 0
        %1605 = vmatpush1.bf16.msra.mxu0 0
        %1606 = vmatprep.subr.bf16.mxu0 0
        %1607 = vmatpush1.bf16.msra.mxu0 0
        %1608 = vmatprep.subr.bf16.mxu0 0
        %1609 = vmatpush1.bf16.msra.mxu0 0
        %1610 = vmatprep.subr.bf16.mxu0 0
        %1611 = vmatpush1.bf16.msra.mxu0 0
        %1612 = vmatprep.subr.bf16.mxu0 0
        %1613 = vmatpush1.bf16.msra.mxu0 0
        %1614 = vmatprep.subr.bf16.mxu0 0
        %1615 = vmatpush1.bf16.msra.mxu0 0
        %1616 = vmatprep.subr.bf16.mxu0 0
        %1617 = vmatpush1.bf16.msra.mxu0 0
        %1618 = vmatprep.subr.bf16.mxu0 0
        %1619 = vmatpush1.bf16.msra.mxu0 0
        %1620 = vmatprep.subr.bf16.mxu0 0
        %1621 = vmatpush1.bf16.msra.mxu0 0
        %1622 = vmatprep.subr.bf16.mxu0 0
        %1623 = vmatpush1.bf16.msra.mxu0 0
        %1624 = vmatprep.subr.bf16.mxu0 0
        %1625 = vmatpush1.bf16.msra.mxu0 0
        %1626 = vmatprep.subr.bf16.mxu0 0
        %1627 = vmatpush1.bf16.msra.mxu0 0
        %1628 = vmatprep.subr.bf16.mxu0 0
        %1629 = vmatpush1.bf16.msra.mxu0 0
        %1630 = vmatprep.subr.bf16.mxu0 0
        %1631 = vmatpush1.bf16.msra.mxu0 0
        %1632 = vmatprep.mubr.bf16.mxu0 0
        %1633 = vmatmul.mubr.bf16.gmra.mrb[0].mxu0 %v1596
        %v1634 = vpop.f32.mrb[0].mxu0
        %v1635 = vadd.f32 0.0, %v1634
        %v1636 = vpop.f32.mrb[0].mxu0
        %v1637 = vpop.f32.mrb[0].mxu0
        %v1638 = vadd.f32 0.0, %v1637
        %v1639 = vpop.f32.mrb[0].mxu0
        %1640 = vmatprep.mubr.bf16.mxu0 0
        %1641 = vmatmul.mubr.bf16.gmra.mrb[0].mxu0 %v1598
        %v1642 = vpop.f32.mrb[0].mxu0
        %v1643 = vadd.f32 0.0, %v1642
        %v1644 = vpop.f32.mrb[0].mxu0
        %v1645 = vpop.f32.mrb[0].mxu0
        %v1646 = vadd.f32 0.0, %v1645
        %v1647 = vpop.f32.mrb[0].mxu0
        %1648 = vdwg.mxu0
        %v1650 = vlaneseq
        %v1651 = vshrl.u32 %v1650, 7
        %v1652 = vsub.s32 0, %v1651
        %v1653 = vrot.slane %v963, %v1652
        %v1655 = vadd.f32 %v1635, %v1653
        %v1656 = vadd.f32 %v1638, %v1653
        %v1657 = vadd.f32 %v1643, %v1653
        %v1658 = vadd.f32 %v1646, %v1653
        %v1660 = vlaneseq
        %v1661 = vshrl.u32 %v1660, 7
        %v1662 = vsub.s32 0, %v1661
        %v1663 = vrot.slane %v970, %v1662
        %1664 = vrot.lane.b32.xlu0 %v1663, 32
        %v1665 = vpop.permute.xlu0 %1664
        %v1667 = vadd.f32 %v1635, %v1665
        %v1668 = vadd.f32 %v1638, %v1665
        %v1669 = vadd.f32 %v1643, %v1665
        %v1670 = vadd.f32 %v1646, %v1665
        %1675 = vrot.lane.b32.xlu0 %v1655, 16
        %v1676 = vpop.permute.xlu0 %1675
        %1677 = vrot.lane.b32.xlu0 %v1656, 16
        %v1678 = vpop.permute.xlu0 %1677
        %1679 = vrot.lane.b32.xlu0 %v1657, 16
        %v1680 = vpop.permute.xlu0 %1679
        %1681 = vrot.lane.b32.xlu0 %v1658, 16
        %v1682 = vpop.permute.xlu0 %1681
        %v1687 = vpack.c.bf16 %v1638, %v1635
        %v1688 = vpack.c.bf16 %v1646, %v1643
        %v1689 = vpack.c.bf16 %v1678, %v1676
        %v1690 = vpack.c.bf16 %v1682, %v1680
        %1695 = vrot.lane.b32.xlu0 %v1687, 112
        %v1696 = vpop.permute.xlu0 %1695
        %1697 = vrot.lane.b32.xlu0 %v1688, 112
        %v1698 = vpop.permute.xlu0 %1697
        %1699 = vrot.lane.b32.xlu0 %v1689, 112
        %v1700 = vpop.permute.xlu0 %1699
        %1701 = vrot.lane.b32.xlu0 %v1690, 112
        %v1702 = vpop.permute.xlu0 %1701
        %vm1707 = vcmask 523264
        %v1708 = vsel %vm1707, %v1261, 0
        %v1710 = vsel %vm1707, %v1264, 0
        %v1712 = vsel %vm1707, %v1364, 0
        %v1714 = vsel %vm1707, %v1366, 0
        %v1716 = vsel %vm1707, %v1466, 0
        %v1718 = vsel %vm1707, %v1468, 0
        %v1720 = vsel %vm1707, %v1568, 0
        %v1722 = vsel %vm1707, %v1570, 0
        %1724 = vmatprep.subr.bf16.mxu0 0
        %1725 = vmatpush1.bf16.msra.mxu0 %v1696
        %1726 = vmatprep.subr.bf16.mxu0 0
        %1727 = vmatpush1.bf16.msra.mxu0 %v1698
        %1728 = vmatprep.subr.bf16.mxu0 0
        %1729 = vmatpush1.bf16.msra.mxu0 %v1700
        %1730 = vmatprep.subr.bf16.mxu0 0
        %1731 = vmatpush1.bf16.msra.mxu0 %v1702
        %1732 = vmatprep.subr.bf16.mxu0 0
        %1733 = vmatpush1.bf16.msra.mxu0 0
        %1734 = vmatprep.subr.bf16.mxu0 0
        %1735 = vmatpush1.bf16.msra.mxu0 0
        %1736 = vmatprep.subr.bf16.mxu0 0
        %1737 = vmatpush1.bf16.msra.mxu0 0
        %1738 = vmatprep.subr.bf16.mxu0 0
        %1739 = vmatpush1.bf16.msra.mxu0 0
        %1740 = vmatprep.subr.bf16.mxu0 0
        %1741 = vmatpush1.bf16.msra.mxu0 0
        %1742 = vmatprep.subr.bf16.mxu0 0
        %1743 = vmatpush1.bf16.msra.mxu0 0
        %1744 = vmatprep.subr.bf16.mxu0 0
        %1745 = vmatpush1.bf16.msra.mxu0 0
        %1746 = vmatprep.subr.bf16.mxu0 0
        %1747 = vmatpush1.bf16.msra.mxu0 0
        %1748 = vmatprep.subr.bf16.mxu0 0
        %1749 = vmatpush1.bf16.msra.mxu0 0
        %1750 = vmatprep.subr.bf16.mxu0 0
        %1751 = vmatpush1.bf16.msra.mxu0 0
        %1752 = vmatprep.subr.bf16.mxu0 0
        %1753 = vmatpush1.bf16.msra.mxu0 0
        %1754 = vmatprep.subr.bf16.mxu0 0
        %1755 = vmatpush1.bf16.msra.mxu0 0
        %1756 = vmatprep.mubr.bf16.mxu0 0
        %1757 = vmatmul.mubr.bf16.gmra.mrb[0].mxu0 %v1708
        %v1758 = vpop.f32.mrb[0].mxu0
        %v1759 = vadd.f32 0.0, %v1758
        %v1760 = vpop.f32.mrb[0].mxu0
        %v1761 = vpop.f32.mrb[0].mxu0
        %v1762 = vadd.f32 0.0, %v1761
        %v1763 = vpop.f32.mrb[0].mxu0
        %1764 = vmatprep.mubr.bf16.mxu0 0
        %1765 = vmatmul.mubr.bf16.gmra.mrb[0].mxu0 %v1710
        %v1766 = vpop.f32.mrb[0].mxu0
        %v1767 = vadd.f32 0.0, %v1766
        %v1768 = vpop.f32.mrb[0].mxu0
        %v1769 = vpop.f32.mrb[0].mxu0
        %v1770 = vadd.f32 0.0, %v1769
        %v1771 = vpop.f32.mrb[0].mxu0
        %1772 = vmatprep.mubr.bf16.mxu0 0
        %1773 = vmatmul.mubr.bf16.gmra.mrb[0].mxu0 %v1712
        %v1774 = vpop.f32.mrb[0].mxu0
        %v1775 = vadd.f32 0.0, %v1774
        %v1776 = vpop.f32.mrb[0].mxu0
        %v1777 = vpop.f32.mrb[0].mxu0
        %v1778 = vadd.f32 0.0, %v1777
        %v1779 = vpop.f32.mrb[0].mxu0
        %1780 = vmatprep.mubr.bf16.mxu0 0
        %1781 = vmatmul.mubr.bf16.gmra.mrb[0].mxu0 %v1714
        %v1782 = vpop.f32.mrb[0].mxu0
        %v1783 = vadd.f32 0.0, %v1782
        %v1784 = vpop.f32.mrb[0].mxu0
        %v1785 = vpop.f32.mrb[0].mxu0
        %v1786 = vadd.f32 0.0, %v1785
        %v1787 = vpop.f32.mrb[0].mxu0
        %1788 = vmatprep.mubr.bf16.mxu0 0
        %1789 = vmatmul.mubr.bf16.gmra.mrb[0].mxu0 %v1716
        %v1790 = vpop.f32.mrb[0].mxu0
        %v1791 = vadd.f32 0.0, %v1790
        %v1792 = vpop.f32.mrb[0].mxu0
        %v1793 = vpop.f32.mrb[0].mxu0
        %v1794 = vadd.f32 0.0, %v1793
        %v1795 = vpop.f32.mrb[0].mxu0
        %1796 = vmatprep.mubr.bf16.mxu0 0
        %1797 = vmatmul.mubr.bf16.gmra.mrb[0].mxu0 %v1718
        %v1798 = vpop.f32.mrb[0].mxu0
        %v1799 = vadd.f32 0.0, %v1798
        %v1800 = vpop.f32.mrb[0].mxu0
        %v1801 = vpop.f32.mrb[0].mxu0
        %v1802 = vadd.f32 0.0, %v1801
        %v1803 = vpop.f32.mrb[0].mxu0
        %1804 = vmatprep.mubr.bf16.mxu0 0
        %1805 = vmatmul.mubr.bf16.gmra.mrb[0].mxu0 %v1720
        %v1806 = vpop.f32.mrb[0].mxu0
        %v1807 = vadd.f32 0.0, %v1806
        %v1808 = vpop.f32.mrb[0].mxu0
        %v1809 = vpop.f32.mrb[0].mxu0
        %v1810 = vadd.f32 0.0, %v1809
        %v1811 = vpop.f32.mrb[0].mxu0
        %1812 = vmatprep.mubr.bf16.mxu0 0
        %1813 = vmatmul.mubr.bf16.gmra.mrb[0].mxu0 %v1722
        %v1814 = vpop.f32.mrb[0].mxu0
        %v1815 = vadd.f32 0.0, %v1814
        %v1816 = vpop.f32.mrb[0].mxu0
        %v1817 = vpop.f32.mrb[0].mxu0
        %v1818 = vadd.f32 0.0, %v1817
        %v1819 = vpop.f32.mrb[0].mxu0
        %1820 = vdwg.mxu0
        %v1821 = vmax.f32 %v1759, 0.0
        %v1822 = vmax.f32 %v1762, 0.0
        %v1823 = vmax.f32 %v1767, 0.0
        %v1824 = vmax.f32 %v1770, 0.0
        %v1825 = vmax.f32 %v1775, 0.0
        %v1826 = vmax.f32 %v1778, 0.0
        %v1827 = vmax.f32 %v1783, 0.0
        %v1828 = vmax.f32 %v1786, 0.0
        %v1829 = vmax.f32 %v1791, 0.0
        %v1830 = vmax.f32 %v1794, 0.0
        %v1831 = vmax.f32 %v1799, 0.0
        %v1832 = vmax.f32 %v1802, 0.0
        %v1833 = vmax.f32 %v1807, 0.0
        %v1834 = vmax.f32 %v1810, 0.0
        %v1835 = vmax.f32 %v1815, 0.0
        %v1836 = vmax.f32 %v1818, 0.0
        %v1837 = vpack.c.bf16 %v1822, %v1821
        %v1838 = vpack.c.bf16 %v1824, %v1823
        %v1839 = vpack.c.bf16 %v1826, %v1825
        %v1840 = vpack.c.bf16 %v1828, %v1827
        %v1841 = vpack.c.bf16 %v1830, %v1829
        %v1842 = vpack.c.bf16 %v1832, %v1831
        %v1843 = vpack.c.bf16 %v1834, %v1833
        %v1844 = vpack.c.bf16 %v1836, %v1835
        %v1846 = vlaneseq
        %v1847 = vshrl.u32 %v1846, 7
        %v1848 = vsub.s32 0, %v1847
        %v1849 = vrot.slane %v966, %v1848
        %v1853 = vunpack.c.l.b16 %v964
        %v1854 = vunpack.c.l.b16 %v965
        %v1855 = vpack.c.b16 %v1854, %v1853
        %v1858 = vsel %vm1595, %v1837, 0
        %v1861 = vsel %vm1595, %v1838, 0
        %v1864 = vsel %vm1595, %v1839, 0
        %v1867 = vsel %vm1595, %v1840, 0
        %v1870 = vsel %vm1595, %v1841, 0
        %v1873 = vsel %vm1595, %v1842, 0
        %v1876 = vsel %vm1595, %v1843, 0
        %v1879 = vsel %vm1595, %v1844, 0
        %1881 = vmatprep.subr.bf16.mxu0 0
        %1882 = vmatpush1.bf16.msra.mxu0 %v1855
        %1883 = vmatprep.subr.bf16.mxu0 0
        %1884 = vmatpush1.bf16.msra.mxu0 0
        %1885 = vmatprep.subr.bf16.mxu0 0
        %1886 = vmatpush1.bf16.msra.mxu0 0
        %1887 = vmatprep.subr.bf16.mxu0 0
        %1888 = vmatpush1.bf16.msra.mxu0 0
        %1889 = vmatprep.subr.bf16.mxu0 0
        %1890 = vmatpush1.bf16.msra.mxu0 0
        %1891 = vmatprep.subr.bf16.mxu0 0
        %1892 = vmatpush1.bf16.msra.mxu0 0
        %1893 = vmatprep.subr.bf16.mxu0 0
        %1894 = vmatpush1.bf16.msra.mxu0 0
        %1895 = vmatprep.subr.bf16.mxu0 0
        %1896 = vmatpush1.bf16.msra.mxu0 0
        %1897 = vmatprep.subr.bf16.mxu0 0
        %1898 = vmatpush1.bf16.msra.mxu0 0
        %1899 = vmatprep.subr.bf16.mxu0 0
        %1900 = vmatpush1.bf16.msra.mxu0 0
        %1901 = vmatprep.subr.bf16.mxu0 0
        %1902 = vmatpush1.bf16.msra.mxu0 0
        %1903 = vmatprep.subr.bf16.mxu0 0
        %1904 = vmatpush1.bf16.msra.mxu0 0
        %1905 = vmatprep.subr.bf16.mxu0 0
        %1906 = vmatpush1.bf16.msra.mxu0 0
        %1907 = vmatprep.subr.bf16.mxu0 0
        %1908 = vmatpush1.bf16.msra.mxu0 0
        %1909 = vmatprep.subr.bf16.mxu0 0
        %1910 = vmatpush1.bf16.msra.mxu0 0
        %1911 = vmatprep.subr.bf16.mxu0 0
        %1912 = vmatpush1.bf16.msra.mxu0 0
        %1913 = vmatprep.mubr.bf16.mxu0 0
        %1914 = vmatmul.mubr.bf16.gmra.mrb[0].mxu0 %v1858
        %v1915 = vpop.f32.mrb[0].mxu0
        %v1916 = vadd.f32 %v1849, %v1915
        %v1917 = vpop.f32.mrb[0].mxu0
        %v1918 = vpop.f32.mrb[0].mxu0
        %v1919 = vadd.f32 %v1849, %v1918
        %v1920 = vpop.f32.mrb[0].mxu0
        %1921 = vmatprep.mubr.bf16.mxu0 0
        %1922 = vmatmul.mubr.bf16.gmra.mrb[0].mxu0 %v1861
        %v1923 = vpop.f32.mrb[0].mxu0
        %v1924 = vadd.f32 %v1849, %v1923
        %v1925 = vpop.f32.mrb[0].mxu0
        %v1926 = vpop.f32.mrb[0].mxu0
        %v1927 = vadd.f32 %v1849, %v1926
        %v1928 = vpop.f32.mrb[0].mxu0
        %1929 = vmatprep.mubr.bf16.mxu0 0
        %1930 = vmatmul.mubr.bf16.gmra.mrb[0].mxu0 %v1864
        %v1931 = vpop.f32.mrb[0].mxu0
        %v1932 = vadd.f32 %v1849, %v1931
        %v1933 = vpop.f32.mrb[0].mxu0
        %v1934 = vpop.f32.mrb[0].mxu0
        %v1935 = vadd.f32 %v1849, %v1934
        %v1936 = vpop.f32.mrb[0].mxu0
        %1937 = vmatprep.mubr.bf16.mxu0 0
        %1938 = vmatmul.mubr.bf16.gmra.mrb[0].mxu0 %v1867
        %v1939 = vpop.f32.mrb[0].mxu0
        %v1940 = vadd.f32 %v1849, %v1939
        %v1941 = vpop.f32.mrb[0].mxu0
        %v1942 = vpop.f32.mrb[0].mxu0
        %v1943 = vadd.f32 %v1849, %v1942
        %v1944 = vpop.f32.mrb[0].mxu0
        %1945 = vmatprep.mubr.bf16.mxu0 0
        %1946 = vmatmul.mubr.bf16.gmra.mrb[0].mxu0 %v1870
        %v1947 = vpop.f32.mrb[0].mxu0
        %v1948 = vadd.f32 %v1849, %v1947
        %v1949 = vpop.f32.mrb[0].mxu0
        %v1950 = vpop.f32.mrb[0].mxu0
        %v1951 = vadd.f32 %v1849, %v1950
        %v1952 = vpop.f32.mrb[0].mxu0
        %1953 = vmatprep.mubr.bf16.mxu0 0
        %1954 = vmatmul.mubr.bf16.gmra.mrb[0].mxu0 %v1873
        %v1955 = vpop.f32.mrb[0].mxu0
        %v1956 = vadd.f32 %v1849, %v1955
        %v1957 = vpop.f32.mrb[0].mxu0
        %v1958 = vpop.f32.mrb[0].mxu0
        %v1959 = vadd.f32 %v1849, %v1958
        %v1960 = vpop.f32.mrb[0].mxu0
        %1961 = vmatprep.mubr.bf16.mxu0 0
        %1962 = vmatmul.mubr.bf16.gmra.mrb[0].mxu0 %v1876
        %v1963 = vpop.f32.mrb[0].mxu0
        %v1964 = vadd.f32 %v1849, %v1963
        %v1965 = vpop.f32.mrb[0].mxu0
        %v1966 = vpop.f32.mrb[0].mxu0
        %v1967 = vadd.f32 %v1849, %v1966
        %v1968 = vpop.f32.mrb[0].mxu0
        %1969 = vmatprep.mubr.bf16.mxu0 0
        %1970 = vmatmul.mubr.bf16.gmra.mrb[0].mxu0 %v1879
        %v1971 = vpop.f32.mrb[0].mxu0
        %v1972 = vadd.f32 %v1849, %v1971
        %v1973 = vpop.f32.mrb[0].mxu0
        %v1974 = vpop.f32.mrb[0].mxu0
        %v1975 = vadd.f32 %v1849, %v1974
        %v1976 = vpop.f32.mrb[0].mxu0
        %1977 = vdwg.mxu0
        %v1978 = vmax.f32 %v1916, 0.0
        %v1979 = vmax.f32 %v1919, 0.0
        %v1980 = vmax.f32 %v1924, 0.0
        %v1981 = vmax.f32 %v1927, 0.0
        %v1982 = vmax.f32 %v1932, 0.0
        %v1983 = vmax.f32 %v1935, 0.0
        %v1984 = vmax.f32 %v1940, 0.0
        %v1985 = vmax.f32 %v1943, 0.0
        %v1986 = vmax.f32 %v1948, 0.0
        %v1987 = vmax.f32 %v1951, 0.0
        %v1988 = vmax.f32 %v1956, 0.0
        %v1989 = vmax.f32 %v1959, 0.0
        %v1990 = vmax.f32 %v1964, 0.0
        %v1991 = vmax.f32 %v1967, 0.0
        %v1992 = vmax.f32 %v1972, 0.0
        %v1993 = vmax.f32 %v1975, 0.0
        %v1994 = vpack.c.bf16 %v1979, %v1978
        %v1995 = vpack.c.bf16 %v1981, %v1980
        %v1996 = vpack.c.bf16 %v1983, %v1982
        %v1997 = vpack.c.bf16 %v1985, %v1984
        %v1998 = vpack.c.bf16 %v1987, %v1986
        %v1999 = vpack.c.bf16 %v1989, %v1988
        %v2000 = vpack.c.bf16 %v1991, %v1990
        %v2001 = vpack.c.bf16 %v1993, %v1992
        %v2003 = vlaneseq
        %v2004 = vshrl.u32 %v2003, 7
        %v2005 = vsub.s32 0, %v2004
        %v2006 = vrot.slane %v969, %v2005
        %v2010 = vunpack.c.l.b16 %v967
        %v2011 = vunpack.c.l.b16 %v968
        %v2012 = vpack.c.b16 %v2011, %v2010
        %v2015 = vsel %vm1595, %v1994, 0
        %v2018 = vsel %vm1595, %v1995, 0
        %v2021 = vsel %vm1595, %v1996, 0
        %v2024 = vsel %vm1595, %v1997, 0
        %v2027 = vsel %vm1595, %v1998, 0
        %v2030 = vsel %vm1595, %v1999, 0
        %v2033 = vsel %vm1595, %v2000, 0
        %v2036 = vsel %vm1595, %v2001, 0
        %2038 = vmatprep.subr.bf16.mxu0 0
        %2039 = vmatpush1.bf16.msra.mxu0 %v2012
        %2040 = vmatprep.subr.bf16.mxu0 0
        %2041 = vmatpush1.bf16.msra.mxu0 0
        %2042 = vmatprep.subr.bf16.mxu0 0
        %2043 = vmatpush1.bf16.msra.mxu0 0
        %2044 = vmatprep.subr.bf16.mxu0 0
        %2045 = vmatpush1.bf16.msra.mxu0 0
        %2046 = vmatprep.subr.bf16.mxu0 0
        %2047 = vmatpush1.bf16.msra.mxu0 0
        %2048 = vmatprep.subr.bf16.mxu0 0
        %2049 = vmatpush1.bf16.msra.mxu0 0
        %2050 = vmatprep.subr.bf16.mxu0 0
        %2051 = vmatpush1.bf16.msra.mxu0 0
        %2052 = vmatprep.subr.bf16.mxu0 0
        %2053 = vmatpush1.bf16.msra.mxu0 0
        %2054 = vmatprep.subr.bf16.mxu0 0
        %2055 = vmatpush1.bf16.msra.mxu0 0
        %2056 = vmatprep.subr.bf16.mxu0 0
        %2057 = vmatpush1.bf16.msra.mxu0 0
        %2058 = vmatprep.subr.bf16.mxu0 0
        %2059 = vmatpush1.bf16.msra.mxu0 0
        %2060 = vmatprep.subr.bf16.mxu0 0
        %2061 = vmatpush1.bf16.msra.mxu0 0
        %2062 = vmatprep.subr.bf16.mxu0 0
        %2063 = vmatpush1.bf16.msra.mxu0 0
        %2064 = vmatprep.subr.bf16.mxu0 0
        %2065 = vmatpush1.bf16.msra.mxu0 0
        %2066 = vmatprep.subr.bf16.mxu0 0
        %2067 = vmatpush1.bf16.msra.mxu0 0
        %2068 = vmatprep.subr.bf16.mxu0 0
        %2069 = vmatpush1.bf16.msra.mxu0 0
        %2070 = vmatprep.mubr.bf16.mxu0 0
        %2071 = vmatmul.mubr.bf16.gmra.mrb[0].mxu0 %v2015
        %v2072 = vpop.f32.mrb[0].mxu0
        %v2073 = vadd.f32 %v2006, %v2072
        %v2074 = vpop.f32.mrb[0].mxu0
        %v2075 = vpop.f32.mrb[0].mxu0
        %v2076 = vadd.f32 %v2006, %v2075
        %v2077 = vpop.f32.mrb[0].mxu0
        %2078 = vmatprep.mubr.bf16.mxu0 0
        %2079 = vmatmul.mubr.bf16.gmra.mrb[0].mxu0 %v2018
        %v2080 = vpop.f32.mrb[0].mxu0
        %v2081 = vadd.f32 %v2006, %v2080
        %v2082 = vpop.f32.mrb[0].mxu0
        %v2083 = vpop.f32.mrb[0].mxu0
        %v2084 = vadd.f32 %v2006, %v2083
        %v2085 = vpop.f32.mrb[0].mxu0
        %2086 = vmatprep.mubr.bf16.mxu0 0
        %2087 = vmatmul.mubr.bf16.gmra.mrb[0].mxu0 %v2021
        %v2088 = vpop.f32.mrb[0].mxu0
        %v2089 = vadd.f32 %v2006, %v2088
        %v2090 = vpop.f32.mrb[0].mxu0
        %v2091 = vpop.f32.mrb[0].mxu0
        %v2092 = vadd.f32 %v2006, %v2091
        %v2093 = vpop.f32.mrb[0].mxu0
        %2094 = vmatprep.mubr.bf16.mxu0 0
        %2095 = vmatmul.mubr.bf16.gmra.mrb[0].mxu0 %v2024
        %v2096 = vpop.f32.mrb[0].mxu0
        %v2097 = vadd.f32 %v2006, %v2096
        %v2098 = vpop.f32.mrb[0].mxu0
        %v2099 = vpop.f32.mrb[0].mxu0
        %v2100 = vadd.f32 %v2006, %v2099
        %v2101 = vpop.f32.mrb[0].mxu0
        %2102 = vmatprep.mubr.bf16.mxu0 0
        %2103 = vmatmul.mubr.bf16.gmra.mrb[0].mxu0 %v2027
        %v2104 = vpop.f32.mrb[0].mxu0
        %v2105 = vadd.f32 %v2006, %v2104
        %v2106 = vpop.f32.mrb[0].mxu0
        %v2107 = vpop.f32.mrb[0].mxu0
        %v2108 = vadd.f32 %v2006, %v2107
        %v2109 = vpop.f32.mrb[0].mxu0
        %2110 = vmatprep.mubr.bf16.mxu0 0
        %2111 = vmatmul.mubr.bf16.gmra.mrb[0].mxu0 %v2030
        %v2112 = vpop.f32.mrb[0].mxu0
        %v2113 = vadd.f32 %v2006, %v2112
        %v2114 = vpop.f32.mrb[0].mxu0
        %v2115 = vpop.f32.mrb[0].mxu0
        %v2116 = vadd.f32 %v2006, %v2115
        %v2117 = vpop.f32.mrb[0].mxu0
        %2118 = vmatprep.mubr.bf16.mxu0 0
        %2119 = vmatmul.mubr.bf16.gmra.mrb[0].mxu0 %v2033
        %v2120 = vpop.f32.mrb[0].mxu0
        %v2121 = vadd.f32 %v2006, %v2120
        %v2122 = vpop.f32.mrb[0].mxu0
        %v2123 = vpop.f32.mrb[0].mxu0
        %v2124 = vadd.f32 %v2006, %v2123
        %v2125 = vpop.f32.mrb[0].mxu0
        %2126 = vmatprep.mubr.bf16.mxu0 0
        %2127 = vmatmul.mubr.bf16.gmra.mrb[0].mxu0 %v2036
        %v2128 = vpop.f32.mrb[0].mxu0
        %v2129 = vadd.f32 %v2006, %v2128
        %v2130 = vpop.f32.mrb[0].mxu0
        %v2131 = vpop.f32.mrb[0].mxu0
        %v2132 = vadd.f32 %v2006, %v2131
        %v2133 = vpop.f32.mrb[0].mxu0
        %2134 = vdwg.mxu0
        %v2135 = vmax.f32 %v2073, 0.0
        %v2136 = vmax.f32 %v2076, 0.0
        %v2137 = vmax.f32 %v2081, 0.0
        %v2138 = vmax.f32 %v2084, 0.0
        %v2139 = vmax.f32 %v2089, 0.0
        %v2140 = vmax.f32 %v2092, 0.0
        %v2141 = vmax.f32 %v2097, 0.0
        %v2142 = vmax.f32 %v2100, 0.0
        %v2143 = vmax.f32 %v2105, 0.0
        %v2144 = vmax.f32 %v2108, 0.0
        %v2145 = vmax.f32 %v2113, 0.0
        %v2146 = vmax.f32 %v2116, 0.0
        %v2147 = vmax.f32 %v2121, 0.0
        %v2148 = vmax.f32 %v2124, 0.0
        %v2149 = vmax.f32 %v2129, 0.0
        %v2150 = vmax.f32 %v2132, 0.0
        %v2151 = vmax.f32 %v2135, %v2139
        %v2152 = vmax.f32 %v2136, %v2140
        %v2153 = vmax.f32 %v2137, %v2141
        %v2154 = vmax.f32 %v2138, %v2142
        %v2155 = vmax.f32 %v2151, %v2143
        %v2156 = vmax.f32 %v2152, %v2144
        %v2157 = vmax.f32 %v2153, %v2145
        %v2158 = vmax.f32 %v2154, %v2146
        %v2159 = vmax.f32 %v2155, %v2147
        %v2160 = vmax.f32 %v2156, %v2148
        %v2161 = vmax.f32 %v2157, %v2149
        %v2162 = vmax.f32 %v2158, %v2150
        %2167 = vrot.lane.b32.xlu0 %v1667, 96
        %v2168 = vpop.permute.xlu0 %2167
        %2169 = vrot.lane.b32.xlu0 %v1668, 96
        %v2170 = vpop.permute.xlu0 %2169
        %2171 = vrot.lane.b32.xlu0 %v1669, 96
        %v2172 = vpop.permute.xlu0 %2171
        %2173 = vrot.lane.b32.xlu0 %v1670, 96
        %v2174 = vpop.permute.xlu0 %2173
        %v2179 = vadd.f32 %v2159, %v2168
        %v2180 = vadd.f32 %v2160, %v2170
        %v2181 = vadd.f32 %v2161, %v2172
        %v2182 = vadd.f32 %v2162, %v2174
        %v2183 = vmax.f32 %v2179, 0.0
        %v2184 = vmax.f32 %v2180, 0.0
        %v2185 = vmax.f32 %v2181, 0.0
        %v2186 = vmax.f32 %v2182, 0.0
        %v2187 = vsel %vm1595, %v2183, 0.0
        %v2188 = vsel %vm1595, %v2184, 0.0
        %v2189 = vadd.f32 %v2187, %v2188
        %v2190 = vsel %vm1595, %v2185, 0.0
        %v2191 = vadd.f32 %v2189, %v2190
        %v2192 = vsel %vm1595, %v2186, 0.0
        %v2193 = vadd.f32 %v2191, %v2192
        %v2194 = vrot.slane %v2193, 4
        %v2195 = vadd.f32 %v2193, %v2194
        %v2196 = vrot.slane %v2195, 2
        %v2197 = vadd.f32 %v2195, %v2196
        %v2198 = vrot.slane %v2197, 1
        %v2199 = vadd.f32 %v2197, %v2198
        %v2200 = vmul.f32 %v2199, %v910
        %2202 = vrot.lane.b32.xlu0 %v2200, 8
        %v2203 = vpop.permute.xlu0 %2202
        %v2205 = vsel %vm896, %v960, %v2203
        %v2206 = vpack.c.bf16 %v2205, %v2205
        %v2210 = vunpack.c.l.b16 %v971
        %v2211 = vunpack.c.l.b16 %v972
        %v2212 = vunpack.c.l.b16 %v973
        %v2213 = vpack.c.b16 %v2211, %v2210
        %v2214 = vpack.c.b16 %v2212, %v2212
        %vm2216 = vcmask 195584
        %v2218 = vsel %vm2216, %v2206, 0
        %v2221 = vsel %vm916, %v2214, 0
        %2223 = vmatprep.subr.bf16.mxu0 0
        %2224 = vmatpush1.bf16.msra.mxu0 %v2213
        %2225 = vmatprep.subr.bf16.mxu0 0
        %2226 = vmatpush1.bf16.msra.mxu0 %v2221
        %2227 = vmatprep.subr.bf16.mxu0 0
        %2228 = vmatpush1.bf16.msra.mxu0 0
        %2229 = vmatprep.subr.bf16.mxu0 0
        %2230 = vmatpush1.bf16.msra.mxu0 0
        %2231 = vmatprep.subr.bf16.mxu0 0
        %2232 = vmatpush1.bf16.msra.mxu0 0
        %2233 = vmatprep.subr.bf16.mxu0 0
        %2234 = vmatpush1.bf16.msra.mxu0 0
        %2235 = vmatprep.subr.bf16.mxu0 0
        %2236 = vmatpush1.bf16.msra.mxu0 0
        %2237 = vmatprep.subr.bf16.mxu0 0
        %2238 = vmatpush1.bf16.msra.mxu0 0
        %2239 = vmatprep.subr.bf16.mxu0 0
        %2240 = vmatpush1.bf16.msra.mxu0 0
        %2241 = vmatprep.subr.bf16.mxu0 0
        %2242 = vmatpush1.bf16.msra.mxu0 0
        %2243 = vmatprep.subr.bf16.mxu0 0
        %2244 = vmatpush1.bf16.msra.mxu0 0
        %2245 = vmatprep.subr.bf16.mxu0 0
        %2246 = vmatpush1.bf16.msra.mxu0 0
        %2247 = vmatprep.subr.bf16.mxu0 0
        %2248 = vmatpush1.bf16.msra.mxu0 0
        %2249 = vmatprep.subr.bf16.mxu0 0
        %2250 = vmatpush1.bf16.msra.mxu0 0
        %2251 = vmatprep.subr.bf16.mxu0 0
        %2252 = vmatpush1.bf16.msra.mxu0 0
        %2253 = vmatprep.subr.bf16.mxu0 0
        %2254 = vmatpush1.bf16.msra.mxu0 0
        %2255 = vmatprep.mubr.bf16.mxu0 0
        %2256 = vmatmul.mubr.bf16.gmra.mrb[0].mxu0 %v2218
        %v2257 = vpop.f32.mrb[0].mxu0
        %v2258 = vadd.f32 %v974, %v2257
        %v2259 = vpop.f32.mrb[0].mxu0
        %v2260 = vpop.f32.mrb[0].mxu0
        %v2261 = vpop.f32.mrb[0].mxu0
        %2262 = vdwg.mxu0
        %v2263 = vmax.f32 %v2258, 0.0
        %v2264 = vld [vmem:[%s15] sm:$0xf]
        %v2265 = vld [vmem:[%s15 + $0x4] sm:$0xf]
        %v2266 = vld [vmem:[%s15 + $0x8] sm:$0xf]
        %v2267 = vld [vmem:[%s15 + $0xc] sm:$0xf]
        %v2268 = vld [vmem:[%s16] sm:$0x1]
        %v2269 = vld [vmem:[%s17] sm:$0xf]
        %v2270 = vld [vmem:[%s17 + $0x4] sm:$0xf]
        %v2271 = vld [vmem:[%s17 + $0x8] sm:$0xf]
        %v2272 = vld [vmem:[%s17 + $0xc] sm:$0xf]
        %v2273 = vld [vmem:[%s18] sm:$0x1]
        %v2274 = vld [vmem:[%s19] sm:$0xf]
        %v2275 = vld [vmem:[%s19 + $0x4] sm:$0xf]
        %v2276 = vld [vmem:[%s19 + $0x8] sm:$0xf]
        %v2277 = vld [vmem:[%s19 + $0xc] sm:$0xf]
        %v2278 = vld [vmem:[%s20] sm:$0x1]
        %v2279 = vld [vmem:[%s21] sm:$0x1]
        %v2280 = vld [vmem:[%s22] sm:$0xf]
        %v2281 = vld [vmem:[%s22 + $0x4] sm:$0xf]
        %v2282 = vld [vmem:[%s22 + $0x8] sm:$0xf]
        %v2283 = vld [vmem:[%s22 + $0xc] sm:$0xf]
        %v2284 = vld [vmem:[%s22 + $0x10] sm:$0xf]
        %v2285 = vld [vmem:[%s22 + $0x14] sm:$0xf]
        %v2286 = vld [vmem:[%s23] sm:$0x1]
        %v2288 = vsel %vm1595, %v2183, 0
        %v2291 = vsel %vm1595, %v2184, 0
        %v2294 = vsel %vm1595, %v2185, 0
        %v2297 = vsel %vm1595, %v2186, 0
        %2299 = vmatprep.subr.mxu0 0.0
        %2300 = vmatpush1.xpose.msra.mxu0 %v2288
        %2301 = vmatprep.subr.mxu0 0.0
        %2302 = vmatpush1.xpose.msra.mxu0 %v2291
        %2303 = vmatprep.subr.mxu0 0.0
        %2304 = vmatpush1.xpose.msra.mxu0 %v2294
        %2305 = vmatprep.subr.mxu0 0.0
        %2306 = vmatpush1.xpose.msra.mxu0 %v2297
        %2307 = vmatprep.subr.mxu0 0.0
        %2308 = vmatpush1.xpose.msra.mxu0 0.0
        %2309 = vmatprep.subr.mxu0 0.0
        %2310 = vmatpush1.xpose.msra.mxu0 0.0
        %2311 = vmatprep.subr.mxu0 0.0
        %2312 = vmatpush1.xpose.msra.mxu0 0.0
        %2313 = vmatprep.subr.mxu0 0.0
        %2314 = vmatpush1.xpose.msra.mxu0 0.0
        %2315 = vmatprep.subr.mxu0 0.0
        %2316 = vmatpush1.xpose.msra.mxu0 0.0
        %2317 = vmatprep.subr.mxu0 0.0
        %2318 = vmatpush1.xpose.msra.mxu0 0.0
        %2319 = vmatprep.subr.mxu0 0.0
        %2320 = vmatpush1.xpose.msra.mxu0 0.0
        %2321 = vmatprep.subr.mxu0 0.0
        %2322 = vmatpush1.xpose.msra.mxu0 0.0
        %2323 = vmatprep.subr.mxu0 0.0
        %2324 = vmatpush1.xpose.msra.mxu0 0.0
        %2325 = vmatprep.subr.mxu0 0.0
        %2326 = vmatpush1.xpose.msra.mxu0 0.0
        %2327 = vmatprep.subr.mxu0 0.0
        %2328 = vmatpush1.xpose.msra.mxu0 0.0
        %2329 = vmatprep.subr.mxu0 0.0
        %2330 = vmatpush1.xpose.msra.mxu0 0.0
        %2331 = vmatprep.subr.mxu0 0.0
        %2332 = vmatpush1.xpose.msra.mxu0 0.0
        %2333 = vmatprep.subr.mxu0 0.0
        %2334 = vmatpush1.xpose.msra.mxu0 0.0
        %2335 = vmatprep.subr.mxu0 0.0
        %2336 = vmatpush1.xpose.msra.mxu0 0.0
        %2337 = vmatprep.subr.mxu0 0.0
        %2338 = vmatpush1.xpose.msra.mxu0 0.0
        %2339 = vmatprep.subr.mxu0 0.0
        %2340 = vmatpush1.xpose.msra.mxu0 0.0
        %2341 = vmatprep.subr.mxu0 0.0
        %2342 = vmatpush1.xpose.msra.mxu0 0.0
        %2343 = vmatprep.subr.mxu0 0.0
        %2344 = vmatpush1.xpose.msra.mxu0 0.0
        %2345 = vmatprep.subr.mxu0 0.0
        %2346 = vmatpush1.xpose.msra.mxu0 0.0
        %2347 = vmatprep.subr.mxu0 0.0
        %2348 = vmatpush1.xpose.msra.mxu0 0.0
        %2349 = vmatprep.subr.mxu0 0.0
        %2350 = vmatpush1.xpose.msra.mxu0 0.0
        %2351 = vmatprep.subr.mxu0 0.0
        %2352 = vmatpush1.xpose.msra.mxu0 0.0
        %2353 = vmatprep.subr.mxu0 0.0
        %2354 = vmatpush1.xpose.msra.mxu0 0.0
        %2355 = vmatprep.subr.mxu0 0.0
        %2356 = vmatpush1.xpose.msra.mxu0 0.0
        %2357 = vmatprep.subr.mxu0 0.0
        %2358 = vmatpush1.xpose.msra.mxu0 0.0
        %2359 = vmatprep.subr.mxu0 0.0
        %2360 = vmatpush1.xpose.msra.mxu0 0.0
        %2361 = vmatprep.subr.mxu0 0.0
        %2362 = vmatpush1.xpose.msra.mxu0 0.0
        %2363 = vmatprep.mubr.f32.mxu0 0.0
        %2364 = vmatmul.mubr.f32.gmra.mrb[0].mxu0 %v2288
        %v2365 = vpop.f32.mrb[0].mxu0
        %v2366 = vadd.f32 0.0, %v2365
        %v2367 = vpop.f32.mrb[0].mxu0
        %2368 = vmatprep.mubr.f32.mxu0 0.0
        %2369 = vmatmul.mubr.f32.gmra.mrb[0].mxu0 %v2291
        %v2370 = vpop.f32.mrb[0].mxu0
        %v2371 = vadd.f32 0.0, %v2370
        %v2372 = vpop.f32.mrb[0].mxu0
        %2373 = vmatprep.mubr.f32.mxu0 0.0
        %2374 = vmatmul.mubr.f32.gmra.mrb[0].mxu0 %v2294
        %v2375 = vpop.f32.mrb[0].mxu0
        %v2376 = vadd.f32 0.0, %v2375
        %v2377 = vpop.f32.mrb[0].mxu0
        %2378 = vmatprep.mubr.f32.mxu0 0.0
        %2379 = vmatmul.mubr.f32.gmra.mrb[0].mxu0 %v2297
        %v2380 = vpop.f32.mrb[0].mxu0
        %v2381 = vadd.f32 0.0, %v2380
        %v2382 = vpop.f32.mrb[0].mxu0
        %2383 = vdwg.mxu0
        %v2384 = vmul.f32 %v2183, %v2183
        %v2385 = vmul.f32 %v2184, %v2184
        %v2386 = vmul.f32 %v2185, %v2185
        %v2387 = vmul.f32 %v2186, %v2186
        %v2388 = vsel %vm1595, %v2384, 0.0
        %2389 = vadd.xlane.f32.xlu0 %v2388
        %v2390 = vpop.xlane.xlu0 %2389
        %v2391 = vsel %vm1595, %v2385, 0.0
        %2392 = vadd.xlane.f32.xlu0 %v2391
        %v2393 = vpop.xlane.xlu0 %2392
        %v2394 = vsel %vm1595, %v2386, 0.0
        %2395 = vadd.xlane.f32.xlu0 %v2394
        %v2396 = vpop.xlane.xlu0 %2395
        %v2397 = vsel %vm1595, %v2387, 0.0
        %2398 = vadd.xlane.f32.xlu0 %v2397
        %v2399 = vpop.xlane.xlu0 %2398
        %2400 = vxpose.xlu0.b32.start [1/16] %v2390, 128
        %2401 = vxpose.xlu0.b32.cont [2/16] %v2393, 128
        %2402 = vxpose.xlu0.b32.cont [3/16] %v2396, 128
        %2403 = vxpose.xlu0.b32.cont [4/16] %v2399, 128
        %2404 = vxpose.xlu0.b32.cont [5/16] 0.0, 128
        %2405 = vxpose.xlu0.b32.cont [6/16] 0.0, 128
        %2406 = vxpose.xlu0.b32.cont [7/16] 0.0, 128
        %2407 = vxpose.xlu0.b32.cont [8/16] 0.0, 128
        %2408 = vxpose.xlu0.b32.cont [9/16] 0.0, 128
        %2409 = vxpose.xlu0.b32.cont [10/16] 0.0, 128
        %2410 = vxpose.xlu0.b32.cont [11/16] 0.0, 128
        %2411 = vxpose.xlu0.b32.cont [12/16] 0.0, 128
        %2412 = vxpose.xlu0.b32.cont [13/16] 0.0, 128
        %2413 = vxpose.xlu0.b32.cont [14/16] 0.0, 128
        %2414 = vxpose.xlu0.b32.cont [15/16] 0.0, 128
        %2415 = vxpose.xlu0.b32.end [16/16] 0.0, 128
        %v2416 = vpop.trf.xlu0
        %v2417 = vpop.trf.xlu0
        %v2418 = vpop.trf.xlu0
        %v2419 = vpop.trf.xlu0
        %v2420 = vpop.trf.xlu0
        %v2421 = vpop.trf.xlu0
        %v2422 = vpop.trf.xlu0
        %v2423 = vpop.trf.xlu0
        %v2424 = vpop.trf.xlu0
        %v2425 = vpop.trf.xlu0
        %v2426 = vpop.trf.xlu0
        %v2427 = vpop.trf.xlu0
        %v2428 = vpop.trf.xlu0
        %v2429 = vpop.trf.xlu0
        %v2430 = vpop.trf.xlu0
        %v2431 = vpop.trf.xlu0
        %v2432 = vmul.f32 %v2366, 2.0
        %v2433 = vmul.f32 %v2371, 2.0
        %v2434 = vmul.f32 %v2376, 2.0
        %v2435 = vmul.f32 %v2381, 2.0
        %v2436 = vlaneseq
        %v2437 = vshrl.u32 %v2436, 7
        %v2438 = vsub.s32 0, %v2437
        %v2439 = vrot.slane %v2416, %v2438
        %v2440 = vsub.f32 %v2439, %v2432
        %v2441 = vsub.f32 %v2439, %v2433
        %v2442 = vsub.f32 %v2439, %v2434
        %v2443 = vsub.f32 %v2439, %v2435
        %v2444 = vsel %vm1140, inf, %v2440
        %v2445 = vsel %vm1141, inf, %v2441
        %v2446 = vsel %vm1142, inf, %v2442
        %v2447 = vsel %vm1143, inf, %v2443
        %v2448 = vsel %vm1158, %v2444, inf
        %2449 = vmin.xlane.f32.xlu0 %v2448
        %v2450 = vpop.xlane.xlu0 %2449
        %v2451 = vsel %vm1158, %v2445, inf
        %2452 = vmin.xlane.f32.xlu0 %v2451
        %v2453 = vpop.xlane.xlu0 %2452
        %v2454 = vsel %vm1158, %v2446, inf
        %2455 = vmin.xlane.f32.xlu0 %v2454
        %v2456 = vpop.xlane.xlu0 %2455
        %v2457 = vsel %vm1158, %v2447, inf
        %2458 = vmin.xlane.f32.xlu0 %v2457
        %v2459 = vpop.xlane.xlu0 %2458
        %vm2460 = vcmp.le.f32.partialorder %v2444, %v2450
        %vm2461 = vcmp.le.f32.partialorder %v2445, %v2453
        %vm2462 = vcmp.le.f32.partialorder %v2446, %v2456
        %vm2463 = vcmp.le.f32.partialorder %v2447, %v2459
        %v2464 = vsel %vm2460, %v1139, 32
        %v2465 = vsel %vm2461, %v1139, 32
        %v2466 = vsel %vm2462, %v1139, 32
        %v2467 = vsel %vm2463, %v1139, 32
        %v2468 = vsel %vm1158, %v2464, 2147483647
        %v2469 = vand.u32 %v2468, 65535
        %v2470 = vshra.s32 %v2468, 16
        %v2471 = vcvt.s32.f32 %v2469
        %v2472 = vcvt.s32.f32 %v2470
        %2473 = vmin.xlane.f32.xlu0 %v2472
        %v2474 = vpop.xlane.xlu0 %2473
        %vm2475 = vcmp.eq.f32.partialorder %v2472, %v2474
        %v2476 = vsel %vm2475, %v2471, inf
        %2477 = vmin.xlane.f32.xlu0 %v2476
        %v2478 = vpop.xlane.xlu0 %2477
        %v2479 = vcvt.f32.s32 %v2478
        %v2480 = vcvt.f32.s32 %v2474
        %v2481 = vshll.u32 %v2480, 16
        %v2482 = vadd.s32 %v2481, %v2479
        %v2483 = vsel %vm1158, %v2465, 2147483647
        %v2484 = vand.u32 %v2483, 65535
        %v2485 = vshra.s32 %v2483, 16
        %v2486 = vcvt.s32.f32 %v2484
        %v2487 = vcvt.s32.f32 %v2485
        %2488 = vmin.xlane.f32.xlu0 %v2487
        %v2489 = vpop.xlane.xlu0 %2488
        %vm2490 = vcmp.eq.f32.partialorder %v2487, %v2489
        %v2491 = vsel %vm2490, %v2486, inf
        %2492 = vmin.xlane.f32.xlu0 %v2491
        %v2493 = vpop.xlane.xlu0 %2492
        %v2494 = vcvt.f32.s32 %v2493
        %v2495 = vcvt.f32.s32 %v2489
        %v2496 = vshll.u32 %v2495, 16
        %v2497 = vadd.s32 %v2496, %v2494
        %v2498 = vsel %vm1158, %v2466, 2147483647
        %v2499 = vand.u32 %v2498, 65535
        %v2500 = vshra.s32 %v2498, 16
        %v2501 = vcvt.s32.f32 %v2499
        %v2502 = vcvt.s32.f32 %v2500
        %2503 = vmin.xlane.f32.xlu0 %v2502
        %v2504 = vpop.xlane.xlu0 %2503
        %vm2505 = vcmp.eq.f32.partialorder %v2502, %v2504
        %v2506 = vsel %vm2505, %v2501, inf
        %2507 = vmin.xlane.f32.xlu0 %v2506
        %v2508 = vpop.xlane.xlu0 %2507
        %v2509 = vcvt.f32.s32 %v2508
        %v2510 = vcvt.f32.s32 %v2504
        %v2511 = vshll.u32 %v2510, 16
        %v2512 = vadd.s32 %v2511, %v2509
        %v2513 = vsel %vm1158, %v2467, 2147483647
        %v2514 = vand.u32 %v2513, 65535
        %v2515 = vshra.s32 %v2513, 16
        %v2516 = vcvt.s32.f32 %v2514
        %v2517 = vcvt.s32.f32 %v2515
        %2518 = vmin.xlane.f32.xlu0 %v2517
        %v2519 = vpop.xlane.xlu0 %2518
        %vm2520 = vcmp.eq.f32.partialorder %v2517, %v2519
        %v2521 = vsel %vm2520, %v2516, inf
        %2522 = vmin.xlane.f32.xlu0 %v2521
        %v2523 = vpop.xlane.xlu0 %2522
        %v2524 = vcvt.f32.s32 %v2523
        %v2525 = vcvt.f32.s32 %v2519
        %v2526 = vshll.u32 %v2525, 16
        %v2527 = vadd.s32 %v2526, %v2524
        %vm2528 = vcmp.eq.s32.totalorder %v1139, %v2482
        %vm2529 = vcmp.eq.s32.totalorder %v1139, %v2497
        %vm2530 = vcmp.eq.s32.totalorder %v1139, %v2512
        %vm2531 = vcmp.eq.s32.totalorder %v1139, %v2527
        %v2532 = vsel %vm2528, 1, 0
        %v2533 = vsel %vm2529, 1, 0
        %v2534 = vsel %vm2530, 1, 0
        %v2535 = vsel %vm2531, 1, 0
        %v2536 = vcvt.s32.f32 %v2532
        %v2537 = vcvt.s32.f32 %v2533
        %v2538 = vcvt.s32.f32 %v2534
        %v2539 = vcvt.s32.f32 %v2535
        %v2540 = vpack.c.bf16 %v2537, %v2536
        %v2541 = vpack.c.bf16 %v2539, %v2538
        %v2543 = vsel %vm1158, %v2540, %v1256
        %v2545 = vsel %vm1158, %v2541, %v1258
        %v2546 = vsel %vm2528, inf, %v2444
        %v2547 = vsel %vm2529, inf, %v2445
        %v2548 = vsel %vm2530, inf, %v2446
        %v2549 = vsel %vm2531, inf, %v2447
        %v2550 = vsel %vm1158, %v2546, inf
        %2551 = vmin.xlane.f32.xlu0 %v2550
        %v2552 = vpop.xlane.xlu0 %2551
        %v2553 = vsel %vm1158, %v2547, inf
        %2554 = vmin.xlane.f32.xlu0 %v2553
        %v2555 = vpop.xlane.xlu0 %2554
        %v2556 = vsel %vm1158, %v2548, inf
        %2557 = vmin.xlane.f32.xlu0 %v2556
        %v2558 = vpop.xlane.xlu0 %2557
        %v2559 = vsel %vm1158, %v2549, inf
        %2560 = vmin.xlane.f32.xlu0 %v2559
        %v2561 = vpop.xlane.xlu0 %2560
        %vm2562 = vcmp.le.f32.partialorder %v2546, %v2552
        %vm2563 = vcmp.le.f32.partialorder %v2547, %v2555
        %vm2564 = vcmp.le.f32.partialorder %v2548, %v2558
        %vm2565 = vcmp.le.f32.partialorder %v2549, %v2561
        %v2566 = vsel %vm2562, %v1139, 32
        %v2567 = vsel %vm2563, %v1139, 32
        %v2568 = vsel %vm2564, %v1139, 32
        %v2569 = vsel %vm2565, %v1139, 32
        %v2570 = vsel %vm1158, %v2566, 2147483647
        %v2571 = vand.u32 %v2570, 65535
        %v2572 = vshra.s32 %v2570, 16
        %v2573 = vcvt.s32.f32 %v2571
        %v2574 = vcvt.s32.f32 %v2572
        %2575 = vmin.xlane.f32.xlu0 %v2574
        %v2576 = vpop.xlane.xlu0 %2575
        %vm2577 = vcmp.eq.f32.partialorder %v2574, %v2576
        %v2578 = vsel %vm2577, %v2573, inf
        %2579 = vmin.xlane.f32.xlu0 %v2578
        %v2580 = vpop.xlane.xlu0 %2579
        %v2581 = vcvt.f32.s32 %v2580
        %v2582 = vcvt.f32.s32 %v2576
        %v2583 = vshll.u32 %v2582, 16
        %v2584 = vadd.s32 %v2583, %v2581
        %v2585 = vsel %vm1158, %v2567, 2147483647
        %v2586 = vand.u32 %v2585, 65535
        %v2587 = vshra.s32 %v2585, 16
        %v2588 = vcvt.s32.f32 %v2586
        %v2589 = vcvt.s32.f32 %v2587
        %2590 = vmin.xlane.f32.xlu0 %v2589
        %v2591 = vpop.xlane.xlu0 %2590
        %vm2592 = vcmp.eq.f32.partialorder %v2589, %v2591
        %v2593 = vsel %vm2592, %v2588, inf
        %2594 = vmin.xlane.f32.xlu0 %v2593
        %v2595 = vpop.xlane.xlu0 %2594
        %v2596 = vcvt.f32.s32 %v2595
        %v2597 = vcvt.f32.s32 %v2591
        %v2598 = vshll.u32 %v2597, 16
        %v2599 = vadd.s32 %v2598, %v2596
        %v2600 = vsel %vm1158, %v2568, 2147483647
        %v2601 = vand.u32 %v2600, 65535
        %v2602 = vshra.s32 %v2600, 16
        %v2603 = vcvt.s32.f32 %v2601
        %v2604 = vcvt.s32.f32 %v2602
        %2605 = vmin.xlane.f32.xlu0 %v2604
        %v2606 = vpop.xlane.xlu0 %2605
        %vm2607 = vcmp.eq.f32.partialorder %v2604, %v2606
        %v2608 = vsel %vm2607, %v2603, inf
        %2609 = vmin.xlane.f32.xlu0 %v2608
        %v2610 = vpop.xlane.xlu0 %2609
        %v2611 = vcvt.f32.s32 %v2610
        %v2612 = vcvt.f32.s32 %v2606
        %v2613 = vshll.u32 %v2612, 16
        %v2614 = vadd.s32 %v2613, %v2611
        %v2615 = vsel %vm1158, %v2569, 2147483647
        %v2616 = vand.u32 %v2615, 65535
        %v2617 = vshra.s32 %v2615, 16
        %v2618 = vcvt.s32.f32 %v2616
        %v2619 = vcvt.s32.f32 %v2617
        %2620 = vmin.xlane.f32.xlu0 %v2619
        %v2621 = vpop.xlane.xlu0 %2620
        %vm2622 = vcmp.eq.f32.partialorder %v2619, %v2621
        %v2623 = vsel %vm2622, %v2618, inf
        %2624 = vmin.xlane.f32.xlu0 %v2623
        %v2625 = vpop.xlane.xlu0 %2624
        %v2626 = vcvt.f32.s32 %v2625
        %v2627 = vcvt.f32.s32 %v2621
        %v2628 = vshll.u32 %v2627, 16
        %v2629 = vadd.s32 %v2628, %v2626
        %vm2630 = vcmp.eq.s32.totalorder %v1139, %v2584
        %vm2631 = vcmp.eq.s32.totalorder %v1139, %v2599
        %vm2632 = vcmp.eq.s32.totalorder %v1139, %v2614
        %vm2633 = vcmp.eq.s32.totalorder %v1139, %v2629
        %v2634 = vsel %vm2630, 1, 0
        %v2635 = vsel %vm2631, 1, 0
        %v2636 = vsel %vm2632, 1, 0
        %v2637 = vsel %vm2633, 1, 0
        %v2638 = vcvt.s32.f32 %v2634
        %v2639 = vcvt.s32.f32 %v2635
        %v2640 = vcvt.s32.f32 %v2636
        %v2641 = vcvt.s32.f32 %v2637
        %v2642 = vpack.c.bf16 %v2639, %v2638
        %v2643 = vpack.c.bf16 %v2641, %v2640
        %v2645 = vsel %vm1158, %v2642, %v1256
        %v2647 = vsel %vm1158, %v2643, %v1258
        %v2648 = vsel %vm2630, inf, %v2546
        %v2649 = vsel %vm2631, inf, %v2547
        %v2650 = vsel %vm2632, inf, %v2548
        %v2651 = vsel %vm2633, inf, %v2549
        %v2652 = vsel %vm1158, %v2648, inf
        %2653 = vmin.xlane.f32.xlu0 %v2652
        %v2654 = vpop.xlane.xlu0 %2653
        %v2655 = vsel %vm1158, %v2649, inf
        %2656 = vmin.xlane.f32.xlu0 %v2655
        %v2657 = vpop.xlane.xlu0 %2656
        %v2658 = vsel %vm1158, %v2650, inf
        %2659 = vmin.xlane.f32.xlu0 %v2658
        %v2660 = vpop.xlane.xlu0 %2659
        %v2661 = vsel %vm1158, %v2651, inf
        %2662 = vmin.xlane.f32.xlu0 %v2661
        %v2663 = vpop.xlane.xlu0 %2662
        %vm2664 = vcmp.le.f32.partialorder %v2648, %v2654
        %vm2665 = vcmp.le.f32.partialorder %v2649, %v2657
        %vm2666 = vcmp.le.f32.partialorder %v2650, %v2660
        %vm2667 = vcmp.le.f32.partialorder %v2651, %v2663
        %v2668 = vsel %vm2664, %v1139, 32
        %v2669 = vsel %vm2665, %v1139, 32
        %v2670 = vsel %vm2666, %v1139, 32
        %v2671 = vsel %vm2667, %v1139, 32
        %v2672 = vsel %vm1158, %v2668, 2147483647
        %v2673 = vand.u32 %v2672, 65535
        %v2674 = vshra.s32 %v2672, 16
        %v2675 = vcvt.s32.f32 %v2673
        %v2676 = vcvt.s32.f32 %v2674
        %2677 = vmin.xlane.f32.xlu0 %v2676
        %v2678 = vpop.xlane.xlu0 %2677
        %vm2679 = vcmp.eq.f32.partialorder %v2676, %v2678
        %v2680 = vsel %vm2679, %v2675, inf
        %2681 = vmin.xlane.f32.xlu0 %v2680
        %v2682 = vpop.xlane.xlu0 %2681
        %v2683 = vcvt.f32.s32 %v2682
        %v2684 = vcvt.f32.s32 %v2678
        %v2685 = vshll.u32 %v2684, 16
        %v2686 = vadd.s32 %v2685, %v2683
        %v2687 = vsel %vm1158, %v2669, 2147483647
        %v2688 = vand.u32 %v2687, 65535
        %v2689 = vshra.s32 %v2687, 16
        %v2690 = vcvt.s32.f32 %v2688
        %v2691 = vcvt.s32.f32 %v2689
        %2692 = vmin.xlane.f32.xlu0 %v2691
        %v2693 = vpop.xlane.xlu0 %2692
        %vm2694 = vcmp.eq.f32.partialorder %v2691, %v2693
        %v2695 = vsel %vm2694, %v2690, inf
        %2696 = vmin.xlane.f32.xlu0 %v2695
        %v2697 = vpop.xlane.xlu0 %2696
        %v2698 = vcvt.f32.s32 %v2697
        %v2699 = vcvt.f32.s32 %v2693
        %v2700 = vshll.u32 %v2699, 16
        %v2701 = vadd.s32 %v2700, %v2698
        %v2702 = vsel %vm1158, %v2670, 2147483647
        %v2703 = vand.u32 %v2702, 65535
        %v2704 = vshra.s32 %v2702, 16
        %v2705 = vcvt.s32.f32 %v2703
        %v2706 = vcvt.s32.f32 %v2704
        %2707 = vmin.xlane.f32.xlu0 %v2706
        %v2708 = vpop.xlane.xlu0 %2707
        %vm2709 = vcmp.eq.f32.partialorder %v2706, %v2708
        %v2710 = vsel %vm2709, %v2705, inf
        %2711 = vmin.xlane.f32.xlu0 %v2710
        %v2712 = vpop.xlane.xlu0 %2711
        %v2713 = vcvt.f32.s32 %v2712
        %v2714 = vcvt.f32.s32 %v2708
        %v2715 = vshll.u32 %v2714, 16
        %v2716 = vadd.s32 %v2715, %v2713
        %v2717 = vsel %vm1158, %v2671, 2147483647
        %v2718 = vand.u32 %v2717, 65535
        %v2719 = vshra.s32 %v2717, 16
        %v2720 = vcvt.s32.f32 %v2718
        %v2721 = vcvt.s32.f32 %v2719
        %2722 = vmin.xlane.f32.xlu0 %v2721
        %v2723 = vpop.xlane.xlu0 %2722
        %vm2724 = vcmp.eq.f32.partialorder %v2721, %v2723
        %v2725 = vsel %vm2724, %v2720, inf
        %2726 = vmin.xlane.f32.xlu0 %v2725
        %v2727 = vpop.xlane.xlu0 %2726
        %v2728 = vcvt.f32.s32 %v2727
        %v2729 = vcvt.f32.s32 %v2723
        %v2730 = vshll.u32 %v2729, 16
        %v2731 = vadd.s32 %v2730, %v2728
        %vm2732 = vcmp.eq.s32.totalorder %v1139, %v2686
        %vm2733 = vcmp.eq.s32.totalorder %v1139, %v2701
        %vm2734 = vcmp.eq.s32.totalorder %v1139, %v2716
        %vm2735 = vcmp.eq.s32.totalorder %v1139, %v2731
        %v2736 = vsel %vm2732, 1, 0
        %v2737 = vsel %vm2733, 1, 0
        %v2738 = vsel %vm2734, 1, 0
        %v2739 = vsel %vm2735, 1, 0
        %v2740 = vcvt.s32.f32 %v2736
        %v2741 = vcvt.s32.f32 %v2737
        %v2742 = vcvt.s32.f32 %v2738
        %v2743 = vcvt.s32.f32 %v2739
        %v2744 = vpack.c.bf16 %v2741, %v2740
        %v2745 = vpack.c.bf16 %v2743, %v2742
        %v2747 = vsel %vm1158, %v2744, %v1256
        %v2749 = vsel %vm1158, %v2745, %v1258
        %v2750 = vsel %vm2732, inf, %v2648
        %v2751 = vsel %vm2733, inf, %v2649
        %v2752 = vsel %vm2734, inf, %v2650
        %v2753 = vsel %vm2735, inf, %v2651
        %v2754 = vsel %vm1158, %v2750, inf
        %2755 = vmin.xlane.f32.xlu0 %v2754
        %v2756 = vpop.xlane.xlu0 %2755
        %v2757 = vsel %vm1158, %v2751, inf
        %2758 = vmin.xlane.f32.xlu0 %v2757
        %v2759 = vpop.xlane.xlu0 %2758
        %v2760 = vsel %vm1158, %v2752, inf
        %2761 = vmin.xlane.f32.xlu0 %v2760
        %v2762 = vpop.xlane.xlu0 %2761
        %v2763 = vsel %vm1158, %v2753, inf
        %2764 = vmin.xlane.f32.xlu0 %v2763
        %v2765 = vpop.xlane.xlu0 %2764
        %vm2766 = vcmp.le.f32.partialorder %v2750, %v2756
        %vm2767 = vcmp.le.f32.partialorder %v2751, %v2759
        %vm2768 = vcmp.le.f32.partialorder %v2752, %v2762
        %vm2769 = vcmp.le.f32.partialorder %v2753, %v2765
        %v2770 = vsel %vm2766, %v1139, 32
        %v2771 = vsel %vm2767, %v1139, 32
        %v2772 = vsel %vm2768, %v1139, 32
        %v2773 = vsel %vm2769, %v1139, 32
        %v2774 = vsel %vm1158, %v2770, 2147483647
        %v2775 = vand.u32 %v2774, 65535
        %v2776 = vshra.s32 %v2774, 16
        %v2777 = vcvt.s32.f32 %v2775
        %v2778 = vcvt.s32.f32 %v2776
        %2779 = vmin.xlane.f32.xlu0 %v2778
        %v2780 = vpop.xlane.xlu0 %2779
        %vm2781 = vcmp.eq.f32.partialorder %v2778, %v2780
        %v2782 = vsel %vm2781, %v2777, inf
        %2783 = vmin.xlane.f32.xlu0 %v2782
        %v2784 = vpop.xlane.xlu0 %2783
        %v2785 = vcvt.f32.s32 %v2784
        %v2786 = vcvt.f32.s32 %v2780
        %v2787 = vshll.u32 %v2786, 16
        %v2788 = vadd.s32 %v2787, %v2785
        %v2789 = vsel %vm1158, %v2771, 2147483647
        %v2790 = vand.u32 %v2789, 65535
        %v2791 = vshra.s32 %v2789, 16
        %v2792 = vcvt.s32.f32 %v2790
        %v2793 = vcvt.s32.f32 %v2791
        %2794 = vmin.xlane.f32.xlu0 %v2793
        %v2795 = vpop.xlane.xlu0 %2794
        %vm2796 = vcmp.eq.f32.partialorder %v2793, %v2795
        %v2797 = vsel %vm2796, %v2792, inf
        %2798 = vmin.xlane.f32.xlu0 %v2797
        %v2799 = vpop.xlane.xlu0 %2798
        %v2800 = vcvt.f32.s32 %v2799
        %v2801 = vcvt.f32.s32 %v2795
        %v2802 = vshll.u32 %v2801, 16
        %v2803 = vadd.s32 %v2802, %v2800
        %v2804 = vsel %vm1158, %v2772, 2147483647
        %v2805 = vand.u32 %v2804, 65535
        %v2806 = vshra.s32 %v2804, 16
        %v2807 = vcvt.s32.f32 %v2805
        %v2808 = vcvt.s32.f32 %v2806
        %2809 = vmin.xlane.f32.xlu0 %v2808
        %v2810 = vpop.xlane.xlu0 %2809
        %vm2811 = vcmp.eq.f32.partialorder %v2808, %v2810
        %v2812 = vsel %vm2811, %v2807, inf
        %2813 = vmin.xlane.f32.xlu0 %v2812
        %v2814 = vpop.xlane.xlu0 %2813
        %v2815 = vcvt.f32.s32 %v2814
        %v2816 = vcvt.f32.s32 %v2810
        %v2817 = vshll.u32 %v2816, 16
        %v2818 = vadd.s32 %v2817, %v2815
        %v2819 = vsel %vm1158, %v2773, 2147483647
        %v2820 = vand.u32 %v2819, 65535
        %v2821 = vshra.s32 %v2819, 16
        %v2822 = vcvt.s32.f32 %v2820
        %v2823 = vcvt.s32.f32 %v2821
        %2824 = vmin.xlane.f32.xlu0 %v2823
        %v2825 = vpop.xlane.xlu0 %2824
        %vm2826 = vcmp.eq.f32.partialorder %v2823, %v2825
        %v2827 = vsel %vm2826, %v2822, inf
        %2828 = vmin.xlane.f32.xlu0 %v2827
        %v2829 = vpop.xlane.xlu0 %2828
        %v2830 = vcvt.f32.s32 %v2829
        %v2831 = vcvt.f32.s32 %v2825
        %v2832 = vshll.u32 %v2831, 16
        %v2833 = vadd.s32 %v2832, %v2830
        %vm2834 = vcmp.eq.s32.totalorder %v1139, %v2788
        %vm2835 = vcmp.eq.s32.totalorder %v1139, %v2803
        %vm2836 = vcmp.eq.s32.totalorder %v1139, %v2818
        %vm2837 = vcmp.eq.s32.totalorder %v1139, %v2833
        %v2838 = vsel %vm2834, 1, 0
        %v2839 = vsel %vm2835, 1, 0
        %v2840 = vsel %vm2836, 1, 0
        %v2841 = vsel %vm2837, 1, 0
        %v2842 = vcvt.s32.f32 %v2838
        %v2843 = vcvt.s32.f32 %v2839
        %v2844 = vcvt.s32.f32 %v2840
        %v2845 = vcvt.s32.f32 %v2841
        %v2846 = vpack.c.bf16 %v2843, %v2842
        %v2847 = vpack.c.bf16 %v2845, %v2844
        %v2849 = vsel %vm1158, %v2846, %v1256
        %v2851 = vsel %vm1158, %v2847, %v1258
        %v2852 = vpack.c.bf16 %v2184, %v2183
        %v2853 = vpack.c.bf16 %v2186, %v2185
        %v2854 = vpack.c.bf16 %v2263, %v2263
        %v2856 = vpack.i.b16 %v2854, %v2854
        %v2858 = vlaneseq
        %v2859 = vshrl.u32 %v2858, 7
        %v2860 = vsub.s32 0, %v2859
        %v2861 = vrot.slane %v2856, %v2860
        %2863 = vrot.lane.b32.xlu0 %v2861, 16
        %v2864 = vpop.permute.xlu0 %2863
        %v2867 = vsel %vm1595, %v2852, %v2864
        %v2869 = vsel %vm1595, %v2853, %v2864
        %v2874 = vunpack.c.l.b16 %v2264
        %v2875 = vunpack.c.l.b16 %v2265
        %v2876 = vunpack.c.l.b16 %v2266
        %v2877 = vunpack.c.l.b16 %v2267
        %v2878 = vpack.c.b16 %v2875, %v2874
        %v2879 = vpack.c.b16 %v2877, %v2876
        %v2882 = vsel %vm1158, %v2867, 0
        %v2884 = vsel %vm1158, %v2869, 0
        %2886 = vmatprep.subr.bf16.mxu0 0
        %2887 = vmatpush1.bf16.msra.mxu0 %v2878
        %2888 = vmatprep.subr.bf16.mxu0 0
        %2889 = vmatpush1.bf16.msra.mxu0 %v2879
        %2890 = vmatprep.subr.bf16.mxu0 0
        %2891 = vmatpush1.bf16.msra.mxu0 0
        %2892 = vmatprep.subr.bf16.mxu0 0
        %2893 = vmatpush1.bf16.msra.mxu0 0
        %2894 = vmatprep.subr.bf16.mxu0 0
        %2895 = vmatpush1.bf16.msra.mxu0 0
        %2896 = vmatprep.subr.bf16.mxu0 0
        %2897 = vmatpush1.bf16.msra.mxu0 0
        %2898 = vmatprep.subr.bf16.mxu0 0
        %2899 = vmatpush1.bf16.msra.mxu0 0
        %2900 = vmatprep.subr.bf16.mxu0 0
        %2901 = vmatpush1.bf16.msra.mxu0 0
        %2902 = vmatprep.subr.bf16.mxu0 0
        %2903 = vmatpush1.bf16.msra.mxu0 0
        %2904 = vmatprep.subr.bf16.mxu0 0
        %2905 = vmatpush1.bf16.msra.mxu0 0
        %2906 = vmatprep.subr.bf16.mxu0 0
        %2907 = vmatpush1.bf16.msra.mxu0 0
        %2908 = vmatprep.subr.bf16.mxu0 0
        %2909 = vmatpush1.bf16.msra.mxu0 0
        %2910 = vmatprep.subr.bf16.mxu0 0
        %2911 = vmatpush1.bf16.msra.mxu0 0
        %2912 = vmatprep.subr.bf16.mxu0 0
        %2913 = vmatpush1.bf16.msra.mxu0 0
        %2914 = vmatprep.subr.bf16.mxu0 0
        %2915 = vmatpush1.bf16.msra.mxu0 0
        %2916 = vmatprep.subr.bf16.mxu0 0
        %2917 = vmatpush1.bf16.msra.mxu0 0
        %2918 = vmatprep.mubr.bf16.mxu0 0
        %2919 = vmatmul.mubr.bf16.gmra.mrb[0].mxu0 %v2882
        %v2920 = vpop.f32.mrb[0].mxu0
        %v2921 = vadd.f32 0.0, %v2920
        %v2922 = vpop.f32.mrb[0].mxu0
        %v2923 = vpop.f32.mrb[0].mxu0
        %v2924 = vadd.f32 0.0, %v2923
        %v2925 = vpop.f32.mrb[0].mxu0
        %2926 = vmatprep.mubr.bf16.mxu0 0
        %2927 = vmatmul.mubr.bf16.gmra.mrb[0].mxu0 %v2884
        %v2928 = vpop.f32.mrb[0].mxu0
        %v2929 = vadd.f32 0.0, %v2928
        %v2930 = vpop.f32.mrb[0].mxu0
        %v2931 = vpop.f32.mrb[0].mxu0
        %v2932 = vadd.f32 0.0, %v2931
        %v2933 = vpop.f32.mrb[0].mxu0
        %2934 = vdwg.mxu0
        %v2936 = vlaneseq
        %v2937 = vshrl.u32 %v2936, 7
        %v2938 = vsub.s32 0, %v2937
        %v2939 = vrot.slane %v2268, %v2938
        %v2941 = vadd.f32 %v2921, %v2939
        %v2942 = vadd.f32 %v2924, %v2939
        %v2943 = vadd.f32 %v2929, %v2939
        %v2944 = vadd.f32 %v2932, %v2939
        %v2946 = vlaneseq
        %v2947 = vshrl.u32 %v2946, 7
        %v2948 = vsub.s32 0, %v2947
        %v2949 = vrot.slane %v2279, %v2948
        %2950 = vrot.lane.b32.xlu0 %v2949, 64
        %v2951 = vpop.permute.xlu0 %2950
        %v2953 = vadd.f32 %v2921, %v2951
        %v2954 = vadd.f32 %v2924, %v2951
        %v2955 = vadd.f32 %v2929, %v2951
        %v2956 = vadd.f32 %v2932, %v2951
        %2961 = vrot.lane.b32.xlu0 %v2941, 32
        %v2962 = vpop.permute.xlu0 %2961
        %2963 = vrot.lane.b32.xlu0 %v2942, 32
        %v2964 = vpop.permute.xlu0 %2963
        %2965 = vrot.lane.b32.xlu0 %v2943, 32
        %v2966 = vpop.permute.xlu0 %2965
        %2967 = vrot.lane.b32.xlu0 %v2944, 32
        %v2968 = vpop.permute.xlu0 %2967
        %v2973 = vpack.c.bf16 %v2924, %v2921
        %v2974 = vpack.c.bf16 %v2932, %v2929
        %v2975 = vpack.c.bf16 %v2964, %v2962
        %v2976 = vpack.c.bf16 %v2968, %v2966
        %2981 = vrot.lane.b32.xlu0 %v2973, 96
        %v2982 = vpop.permute.xlu0 %2981
        %2983 = vrot.lane.b32.xlu0 %v2974, 96
        %v2984 = vpop.permute.xlu0 %2983
        %2985 = vrot.lane.b32.xlu0 %v2975, 96
        %v2986 = vpop.permute.xlu0 %2985
        %2987 = vrot.lane.b32.xlu0 %v2976, 96
        %v2988 = vpop.permute.xlu0 %2987
        %v2993 = vsel %vm1707, %v2543, 0
        %v2995 = vsel %vm1707, %v2545, 0
        %v2997 = vsel %vm1707, %v2645, 0
        %v2999 = vsel %vm1707, %v2647, 0
        %v3001 = vsel %vm1707, %v2747, 0
        %v3003 = vsel %vm1707, %v2749, 0
        %v3005 = vsel %vm1707, %v2849, 0
        %v3007 = vsel %vm1707, %v2851, 0
        %3009 = vmatprep.subr.bf16.mxu0 0
        %3010 = vmatpush1.bf16.msra.mxu0 %v2982
        %3011 = vmatprep.subr.bf16.mxu0 0
        %3012 = vmatpush1.bf16.msra.mxu0 %v2984
        %3013 = vmatprep.subr.bf16.mxu0 0
        %3014 = vmatpush1.bf16.msra.mxu0 %v2986
        %3015 = vmatprep.subr.bf16.mxu0 0
        %3016 = vmatpush1.bf16.msra.mxu0 %v2988
        %3017 = vmatprep.subr.bf16.mxu0 0
        %3018 = vmatpush1.bf16.msra.mxu0 0
        %3019 = vmatprep.subr.bf16.mxu0 0
        %3020 = vmatpush1.bf16.msra.mxu0 0
        %3021 = vmatprep.subr.bf16.mxu0 0
        %3022 = vmatpush1.bf16.msra.mxu0 0
        %3023 = vmatprep.subr.bf16.mxu0 0
        %3024 = vmatpush1.bf16.msra.mxu0 0
        %3025 = vmatprep.subr.bf16.mxu0 0
        %3026 = vmatpush1.bf16.msra.mxu0 0
        %3027 = vmatprep.subr.bf16.mxu0 0
        %3028 = vmatpush1.bf16.msra.mxu0 0
        %3029 = vmatprep.subr.bf16.mxu0 0
        %3030 = vmatpush1.bf16.msra.mxu0 0
        %3031 = vmatprep.subr.bf16.mxu0 0
        %3032 = vmatpush1.bf16.msra.mxu0 0
        %3033 = vmatprep.subr.bf16.mxu0 0
        %3034 = vmatpush1.bf16.msra.mxu0 0
        %3035 = vmatprep.subr.bf16.mxu0 0
        %3036 = vmatpush1.bf16.msra.mxu0 0
        %3037 = vmatprep.subr.bf16.mxu0 0
        %3038 = vmatpush1.bf16.msra.mxu0 0
        %3039 = vmatprep.subr.bf16.mxu0 0
        %3040 = vmatpush1.bf16.msra.mxu0 0
        %3041 = vmatprep.mubr.bf16.mxu0 0
        %3042 = vmatmul.mubr.bf16.gmra.mrb[0].mxu0 %v2993
        %v3043 = vpop.f32.mrb[0].mxu0
        %v3044 = vadd.f32 0.0, %v3043
        %v3045 = vpop.f32.mrb[0].mxu0
        %v3046 = vpop.f32.mrb[0].mxu0
        %v3047 = vadd.f32 0.0, %v3046
        %v3048 = vpop.f32.mrb[0].mxu0
        %3049 = vmatprep.mubr.bf16.mxu0 0
        %3050 = vmatmul.mubr.bf16.gmra.mrb[0].mxu0 %v2995
        %v3051 = vpop.f32.mrb[0].mxu0
        %v3052 = vadd.f32 0.0, %v3051
        %v3053 = vpop.f32.mrb[0].mxu0
        %v3054 = vpop.f32.mrb[0].mxu0
        %v3055 = vadd.f32 0.0, %v3054
        %v3056 = vpop.f32.mrb[0].mxu0
        %3057 = vmatprep.mubr.bf16.mxu0 0
        %3058 = vmatmul.mubr.bf16.gmra.mrb[0].mxu0 %v2997
        %v3059 = vpop.f32.mrb[0].mxu0
        %v3060 = vadd.f32 0.0, %v3059
        %v3061 = vpop.f32.mrb[0].mxu0
        %v3062 = vpop.f32.mrb[0].mxu0
        %v3063 = vadd.f32 0.0, %v3062
        %v3064 = vpop.f32.mrb[0].mxu0
        %3065 = vmatprep.mubr.bf16.mxu0 0
        %3066 = vmatmul.mubr.bf16.gmra.mrb[0].mxu0 %v2999
        %v3067 = vpop.f32.mrb[0].mxu0
        %v3068 = vadd.f32 0.0, %v3067
        %v3069 = vpop.f32.mrb[0].mxu0
        %v3070 = vpop.f32.mrb[0].mxu0
        %v3071 = vadd.f32 0.0, %v3070
        %v3072 = vpop.f32.mrb[0].mxu0
        %3073 = vmatprep.mubr.bf16.mxu0 0
        %3074 = vmatmul.mubr.bf16.gmra.mrb[0].mxu0 %v3001
        %v3075 = vpop.f32.mrb[0].mxu0
        %v3076 = vadd.f32 0.0, %v3075
        %v3077 = vpop.f32.mrb[0].mxu0
        %v3078 = vpop.f32.mrb[0].mxu0
        %v3079 = vadd.f32 0.0, %v3078
        %v3080 = vpop.f32.mrb[0].mxu0
        %3081 = vmatprep.mubr.bf16.mxu0 0
        %3082 = vmatmul.mubr.bf16.gmra.mrb[0].mxu0 %v3003
        %v3083 = vpop.f32.mrb[0].mxu0
        %v3084 = vadd.f32 0.0, %v3083
        %v3085 = vpop.f32.mrb[0].mxu0
        %v3086 = vpop.f32.mrb[0].mxu0
        %v3087 = vadd.f32 0.0, %v3086
        %v3088 = vpop.f32.mrb[0].mxu0
        %3089 = vmatprep.mubr.bf16.mxu0 0
        %3090 = vmatmul.mubr.bf16.gmra.mrb[0].mxu0 %v3005
        %v3091 = vpop.f32.mrb[0].mxu0
        %v3092 = vadd.f32 0.0, %v3091
        %v3093 = vpop.f32.mrb[0].mxu0
        %v3094 = vpop.f32.mrb[0].mxu0
        %v3095 = vadd.f32 0.0, %v3094
        %v3096 = vpop.f32.mrb[0].mxu0
        %3097 = vmatprep.mubr.bf16.mxu0 0
        %3098 = vmatmul.mubr.bf16.gmra.mrb[0].mxu0 %v3007
        %v3099 = vpop.f32.mrb[0].mxu0
        %v3100 = vadd.f32 0.0, %v3099
        %v3101 = vpop.f32.mrb[0].mxu0
        %v3102 = vpop.f32.mrb[0].mxu0
        %v3103 = vadd.f32 0.0, %v3102
        %v3104 = vpop.f32.mrb[0].mxu0
        %3105 = vdwg.mxu0
        %v3106 = vmax.f32 %v3044, 0.0
        %v3107 = vmax.f32 %v3047, 0.0
        %v3108 = vmax.f32 %v3052, 0.0
        %v3109 = vmax.f32 %v3055, 0.0
        %v3110 = vmax.f32 %v3060, 0.0
        %v3111 = vmax.f32 %v3063, 0.0
        %v3112 = vmax.f32 %v3068, 0.0
        %v3113 = vmax.f32 %v3071, 0.0
        %v3114 = vmax.f32 %v3076, 0.0
        %v3115 = vmax.f32 %v3079, 0.0
        %v3116 = vmax.f32 %v3084, 0.0
        %v3117 = vmax.f32 %v3087, 0.0
        %v3118 = vmax.f32 %v3092, 0.0
        %v3119 = vmax.f32 %v3095, 0.0
        %v3120 = vmax.f32 %v3100, 0.0
        %v3121 = vmax.f32 %v3103, 0.0
        %v3122 = vpack.c.bf16 %v3107, %v3106
        %v3123 = vpack.c.bf16 %v3109, %v3108
        %v3124 = vpack.c.bf16 %v3111, %v3110
        %v3125 = vpack.c.bf16 %v3113, %v3112
        %v3126 = vpack.c.bf16 %v3115, %v3114
        %v3127 = vpack.c.bf16 %v3117, %v3116
        %v3128 = vpack.c.bf16 %v3119, %v3118
        %v3129 = vpack.c.bf16 %v3121, %v3120
        %v3131 = vlaneseq
        %v3132 = vshrl.u32 %v3131, 7
        %v3133 = vsub.s32 0, %v3132
        %v3134 = vrot.slane %v2273, %v3133
        %v3140 = vunpack.c.l.b16 %v2269
        %v3141 = vunpack.c.l.b16 %v2270
        %v3142 = vunpack.c.l.b16 %v2271
        %v3143 = vunpack.c.l.b16 %v2272
        %v3144 = vpack.c.b16 %v3141, %v3140
        %v3145 = vpack.c.b16 %v3143, %v3142
        %v3149 = vsel %vm1158, %v3122, 0
        %v3152 = vsel %vm1158, %v3123, 0
        %v3155 = vsel %vm1158, %v3124, 0
        %v3158 = vsel %vm1158, %v3125, 0
        %v3161 = vsel %vm1158, %v3126, 0
        %v3164 = vsel %vm1158, %v3127, 0
        %v3167 = vsel %vm1158, %v3128, 0
        %v3170 = vsel %vm1158, %v3129, 0
        %3172 = vmatprep.subr.bf16.mxu0 0
        %3173 = vmatpush1.bf16.msra.mxu0 %v3144
        %3174 = vmatprep.subr.bf16.mxu0 0
        %3175 = vmatpush1.bf16.msra.mxu0 %v3145
        %3176 = vmatprep.subr.bf16.mxu0 0
        %3177 = vmatpush1.bf16.msra.mxu0 0
        %3178 = vmatprep.subr.bf16.mxu0 0
        %3179 = vmatpush1.bf16.msra.mxu0 0
        %3180 = vmatprep.subr.bf16.mxu0 0
        %3181 = vmatpush1.bf16.msra.mxu0 0
        %3182 = vmatprep.subr.bf16.mxu0 0
        %3183 = vmatpush1.bf16.msra.mxu0 0
        %3184 = vmatprep.subr.bf16.mxu0 0
        %3185 = vmatpush1.bf16.msra.mxu0 0
        %3186 = vmatprep.subr.bf16.mxu0 0
        %3187 = vmatpush1.bf16.msra.mxu0 0
        %3188 = vmatprep.subr.bf16.mxu0 0
        %3189 = vmatpush1.bf16.msra.mxu0 0
        %3190 = vmatprep.subr.bf16.mxu0 0
        %3191 = vmatpush1.bf16.msra.mxu0 0
        %3192 = vmatprep.subr.bf16.mxu0 0
        %3193 = vmatpush1.bf16.msra.mxu0 0
        %3194 = vmatprep.subr.bf16.mxu0 0
        %3195 = vmatpush1.bf16.msra.mxu0 0
        %3196 = vmatprep.subr.bf16.mxu0 0
        %3197 = vmatpush1.bf16.msra.mxu0 0
        %3198 = vmatprep.subr.bf16.mxu0 0
        %3199 = vmatpush1.bf16.msra.mxu0 0
        %3200 = vmatprep.subr.bf16.mxu0 0
        %3201 = vmatpush1.bf16.msra.mxu0 0
        %3202 = vmatprep.subr.bf16.mxu0 0
        %3203 = vmatpush1.bf16.msra.mxu0 0
        %3204 = vmatprep.mubr.bf16.mxu0 0
        %3205 = vmatmul.mubr.bf16.gmra.mrb[0].mxu0 %v3149
        %v3206 = vpop.f32.mrb[0].mxu0
        %v3207 = vadd.f32 %v3134, %v3206
        %v3208 = vpop.f32.mrb[0].mxu0
        %v3209 = vpop.f32.mrb[0].mxu0
        %v3210 = vadd.f32 %v3134, %v3209
        %v3211 = vpop.f32.mrb[0].mxu0
        %3212 = vmatprep.mubr.bf16.mxu0 0
        %3213 = vmatmul.mubr.bf16.gmra.mrb[0].mxu0 %v3152
        %v3214 = vpop.f32.mrb[0].mxu0
        %v3215 = vadd.f32 %v3134, %v3214
        %v3216 = vpop.f32.mrb[0].mxu0
        %v3217 = vpop.f32.mrb[0].mxu0
        %v3218 = vadd.f32 %v3134, %v3217
        %v3219 = vpop.f32.mrb[0].mxu0
        %3220 = vmatprep.mubr.bf16.mxu0 0
        %3221 = vmatmul.mubr.bf16.gmra.mrb[0].mxu0 %v3155
        %v3222 = vpop.f32.mrb[0].mxu0
        %v3223 = vadd.f32 %v3134, %v3222
        %v3224 = vpop.f32.mrb[0].mxu0
        %v3225 = vpop.f32.mrb[0].mxu0
        %v3226 = vadd.f32 %v3134, %v3225
        %v3227 = vpop.f32.mrb[0].mxu0
        %3228 = vmatprep.mubr.bf16.mxu0 0
        %3229 = vmatmul.mubr.bf16.gmra.mrb[0].mxu0 %v3158
        %v3230 = vpop.f32.mrb[0].mxu0
        %v3231 = vadd.f32 %v3134, %v3230
        %v3232 = vpop.f32.mrb[0].mxu0
        %v3233 = vpop.f32.mrb[0].mxu0
        %v3234 = vadd.f32 %v3134, %v3233
        %v3235 = vpop.f32.mrb[0].mxu0
        %3236 = vmatprep.mubr.bf16.mxu0 0
        %3237 = vmatmul.mubr.bf16.gmra.mrb[0].mxu0 %v3161
        %v3238 = vpop.f32.mrb[0].mxu0
        %v3239 = vadd.f32 %v3134, %v3238
        %v3240 = vpop.f32.mrb[0].mxu0
        %v3241 = vpop.f32.mrb[0].mxu0
        %v3242 = vadd.f32 %v3134, %v3241
        %v3243 = vpop.f32.mrb[0].mxu0
        %3244 = vmatprep.mubr.bf16.mxu0 0
        %3245 = vmatmul.mubr.bf16.gmra.mrb[0].mxu0 %v3164
        %v3246 = vpop.f32.mrb[0].mxu0
        %v3247 = vadd.f32 %v3134, %v3246
        %v3248 = vpop.f32.mrb[0].mxu0
        %v3249 = vpop.f32.mrb[0].mxu0
        %v3250 = vadd.f32 %v3134, %v3249
        %v3251 = vpop.f32.mrb[0].mxu0
        %3252 = vmatprep.mubr.bf16.mxu0 0
        %3253 = vmatmul.mubr.bf16.gmra.mrb[0].mxu0 %v3167
        %v3254 = vpop.f32.mrb[0].mxu0
        %v3255 = vadd.f32 %v3134, %v3254
        %v3256 = vpop.f32.mrb[0].mxu0
        %v3257 = vpop.f32.mrb[0].mxu0
        %v3258 = vadd.f32 %v3134, %v3257
        %v3259 = vpop.f32.mrb[0].mxu0
        %3260 = vmatprep.mubr.bf16.mxu0 0
        %3261 = vmatmul.mubr.bf16.gmra.mrb[0].mxu0 %v3170
        %v3262 = vpop.f32.mrb[0].mxu0
        %v3263 = vadd.f32 %v3134, %v3262
        %v3264 = vpop.f32.mrb[0].mxu0
        %v3265 = vpop.f32.mrb[0].mxu0
        %v3266 = vadd.f32 %v3134, %v3265
        %v3267 = vpop.f32.mrb[0].mxu0
        %3268 = vdwg.mxu0
        %v3269 = vmax.f32 %v3207, 0.0
        %v3270 = vmax.f32 %v3210, 0.0
        %v3271 = vmax.f32 %v3215, 0.0
        %v3272 = vmax.f32 %v3218, 0.0
        %v3273 = vmax.f32 %v3223, 0.0
        %v3274 = vmax.f32 %v3226, 0.0
        %v3275 = vmax.f32 %v3231, 0.0
        %v3276 = vmax.f32 %v3234, 0.0
        %v3277 = vmax.f32 %v3239, 0.0
        %v3278 = vmax.f32 %v3242, 0.0
        %v3279 = vmax.f32 %v3247, 0.0
        %v3280 = vmax.f32 %v3250, 0.0
        %v3281 = vmax.f32 %v3255, 0.0
        %v3282 = vmax.f32 %v3258, 0.0
        %v3283 = vmax.f32 %v3263, 0.0
        %v3284 = vmax.f32 %v3266, 0.0
        %v3285 = vpack.c.bf16 %v3270, %v3269
        %v3286 = vpack.c.bf16 %v3272, %v3271
        %v3287 = vpack.c.bf16 %v3274, %v3273
        %v3288 = vpack.c.bf16 %v3276, %v3275
        %v3289 = vpack.c.bf16 %v3278, %v3277
        %v3290 = vpack.c.bf16 %v3280, %v3279
        %v3291 = vpack.c.bf16 %v3282, %v3281
        %v3292 = vpack.c.bf16 %v3284, %v3283
        %v3294 = vlaneseq
        %v3295 = vshrl.u32 %v3294, 7
        %v3296 = vsub.s32 0, %v3295
        %v3297 = vrot.slane %v2278, %v3296
        %v3303 = vunpack.c.l.b16 %v2274
        %v3304 = vunpack.c.l.b16 %v2275
        %v3305 = vunpack.c.l.b16 %v2276
        %v3306 = vunpack.c.l.b16 %v2277
        %v3307 = vpack.c.b16 %v3304, %v3303
        %v3308 = vpack.c.b16 %v3306, %v3305
        %v3312 = vsel %vm1158, %v3285, 0
        %v3315 = vsel %vm1158, %v3286, 0
        %v3318 = vsel %vm1158, %v3287, 0
        %v3321 = vsel %vm1158, %v3288, 0
        %v3324 = vsel %vm1158, %v3289, 0
        %v3327 = vsel %vm1158, %v3290, 0
        %v3330 = vsel %vm1158, %v3291, 0
        %v3333 = vsel %vm1158, %v3292, 0
        %3335 = vmatprep.subr.bf16.mxu0 0
        %3336 = vmatpush1.bf16.msra.mxu0 %v3307
        %3337 = vmatprep.subr.bf16.mxu0 0
        %3338 = vmatpush1.bf16.msra.mxu0 %v3308
        %3339 = vmatprep.subr.bf16.mxu0 0
        %3340 = vmatpush1.bf16.msra.mxu0 0
        %3341 = vmatprep.subr.bf16.mxu0 0
        %3342 = vmatpush1.bf16.msra.mxu0 0
        %3343 = vmatprep.subr.bf16.mxu0 0
        %3344 = vmatpush1.bf16.msra.mxu0 0
        %3345 = vmatprep.subr.bf16.mxu0 0
        %3346 = vmatpush1.bf16.msra.mxu0 0
        %3347 = vmatprep.subr.bf16.mxu0 0
        %3348 = vmatpush1.bf16.msra.mxu0 0
        %3349 = vmatprep.subr.bf16.mxu0 0
        %3350 = vmatpush1.bf16.msra.mxu0 0
        %3351 = vmatprep.subr.bf16.mxu0 0
        %3352 = vmatpush1.bf16.msra.mxu0 0
        %3353 = vmatprep.subr.bf16.mxu0 0
        %3354 = vmatpush1.bf16.msra.mxu0 0
        %3355 = vmatprep.subr.bf16.mxu0 0
        %3356 = vmatpush1.bf16.msra.mxu0 0
        %3357 = vmatprep.subr.bf16.mxu0 0
        %3358 = vmatpush1.bf16.msra.mxu0 0
        %3359 = vmatprep.subr.bf16.mxu0 0
        %3360 = vmatpush1.bf16.msra.mxu0 0
        %3361 = vmatprep.subr.bf16.mxu0 0
        %3362 = vmatpush1.bf16.msra.mxu0 0
        %3363 = vmatprep.subr.bf16.mxu0 0
        %3364 = vmatpush1.bf16.msra.mxu0 0
        %3365 = vmatprep.subr.bf16.mxu0 0
        %3366 = vmatpush1.bf16.msra.mxu0 0
        %3367 = vmatprep.mubr.bf16.mxu0 0
        %3368 = vmatmul.mubr.bf16.gmra.mrb[0].mxu0 %v3312
        %v3369 = vpop.f32.mrb[0].mxu0
        %v3370 = vadd.f32 %v3297, %v3369
        %v3371 = vpop.f32.mrb[0].mxu0
        %v3372 = vpop.f32.mrb[0].mxu0
        %v3373 = vadd.f32 %v3297, %v3372
        %v3374 = vpop.f32.mrb[0].mxu0
        %3375 = vmatprep.mubr.bf16.mxu0 0
        %3376 = vmatmul.mubr.bf16.gmra.mrb[0].mxu0 %v3315
        %v3377 = vpop.f32.mrb[0].mxu0
        %v3378 = vadd.f32 %v3297, %v3377
        %v3379 = vpop.f32.mrb[0].mxu0
        %v3380 = vpop.f32.mrb[0].mxu0
        %v3381 = vadd.f32 %v3297, %v3380
        %v3382 = vpop.f32.mrb[0].mxu0
        %3383 = vmatprep.mubr.bf16.mxu0 0
        %3384 = vmatmul.mubr.bf16.gmra.mrb[0].mxu0 %v3318
        %v3385 = vpop.f32.mrb[0].mxu0
        %v3386 = vadd.f32 %v3297, %v3385
        %v3387 = vpop.f32.mrb[0].mxu0
        %v3388 = vpop.f32.mrb[0].mxu0
        %v3389 = vadd.f32 %v3297, %v3388
        %v3390 = vpop.f32.mrb[0].mxu0
        %3391 = vmatprep.mubr.bf16.mxu0 0
        %3392 = vmatmul.mubr.bf16.gmra.mrb[0].mxu0 %v3321
        %v3393 = vpop.f32.mrb[0].mxu0
        %v3394 = vadd.f32 %v3297, %v3393
        %v3395 = vpop.f32.mrb[0].mxu0
        %v3396 = vpop.f32.mrb[0].mxu0
        %v3397 = vadd.f32 %v3297, %v3396
        %v3398 = vpop.f32.mrb[0].mxu0
        %3399 = vmatprep.mubr.bf16.mxu0 0
        %3400 = vmatmul.mubr.bf16.gmra.mrb[0].mxu0 %v3324
        %v3401 = vpop.f32.mrb[0].mxu0
        %v3402 = vadd.f32 %v3297, %v3401
        %v3403 = vpop.f32.mrb[0].mxu0
        %v3404 = vpop.f32.mrb[0].mxu0
        %v3405 = vadd.f32 %v3297, %v3404
        %v3406 = vpop.f32.mrb[0].mxu0
        %3407 = vmatprep.mubr.bf16.mxu0 0
        %3408 = vmatmul.mubr.bf16.gmra.mrb[0].mxu0 %v3327
        %v3409 = vpop.f32.mrb[0].mxu0
        %v3410 = vadd.f32 %v3297, %v3409
        %v3411 = vpop.f32.mrb[0].mxu0
        %v3412 = vpop.f32.mrb[0].mxu0
        %v3413 = vadd.f32 %v3297, %v3412
        %v3414 = vpop.f32.mrb[0].mxu0
        %3415 = vmatprep.mubr.bf16.mxu0 0
        %3416 = vmatmul.mubr.bf16.gmra.mrb[0].mxu0 %v3330
        %v3417 = vpop.f32.mrb[0].mxu0
        %v3418 = vadd.f32 %v3297, %v3417
        %v3419 = vpop.f32.mrb[0].mxu0
        %v3420 = vpop.f32.mrb[0].mxu0
        %v3421 = vadd.f32 %v3297, %v3420
        %v3422 = vpop.f32.mrb[0].mxu0
        %3423 = vmatprep.mubr.bf16.mxu0 0
        %3424 = vmatmul.mubr.bf16.gmra.mrb[0].mxu0 %v3333
        %v3425 = vpop.f32.mrb[0].mxu0
        %v3426 = vadd.f32 %v3297, %v3425
        %v3427 = vpop.f32.mrb[0].mxu0
        %v3428 = vpop.f32.mrb[0].mxu0
        %v3429 = vadd.f32 %v3297, %v3428
        %v3430 = vpop.f32.mrb[0].mxu0
        %3431 = vdwg.mxu0
        %v3432 = vmax.f32 %v3370, 0.0
        %v3433 = vmax.f32 %v3373, 0.0
        %v3434 = vmax.f32 %v3378, 0.0
        %v3435 = vmax.f32 %v3381, 0.0
        %v3436 = vmax.f32 %v3386, 0.0
        %v3437 = vmax.f32 %v3389, 0.0
        %v3438 = vmax.f32 %v3394, 0.0
        %v3439 = vmax.f32 %v3397, 0.0
        %v3440 = vmax.f32 %v3402, 0.0
        %v3441 = vmax.f32 %v3405, 0.0
        %v3442 = vmax.f32 %v3410, 0.0
        %v3443 = vmax.f32 %v3413, 0.0
        %v3444 = vmax.f32 %v3418, 0.0
        %v3445 = vmax.f32 %v3421, 0.0
        %v3446 = vmax.f32 %v3426, 0.0
        %v3447 = vmax.f32 %v3429, 0.0
        %v3448 = vmax.f32 %v3432, %v3436
        %v3449 = vmax.f32 %v3433, %v3437
        %v3450 = vmax.f32 %v3434, %v3438
        %v3451 = vmax.f32 %v3435, %v3439
        %v3452 = vmax.f32 %v3448, %v3440
        %v3453 = vmax.f32 %v3449, %v3441
        %v3454 = vmax.f32 %v3450, %v3442
        %v3455 = vmax.f32 %v3451, %v3443
        %v3456 = vmax.f32 %v3452, %v3444
        %v3457 = vmax.f32 %v3453, %v3445
        %v3458 = vmax.f32 %v3454, %v3446
        %v3459 = vmax.f32 %v3455, %v3447
        %3464 = vrot.lane.b32.xlu0 %v2953, 64
        %v3465 = vpop.permute.xlu0 %3464
        %3466 = vrot.lane.b32.xlu0 %v2954, 64
        %v3467 = vpop.permute.xlu0 %3466
        %3468 = vrot.lane.b32.xlu0 %v2955, 64
        %v3469 = vpop.permute.xlu0 %3468
        %3470 = vrot.lane.b32.xlu0 %v2956, 64
        %v3471 = vpop.permute.xlu0 %3470
        %v3476 = vadd.f32 %v3456, %v3465
        %v3477 = vadd.f32 %v3457, %v3467
        %v3478 = vadd.f32 %v3458, %v3469
        %v3479 = vadd.f32 %v3459, %v3471
        %v3480 = vmax.f32 %v3476, 0.0
        %v3481 = vmax.f32 %v3477, 0.0
        %v3482 = vmax.f32 %v3478, 0.0
        %v3483 = vmax.f32 %v3479, 0.0
        %v3484 = vsel %vm1158, %v3480, 0.0
        %v3485 = vsel %vm1158, %v3481, 0.0
        %v3486 = vadd.f32 %v3484, %v3485
        %v3487 = vsel %vm1158, %v3482, 0.0
        %v3488 = vadd.f32 %v3486, %v3487
        %v3489 = vsel %vm1158, %v3483, 0.0
        %v3490 = vadd.f32 %v3488, %v3489
        %v3491 = vrot.slane %v3490, 4
        %v3492 = vadd.f32 %v3490, %v3491
        %v3493 = vrot.slane %v3492, 2
        %v3494 = vadd.f32 %v3492, %v3493
        %v3495 = vrot.slane %v3494, 1
        %v3496 = vadd.f32 %v3494, %v3495
        %v3497 = vmul.f32 %v3496, %v910
        %3499 = vrot.lane.b32.xlu0 %v3497, 16
        %v3500 = vpop.permute.xlu0 %3499
        %v3502 = vsel %vm1595, %v2263, %v3500
        %v3503 = vpack.c.bf16 %v3502, %v3502
        %v3510 = vunpack.c.l.b16 %v2280
        %v3511 = vunpack.c.l.b16 %v2281
        %v3512 = vunpack.c.l.b16 %v2282
        %v3513 = vunpack.c.l.b16 %v2283
        %v3514 = vunpack.c.l.b16 %v2284
        %v3515 = vunpack.c.l.b16 %v2285
        %v3516 = vpack.c.b16 %v3511, %v3510
        %v3517 = vpack.c.b16 %v3513, %v3512
        %v3518 = vpack.c.b16 %v3515, %v3514
        %vm3522 = vcmask 392192
        %v3524 = vsel %vm3522, %v3503, 0
        %3526 = vmatprep.subr.bf16.mxu0 0
        %3527 = vmatpush1.bf16.msra.mxu0 %v3516
        %3528 = vmatprep.subr.bf16.mxu0 0
        %3529 = vmatpush1.bf16.msra.mxu0 %v3517
        %3530 = vmatprep.subr.bf16.mxu0 0
        %3531 = vmatpush1.bf16.msra.mxu0 %v3518
        %3532 = vmatprep.subr.bf16.mxu0 0
        %3533 = vmatpush1.bf16.msra.mxu0 0
        %3534 = vmatprep.subr.bf16.mxu0 0
        %3535 = vmatpush1.bf16.msra.mxu0 0
        %3536 = vmatprep.subr.bf16.mxu0 0
        %3537 = vmatpush1.bf16.msra.mxu0 0
        %3538 = vmatprep.subr.bf16.mxu0 0
        %3539 = vmatpush1.bf16.msra.mxu0 0
        %3540 = vmatprep.subr.bf16.mxu0 0
        %3541 = vmatpush1.bf16.msra.mxu0 0
        %3542 = vmatprep.subr.bf16.mxu0 0
        %3543 = vmatpush1.bf16.msra.mxu0 0
        %3544 = vmatprep.subr.bf16.mxu0 0
        %3545 = vmatpush1.bf16.msra.mxu0 0
        %3546 = vmatprep.subr.bf16.mxu0 0
        %3547 = vmatpush1.bf16.msra.mxu0 0
        %3548 = vmatprep.subr.bf16.mxu0 0
        %3549 = vmatpush1.bf16.msra.mxu0 0
        %3550 = vmatprep.subr.bf16.mxu0 0
        %3551 = vmatpush1.bf16.msra.mxu0 0
        %3552 = vmatprep.subr.bf16.mxu0 0
        %3553 = vmatpush1.bf16.msra.mxu0 0
        %3554 = vmatprep.subr.bf16.mxu0 0
        %3555 = vmatpush1.bf16.msra.mxu0 0
        %3556 = vmatprep.subr.bf16.mxu0 0
        %3557 = vmatpush1.bf16.msra.mxu0 0
        %3558 = vmatprep.mubr.bf16.mxu0 0
        %3559 = vmatmul.mubr.bf16.gmra.mrb[0].mxu0 %v3524
        %v3560 = vpop.f32.mrb[0].mxu0
        %v3561 = vadd.f32 %v2286, %v3560
        %v3562 = vpop.f32.mrb[0].mxu0
        %v3563 = vpop.f32.mrb[0].mxu0
        %v3564 = vpop.f32.mrb[0].mxu0
        %3565 = vdwg.mxu0
        %v3566 = vmax.f32 %v3561, 0.0
        %v3567 = vld [vmem:[%s24] sm:$0xf]
        %v3568 = vld [vmem:[%s24 + $0x4] sm:$0xf]
        %v3569 = vld [vmem:[%s24 + $0x8] sm:$0xf]
        %v3570 = vld [vmem:[%s24 + $0xc] sm:$0xf]
        %v3571 = vld [vmem:[%s25] sm:$0x1]
        %v3572 = vpack.c.bf16 %v3566, %v3566
        %v3577 = vunpack.c.l.b16 %v3567
        %v3578 = vunpack.c.l.b16 %v3568
        %v3579 = vunpack.c.l.b16 %v3569
        %v3580 = vunpack.c.l.b16 %v3570
        %v3581 = vpack.c.b16 %v3578, %v3577
        %v3582 = vpack.c.b16 %v3580, %v3579
        %v3586 = vsel %vm1158, %v3572, 0
        %3588 = vmatprep.subr.bf16.mxu0 0
        %3589 = vmatpush1.bf16.msra.mxu0 %v3581
        %3590 = vmatprep.subr.bf16.mxu0 0
        %3591 = vmatpush1.bf16.msra.mxu0 %v3582
        %3592 = vmatprep.subr.bf16.mxu0 0
        %3593 = vmatpush1.bf16.msra.mxu0 0
        %3594 = vmatprep.subr.bf16.mxu0 0
        %3595 = vmatpush1.bf16.msra.mxu0 0
        %3596 = vmatprep.subr.bf16.mxu0 0
        %3597 = vmatpush1.bf16.msra.mxu0 0
        %3598 = vmatprep.subr.bf16.mxu0 0
        %3599 = vmatpush1.bf16.msra.mxu0 0
        %3600 = vmatprep.subr.bf16.mxu0 0
        %3601 = vmatpush1.bf16.msra.mxu0 0
        %3602 = vmatprep.subr.bf16.mxu0 0
        %3603 = vmatpush1.bf16.msra.mxu0 0
        %3604 = vmatprep.subr.bf16.mxu0 0
        %3605 = vmatpush1.bf16.msra.mxu0 0
        %3606 = vmatprep.subr.bf16.mxu0 0
        %3607 = vmatpush1.bf16.msra.mxu0 0
        %3608 = vmatprep.subr.bf16.mxu0 0
        %3609 = vmatpush1.bf16.msra.mxu0 0
        %3610 = vmatprep.subr.bf16.mxu0 0
        %3611 = vmatpush1.bf16.msra.mxu0 0
        %3612 = vmatprep.subr.bf16.mxu0 0
        %3613 = vmatpush1.bf16.msra.mxu0 0
        %3614 = vmatprep.subr.bf16.mxu0 0
        %3615 = vmatpush1.bf16.msra.mxu0 0
        %3616 = vmatprep.subr.bf16.mxu0 0
        %3617 = vmatpush1.bf16.msra.mxu0 0
        %3618 = vmatprep.subr.bf16.mxu0 0
        %3619 = vmatpush1.bf16.msra.mxu0 0
        %3620 = vmatprep.mubr.bf16.mxu0 0
        %3621 = vmatmul.mubr.bf16.gmra.mrb[0].mxu0 %v3586
        %v3622 = vpop.f32.mrb[0].mxu0
        %v3623 = vadd.f32 %v3571, %v3622
        %v3624 = vpop.f32.mrb[0].mxu0
        %v3625 = vpop.f32.mrb[0].mxu0
        %v3626 = vpop.f32.mrb[0].mxu0
        %3627 = vdwg.mxu0
        %v3628 = vmax.f32 %v3623, 0.0
        %v3629 = vld [vmem:[%s26] sm:$0xf]
        %v3630 = vld [vmem:[%s26 + $0x4] sm:$0xf]
        %v3631 = vld [vmem:[%s26 + $0x8] sm:$0xf]
        %v3632 = vld [vmem:[%s26 + $0xc] sm:$0xf]
        %v3633 = vld [vmem:[%s27] sm:$0x1]
        %v3634 = vpack.c.bf16 %v3628, %v3628
        %v3639 = vunpack.c.l.b16 %v3629
        %v3640 = vunpack.c.l.b16 %v3630
        %v3641 = vunpack.c.l.b16 %v3631
        %v3642 = vunpack.c.l.b16 %v3632
        %v3643 = vpack.c.b16 %v3640, %v3639
        %v3644 = vpack.c.b16 %v3642, %v3641
        %v3648 = vsel %vm1158, %v3634, 0
        %3650 = vmatprep.subr.bf16.mxu0 0
        %3651 = vmatpush1.bf16.msra.mxu0 %v3643
        %3652 = vmatprep.subr.bf16.mxu0 0
        %3653 = vmatpush1.bf16.msra.mxu0 %v3644
        %3654 = vmatprep.subr.bf16.mxu0 0
        %3655 = vmatpush1.bf16.msra.mxu0 0
        %3656 = vmatprep.subr.bf16.mxu0 0
        %3657 = vmatpush1.bf16.msra.mxu0 0
        %3658 = vmatprep.subr.bf16.mxu0 0
        %3659 = vmatpush1.bf16.msra.mxu0 0
        %3660 = vmatprep.subr.bf16.mxu0 0
        %3661 = vmatpush1.bf16.msra.mxu0 0
        %3662 = vmatprep.subr.bf16.mxu0 0
        %3663 = vmatpush1.bf16.msra.mxu0 0
        %3664 = vmatprep.subr.bf16.mxu0 0
        %3665 = vmatpush1.bf16.msra.mxu0 0
        %3666 = vmatprep.subr.bf16.mxu0 0
        %3667 = vmatpush1.bf16.msra.mxu0 0
        %3668 = vmatprep.subr.bf16.mxu0 0
        %3669 = vmatpush1.bf16.msra.mxu0 0
        %3670 = vmatprep.subr.bf16.mxu0 0
        %3671 = vmatpush1.bf16.msra.mxu0 0
        %3672 = vmatprep.subr.bf16.mxu0 0
        %3673 = vmatpush1.bf16.msra.mxu0 0
        %3674 = vmatprep.subr.bf16.mxu0 0
        %3675 = vmatpush1.bf16.msra.mxu0 0
        %3676 = vmatprep.subr.bf16.mxu0 0
        %3677 = vmatpush1.bf16.msra.mxu0 0
        %3678 = vmatprep.subr.bf16.mxu0 0
        %3679 = vmatpush1.bf16.msra.mxu0 0
        %3680 = vmatprep.subr.bf16.mxu0 0
        %3681 = vmatpush1.bf16.msra.mxu0 0
        %3682 = vmatprep.mubr.bf16.mxu0 0
        %3683 = vmatmul.mubr.bf16.gmra.mrb[0].mxu0 %v3648
        %v3684 = vpop.f32.mrb[0].mxu0
        %v3685 = vadd.f32 %v3633, %v3684
        %v3686 = vpop.f32.mrb[0].mxu0
        %v3687 = vpop.f32.mrb[0].mxu0
        %v3688 = vpop.f32.mrb[0].mxu0
        %3689 = vdwg.mxu0
        %vm3690 = vcmask 24576
        %3691 = vst.msk [vmem:[%s852] sm:$0x1] %vm3690, %v3685
        %s3692 = sand.u32 %s648, 1
        %s3693 = scalar_lea.sflag [#allocation3], %s3692
        %s3694 = sand.u32 %s648, 1
        %s3695 = scalar_lea.vmem [#allocation2], %s3694
        // Predicated region
        $region133: #{tpu_custom_call.1} parent=131 // pred_check
          %p3696 = pneg %p658
        $region134: #{tpu_custom_call.1} parent=131 // pred_check_branch
          %3698 = sbr.rel (%p3696) target = $region136
        $region135: #{tpu_custom_call.1} parent=131 // pred_region
          %s3700 = ssub.s32 16, 16
          %3701 = vsyncadd %s3693, %s3700
          %s3702 = smul.addr %s42, 16
          %s3703 = scalar_lea.hbm %s28, %s3702
          %s3705 = sshll.u32 %s3695, 4
          %s3706 = int_to_ptr.vmem [resolvable:$true] %s3705
          %3708 = dma.vmem_to_hbm [thread:$0]  %s3706, 16, %s3703, %s3693
        $region136: #{tpu_custom_call.1} parent=131 // pred_fallthru
          _
      $region132: #{tpu_custom_call.1} parent=5 // pred_fallthru
        _
      %p3709 = scmp.le.s32.totalorder 2, %s37
      // Predicated region
      $region137: #{tpu_custom_call.1} parent=5 // pred_check
        %p3710 = pneg %p3709
      $region138: #{tpu_custom_call.1} parent=5 // pred_check_branch
        %3712 = sbr.rel (%p3710) target = $region140
      $region139: #{tpu_custom_call.1} parent=5 // pred_region
        %s3713 = ssub.s32 %s37, 2
        // Predicated region
        $region141: #{tpu_custom_call.1} parent=139 // pred_check
          %p3714 = pneg %p664
        $region142: #{tpu_custom_call.1} parent=139 // pred_check_branch
          %3716 = sbr.rel (%p3714) target = $region144
        $region143: #{tpu_custom_call.1} parent=139 // pred_region
          %s3717 = sand.u32 %s649, 1
          %s3718 = scalar_lea.sflag [#allocation3], %s3717
          %s3719 = sand.u32 %s649, 1
          %s3720 = scalar_lea.vmem [#allocation2], %s3719
          %3721 = dma.done %s3718, 16
        $region144: #{tpu_custom_call.1} parent=139 // pred_fallthru
          _
      $region140: #{tpu_custom_call.1} parent=5 // pred_fallthru
        _
    $region6: #{tpu_custom_call.1} parent=1 // loop_footer
      %s41 = sadd.s32 1, %s37
    $region7: #{tpu_custom_call.1} parent=1 // loop_footer_branch
      %36 = sbr.rel target = $region3
    $region8: #{tpu_custom_call.1} parent=1 // loop_exit
      _
    %3722 = vsyncpa [#allocation3], 1
    %s3723 = scalar_lea.sflag [#allocation3], 1
    %3724 = vsyncpa %s3723, 1

</llo_original>
